<compile_context>
chip_gen: v6e
topology: v6e:2x2x1
jax: 0.10.0
libtpu: 0.0.40
codegen_flags: <defaults>
</compile_context>

<pallas_src>
import jax
import jax.numpy as jnp
from jax.experimental import pallas as pl
from jax.experimental.pallas import tpu as pltpu

NC, NDF = 3, 8          # small, self-consistent DCGAN hyper-params (reference globals nc/ndf)
NC_PAD = 8              # input channels padded so layer-1 K = 4*4*8 = 128 (lane-dense)
BN_EPS = 1e-5


# ---------------------------------------------------------------------------
# Pallas kernels: bf16 matmul (f32 accumulation) + fused epilogue
# ---------------------------------------------------------------------------
def _mm_lrelu_kernel(a_ref, b_ref, o_ref):
    y = jnp.dot(a_ref[...], b_ref[...], preferred_element_type=jnp.float32)
    o_ref[...] = jnp.where(y >= 0, y, 0.2 * y).astype(o_ref.dtype)


def _mm_bn_lrelu_kernel(a_ref, b_ref, gamma_ref, beta_ref, o_ref):
    # Whole (M, C) slab is one block, so batch statistics are computed on the
    # f32 accumulator before the single store.
    y = jnp.dot(a_ref[...], b_ref[...], preferred_element_type=jnp.float32)
    mean = jnp.mean(y, axis=0, keepdims=True)
    cen = y - mean
    var = jnp.mean(cen * cen, axis=0, keepdims=True)   # mean((x-mean)^2): no cancellation
    z = cen * jax.lax.rsqrt(var + BN_EPS) * gamma_ref[...] + beta_ref[...]
    o_ref[...] = jnp.where(z >= 0, z, 0.2 * z).astype(o_ref.dtype)


def _mm_sigmoid_kernel(a_ref, b_ref, o_ref):
    y = jnp.dot(a_ref[...], b_ref[...], preferred_element_type=jnp.float32)
    o_ref[...] = (1.0 / (1.0 + jnp.exp(-y))).astype(o_ref.dtype)


# ---------------------------------------------------------------------------
# pallas_call wrappers
# ---------------------------------------------------------------------------
def matmul_lrelu(a, b, *, tm=512):
    """Layer 1: M-tiled, parallel grid, bf16 in / bf16 out."""
    M, K = a.shape
    _, C = b.shape
    tm = tm if M % tm == 0 else M
    return pl.pallas_call(
        _mm_lrelu_kernel,
        out_shape=jax.ShapeDtypeStruct((M, C), jnp.bfloat16),
        grid=(M // tm,),
        in_specs=[pl.BlockSpec((tm, K), lambda i: (i, 0)),
                  pl.BlockSpec((K, C), lambda i: (0, 0))],
        out_specs=pl.BlockSpec((tm, C), lambda i: (i, 0)),
        compiler_params=pltpu.CompilerParams(
            dimension_semantics=("parallel",), vmem_limit_bytes=32 << 20),
    )(a, b)


def matmul_bn_lrelu(a, b, gamma, beta):
    """Layers 2-4: full-M single block (batch-stat BN), bf16 in / bf16 out."""
    M, K = a.shape
    _, C = b.shape
    return pl.pallas_call(
        _mm_bn_lrelu_kernel,
        out_shape=jax.ShapeDtypeStruct((M, C), jnp.bfloat16),
        grid=(1,),
        in_specs=[pl.BlockSpec((M, K), lambda i: (0, 0)),
                  pl.BlockSpec((K, C), lambda i: (0, 0)),
                  pl.BlockSpec((1, C), lambda i: (0, 0)),
                  pl.BlockSpec((1, C), lambda i: (0, 0))],
        out_specs=pl.BlockSpec((M, C), lambda i: (0, 0)),
        compiler_params=pltpu.CompilerParams(
            dimension_semantics=("arbitrary",), vmem_limit_bytes=32 << 20),
    )(a, b, gamma, beta)


def matmul_sigmoid(a, b):
    """Layer 5: (N, 1024) @ (1024, 1) + sigmoid, f32 out (module output)."""
    M, K = a.shape
    _, C = b.shape
    return pl.pallas_call(
        _mm_sigmoid_kernel,
        out_shape=jax.ShapeDtypeStruct((M, C), jnp.float32),
        grid=(1,),
        in_specs=[pl.BlockSpec((M, K), lambda i: (0, 0)),
                  pl.BlockSpec((K, C), lambda i: (0, 0))],
        out_specs=pl.BlockSpec((M, C), lambda i: (0, 0)),
        compiler_params=pltpu.CompilerParams(
            dimension_semantics=("arbitrary",)),
    )(a, b)


# ---------------------------------------------------------------------------
# Conv2d lowering glue (channels-last im2col) — plain JAX, bf16, tiny tensors
# ---------------------------------------------------------------------------
def _im2col_nhwc(x, k, stride, pad):
    """x: (N, H, W, C) -> (N*Ho*Wo, k*k*C); rows ordered (n, oh, ow), cols (di, dj, c)."""
    N, H, W, C = x.shape
    if pad:
        x = jnp.pad(x, ((0, 0), (pad, pad), (pad, pad), (0, 0)))
    Ho = (H + 2 * pad - k) // stride + 1
    Wo = (W + 2 * pad - k) // stride + 1
    cols = [x[:, di:di + stride * (Ho - 1) + 1:stride,
              dj:dj + stride * (Wo - 1) + 1:stride, :]
            for di in range(k) for dj in range(k)]
    A = jnp.stack(cols, axis=3).reshape(N * Ho * Wo, k * k * C)
    return A, (N, Ho, Wo)


def _wmat(w, cin_pad=None):
    """PyTorch Conv2d weight (Cout, Cin, k, k) -> (k*k*Cin, Cout) bf16, cols (di, dj, ci)."""
    Cout, Cin, k, _ = w.shape
    if cin_pad is not None and cin_pad > Cin:
        w = jnp.pad(w, ((0, 0), (0, cin_pad - Cin), (0, 0), (0, 0)))
        Cin = cin_pad
    m = jnp.transpose(w, (2, 3, 1, 0)).reshape(k * k * Cin, Cout)
    return m.astype(jnp.bfloat16)


# ---------------------------------------------------------------------------
# Discriminator forward
# ---------------------------------------------------------------------------
@jax.jit
def discriminator_forward(x, params):
    """x: (N, nc, 64, 64) NCHW f32 -> (N,) sigmoid scores (PyTorch training-mode BN)."""
    (w1,), (w2, g2, b2), (w3, g3, b3), (w4, g4, b4), (w5,) = params

    h = jnp.transpose(x, (0, 2, 3, 1))                       # channels-last, boundary only
    h = jnp.pad(h, ((0, 0), (0, 0), (0, 0), (0, NC_PAD - NC)))  # pad Cin 3->8 (K1 = 128)
    h = h.astype(jnp.bfloat16)                               # bf16 activations end-to-end

    A, (n, ho, wo) = _im2col_nhwc(h, 4, 2, 1)                # 64 -> 32, K = 128
    h = matmul_lrelu(A, _wmat(w1, cin_pad=NC_PAD)).reshape(n, ho, wo, NDF)

    A, (n, ho, wo) = _im2col_nhwc(h, 4, 2, 1)                # 32 -> 16, K = 128
    h = matmul_bn_lrelu(A, _wmat(w2), g2, b2).reshape(n, ho, wo, NDF * 2)

    A, (n, ho, wo) = _im2col_nhwc(h, 4, 2, 1)                # 16 -> 8, K = 256
    h = matmul_bn_lrelu(A, _wmat(w3), g3, b3).reshape(n, ho, wo, NDF * 4)

    A, (n, ho, wo) = _im2col_nhwc(h, 4, 2, 1)                # 8 -> 4, K = 512
    h = matmul_bn_lrelu(A, _wmat(w4), g4, b4).reshape(n, ho, wo, NDF * 8)

    A, _ = _im2col_nhwc(h, 4, 1, 0)                          # 4 -> 1, K = 1024
    y = matmul_sigmoid(A, _wmat(w5))                         # (N, 1) f32
    return y.reshape(-1)                                     # == out.view(-1, 1).squeeze(1)


def init_params(key):
    cins = [NC, NDF, NDF * 2, NDF * 4, NDF * 8]
    couts = [NDF, NDF * 2, NDF * 4, NDF * 8, 1]
    has_bn = [False, True, True, True, False]
    params = []
    for ci, co, bn in zip(cins, couts, has_bn):
        key, sub = jax.random.split(key)
        w = 0.02 * jax.random.normal(sub, (co, ci, 4, 4), dtype=jnp.float32)
        if bn:
            gamma = jnp.ones((1, co), jnp.float32)
            beta = jnp.zeros((1, co), jnp.float32)
            params.append((w, gamma, beta))
        else:
            params.append((w,))
    return tuple(params)


# ---------------------------------------------------------------------------
# Pure-JAX f32 reference (lax conv) for a correctness check
# ---------------------------------------------------------------------------
def _ref_forward(x, params):
    (w1,), (w2, g2, b2), (w3, g3, b3), (w4, g4, b4), (w5,) = params

    def conv(h, w, s, p):
        return jax.lax.conv_general_dilated(
            h, w, (s, s), [(p, p), (p, p)],
            dimension_numbers=("NCHW", "OIHW", "NCHW"))

    def bn(h, g, b):
        c = h.shape[1]
        mean = jnp.mean(h, axis=(0, 2, 3), keepdims=True)
        var = jnp.mean((h - mean) ** 2, axis=(0, 2, 3), keepdims=True)
        gg = g.reshape(1, c, 1, 1)
        bb = b.reshape(1, c, 1, 1)
        return (h - mean) * jax.lax.rsqrt(var + BN_EPS) * gg + bb

    def lrelu(h):
        return jnp.where(h >= 0, h, 0.2 * h)

    h = lrelu(conv(x, w1, 2, 1))
    h = lrelu(bn(conv(h, w2, 2, 1), g2, b2))
    h = lrelu(bn(conv(h, w3, 2, 1), g3, b3))
    h = lrelu(bn(conv(h, w4, 2, 1), g4, b4))
    h = conv(h, w5, 1, 0)
    return jax.nn.sigmoid(h).reshape(-1)


if __name__ == "__main__":
    key = jax.random.PRNGKey(0)
    kx, kp = jax.random.split(key)
    x = jax.random.normal(kx, (2, NC, 64, 64), dtype=jnp.float32)   # (N, nc, 64, 64)
    params = init_params(kp)

    out = jax.block_until_ready(discriminator_forward(x, params))

    assert out.shape == (2,), out.shape
    assert bool(jnp.all(jnp.isfinite(out)))
    assert bool(jnp.all((out > 0.0) & (out < 1.0)))          # sigmoid range

    ref = _ref_forward(x, params)
    assert bool(jnp.max(jnp.abs(out - ref)) < 5e-2), (out, ref)     # bf16 activation tolerance
    print("KERNEL_OK")
</pallas_src>

<mosaic_0001>
module attributes {stable_mosaic.version = 11 : i64} {
  func.func @_mm_lrelu_kernel(%arg0: i32, %arg1: memref<512x128xbf16, #tpu.memory_space<vmem>>, %arg2: memref<128x8xbf16, #tpu.memory_space<vmem>>, %arg3: memref<512x8xbf16, #tpu.memory_space<vmem>>) attributes {dimension_semantics = [#tpu.dimension_semantics<parallel>], iteration_bounds = array<i64: 4>, scalar_prefetch = 0 : i64, scratch_operands = 0 : i64, tpu.core_type = #tpu.core_type<tc>, window_params = [{transform_indices = @transform_0, window_bounds = array<i64: 512, 128>}, {pipeline_mode = #tpu.pipeline_mode<synchronous>, transform_indices = @transform_1, window_bounds = array<i64: 128, 8>}, {transform_indices = @transform_2, window_bounds = array<i64: 512, 8>}]} {
    %c0 = arith.constant 0 : index
    %c0_0 = arith.constant 0 : index
    %0 = vector.load %arg1[%c0, %c0_0] : memref<512x128xbf16, #tpu.memory_space<vmem>>, vector<512x128xbf16>
    %c0_1 = arith.constant 0 : index
    %c0_2 = arith.constant 0 : index
    %1 = vector.load %arg2[%c0_1, %c0_2] : memref<128x8xbf16, #tpu.memory_space<vmem>>, vector<128x8xbf16>
    %cst = arith.constant dense<0.000000e+00> : vector<512x8xf32>
    %2 = tpu.matmul %0, %1, %cst {dimension_numbers = #tpu.dot_dimension_numbers<[1], [0], [0], [1], [0, 0, 1, 1], [], []>} : vector<512x128xbf16>, vector<128x8xbf16>, vector<512x8xf32> -> vector<512x8xf32>
    %cst_3 = arith.constant 0.000000e+00 : f32
    %3 = vector.broadcast %cst_3 : f32 to vector<512x8xf32>
    %4 = arith.cmpf oge, %2, %3 : vector<512x8xf32>
    %cst_4 = arith.constant 2.000000e-01 : f32
    %5 = vector.broadcast %cst_4 : f32 to vector<512x8xf32>
    %6 = arith.mulf %5, %2 : vector<512x8xf32>
    %7 = arith.select %4, %2, %6 : vector<512x8xi1>, vector<512x8xf32>
    %8 = arith.truncf %7 : vector<512x8xf32> to vector<512x8xbf16>
    %c0_5 = arith.constant 0 : index
    %c0_6 = arith.constant 0 : index
    %9 = vector.load %arg3[%c0_5, %c0_6] : memref<512x8xbf16, #tpu.memory_space<vmem>>, vector<512x8xbf16>
    tpu.vector_store %arg3[%c0_5, %c0_6], %8 {strides = array<i32>} : memref<512x8xbf16, #tpu.memory_space<vmem>>, vector<512x8xbf16>,
    return
  }
  func.func @transform_0(%arg0: i32) -> (i32, i32) {
    %c0_i32 = arith.constant 0 : i32
    %c0_i32_0 = arith.constant 0 : i32
    return %arg0, %c0_i32 : i32, i32
  }
  func.func @transform_1(%arg0: i32) -> (i32, i32) {
    %c0_i32 = arith.constant 0 : i32
    %c0_i32_0 = arith.constant 0 : i32
    %c0_i32_1 = arith.constant 0 : i32
    return %c0_i32, %c0_i32_0 : i32, i32
  }
  func.func @transform_2(%arg0: i32) -> (i32, i32) {
    %c0_i32 = arith.constant 0 : i32
    %c0_i32_0 = arith.constant 0 : i32
    return %arg0, %c0_i32 : i32, i32
  }
}

module attributes {stable_mosaic.version = 11 : i64} {
  func.func @_mm_bn_lrelu_kernel(%arg0: i32, %arg1: memref<512x128xbf16, #tpu.memory_space<vmem>>, %arg2: memref<128x16xbf16, #tpu.memory_space<vmem>>, %arg3: memref<1x16xf32, #tpu.memory_space<vmem>>, %arg4: memref<1x16xf32, #tpu.memory_space<vmem>>, %arg5: memref<512x16xbf16, #tpu.memory_space<vmem>>) attributes {dimension_semantics = [#tpu.dimension_semantics<arbitrary>], iteration_bounds = array<i64: 1>, scalar_prefetch = 0 : i64, scratch_operands = 0 : i64, tpu.core_type = #tpu.core_type<tc>, window_params = [{pipeline_mode = #tpu.pipeline_mode<synchronous>, transform_indices = @transform_0, window_bounds = array<i64: 512, 128>}, {pipeline_mode = #tpu.pipeline_mode<synchronous>, transform_indices = @transform_1, window_bounds = array<i64: 128, 16>}, {pipeline_mode = #tpu.pipeline_mode<synchronous>, transform_indices = @transform_2, window_bounds = array<i64: 1, 16>}, {pipeline_mode = #tpu.pipeline_mode<synchronous>, transform_indices = @transform_3, window_bounds = array<i64: 1, 16>}, {pipeline_mode = #tpu.pipeline_mode<synchronous>, transform_indices = @transform_4, window_bounds = array<i64: 512, 16>}]} {
    %c0 = arith.constant 0 : index
    %c0_0 = arith.constant 0 : index
    %0 = vector.load %arg1[%c0, %c0_0] : memref<512x128xbf16, #tpu.memory_space<vmem>>, vector<512x128xbf16>
    %c0_1 = arith.constant 0 : index
    %c0_2 = arith.constant 0 : index
    %1 = vector.load %arg2[%c0_1, %c0_2] : memref<128x16xbf16, #tpu.memory_space<vmem>>, vector<128x16xbf16>
    %cst = arith.constant dense<0.000000e+00> : vector<512x16xf32>
    %2 = tpu.matmul %0, %1, %cst {dimension_numbers = #tpu.dot_dimension_numbers<[1], [0], [0], [1], [0, 0, 1, 1], [], []>} : vector<512x128xbf16>, vector<128x16xbf16>, vector<512x16xf32> -> vector<512x16xf32>
    %cst_3 = arith.constant dense<0.000000e+00> : vector<16xf32>
    %3 = vector.multi_reduction <add>, %2, %cst_3 [0] : vector<512x16xf32> to vector<16xf32>
    %4 = vector.shape_cast %3 : vector<16xf32> to vector<1x16xf32>
    %cst_4 = arith.constant 5.120000e+02 : f32
    %5 = vector.broadcast %cst_4 : f32 to vector<1x16xf32>
    %6 = arith.divf %4, %5 : vector<1x16xf32>
    %7 = vector.broadcast %6 : vector<1x16xf32> to vector<512x16xf32>
    %8 = arith.subf %2, %7 : vector<512x16xf32>
    %9 = arith.mulf %8, %8 : vector<512x16xf32>
    %cst_5 = arith.constant dense<0.000000e+00> : vector<16xf32>
    %10 = vector.multi_reduction <add>, %9, %cst_5 [0] : vector<512x16xf32> to vector<16xf32>
    %11 = vector.shape_cast %10 : vector<16xf32> to vector<1x16xf32>
    %cst_6 = arith.constant 5.120000e+02 : f32
    %12 = vector.broadcast %cst_6 : f32 to vector<1x16xf32>
    %13 = arith.divf %11, %12 : vector<1x16xf32>
    %cst_7 = arith.constant 9.99999974E-6 : f32
    %14 = vector.broadcast %cst_7 : f32 to vector<1x16xf32>
    %15 = arith.addf %13, %14 : vector<1x16xf32>
    %16 = math.rsqrt %15 : vector<1x16xf32>
    %17 = vector.broadcast %16 : vector<1x16xf32> to vector<512x16xf32>
    %18 = arith.mulf %8, %17 : vector<512x16xf32>
    %c0_8 = arith.constant 0 : index
    %c0_9 = arith.constant 0 : index
    %19 = vector.load %arg3[%c0_8, %c0_9] : memref<1x16xf32, #tpu.memory_space<vmem>>, vector<1x16xf32>
    %20 = vector.broadcast %19 : vector<1x16xf32> to vector<512x16xf32>
    %21 = arith.mulf %18, %20 : vector<512x16xf32>
    %c0_10 = arith.constant 0 : index
    %c0_11 = arith.constant 0 : index
    %22 = vector.load %arg4[%c0_10, %c0_11] : memref<1x16xf32, #tpu.memory_space<vmem>>, vector<1x16xf32>
    %23 = vector.broadcast %22 : vector<1x16xf32> to vector<512x16xf32>
    %24 = arith.addf %21, %23 : vector<512x16xf32>
    %cst_12 = arith.constant 0.000000e+00 : f32
    %25 = vector.broadcast %cst_12 : f32 to vector<512x16xf32>
    %26 = arith.cmpf oge, %24, %25 : vector<512x16xf32>
    %cst_13 = arith.constant 2.000000e-01 : f32
    %27 = vector.broadcast %cst_13 : f32 to vector<512x16xf32>
    %28 = arith.mulf %27, %24 : vector<512x16xf32>
    %29 = arith.select %26, %24, %28 : vector<512x16xi1>, vector<512x16xf32>
    %30 = arith.truncf %29 : vector<512x16xf32> to vector<512x16xbf16>
    %c0_14 = arith.constant 0 : index
    %c0_15 = arith.constant 0 : index
    %31 = vector.load %arg5[%c0_14, %c0_15] : memref<512x16xbf16, #tpu.memory_space<vmem>>, vector<512x16xbf16>
    tpu.vector_store %arg5[%c0_14, %c0_15], %30 {strides = array<i32>} : memref<512x16xbf16, #tpu.memory_space<vmem>>, vector<512x16xbf16>,
    return
  }
  func.func @transform_0(%arg0: i32) -> (i32, i32) {
    %c0_i32 = arith.constant 0 : i32
    %c0_i32_0 = arith.constant 0 : i32
    %c0_i32_1 = arith.constant 0 : i32
    return %c0_i32, %c0_i32_0 : i32, i32
  }
  func.func @transform_1(%arg0: i32) -> (i32, i32) {
    %c0_i32 = arith.constant 0 : i32
    %c0_i32_0 = arith.constant 0 : i32
    %c0_i32_1 = arith.constant 0 : i32
    return %c0_i32, %c0_i32_0 : i32, i32
  }
  func.func @transform_2(%arg0: i32) -> (i32, i32) {
    %c0_i32 = arith.constant 0 : i32
    %c0_i32_0 = arith.constant 0 : i32
    %c0_i32_1 = arith.constant 0 : i32
    return %c0_i32, %c0_i32_0 : i32, i32
  }
  func.func @transform_3(%arg0: i32) -> (i32, i32) {
    %c0_i32 = arith.constant 0 : i32
    %c0_i32_0 = arith.constant 0 : i32
    %c0_i32_1 = arith.constant 0 : i32
    return %c0_i32, %c0_i32_0 : i32, i32
  }
  func.func @transform_4(%arg0: i32) -> (i32, i32) {
    %c0_i32 = arith.constant 0 : i32
    %c0_i32_0 = arith.constant 0 : i32
    %c0_i32_1 = arith.constant 0 : i32
    return %c0_i32, %c0_i32_0 : i32, i32
  }
}

module attributes {stable_mosaic.version = 11 : i64} {
  func.func @_mm_bn_lrelu_kernel(%arg0: i32, %arg1: memref<128x256xbf16, #tpu.memory_space<vmem>>, %arg2: memref<256x32xbf16, #tpu.memory_space<vmem>>, %arg3: memref<1x32xf32, #tpu.memory_space<vmem>>, %arg4: memref<1x32xf32, #tpu.memory_space<vmem>>, %arg5: memref<128x32xbf16, #tpu.memory_space<vmem>>) attributes {dimension_semantics = [#tpu.dimension_semantics<arbitrary>], iteration_bounds = array<i64: 1>, scalar_prefetch = 0 : i64, scratch_operands = 0 : i64, tpu.core_type = #tpu.core_type<tc>, window_params = [{pipeline_mode = #tpu.pipeline_mode<synchronous>, transform_indices = @transform_0, window_bounds = array<i64: 128, 256>}, {pipeline_mode = #tpu.pipeline_mode<synchronous>, transform_indices = @transform_1, window_bounds = array<i64: 256, 32>}, {pipeline_mode = #tpu.pipeline_mode<synchronous>, transform_indices = @transform_2, window_bounds = array<i64: 1, 32>}, {pipeline_mode = #tpu.pipeline_mode<synchronous>, transform_indices = @transform_3, window_bounds = array<i64: 1, 32>}, {pipeline_mode = #tpu.pipeline_mode<synchronous>, transform_indices = @transform_4, window_bounds = array<i64: 128, 32>}]} {
    %c0 = arith.constant 0 : index
    %c0_0 = arith.constant 0 : index
    %0 = vector.load %arg1[%c0, %c0_0] : memref<128x256xbf16, #tpu.memory_space<vmem>>, vector<128x256xbf16>
    %c0_1 = arith.constant 0 : index
    %c0_2 = arith.constant 0 : index
    %1 = vector.load %arg2[%c0_1, %c0_2] : memref<256x32xbf16, #tpu.memory_space<vmem>>, vector<256x32xbf16>
    %cst = arith.constant dense<0.000000e+00> : vector<128x32xf32>
    %2 = tpu.matmul %0, %1, %cst {dimension_numbers = #tpu.dot_dimension_numbers<[1], [0], [0], [1], [0, 0, 1, 1], [], []>} : vector<128x256xbf16>, vector<256x32xbf16>, vector<128x32xf32> -> vector<128x32xf32>
    %cst_3 = arith.constant dense<0.000000e+00> : vector<32xf32>
    %3 = vector.multi_reduction <add>, %2, %cst_3 [0] : vector<128x32xf32> to vector<32xf32>
    %4 = vector.shape_cast %3 : vector<32xf32> to vector<1x32xf32>
    %cst_4 = arith.constant 1.280000e+02 : f32
    %5 = vector.broadcast %cst_4 : f32 to vector<1x32xf32>
    %6 = arith.divf %4, %5 : vector<1x32xf32>
    %7 = vector.broadcast %6 : vector<1x32xf32> to vector<128x32xf32>
    %8 = arith.subf %2, %7 : vector<128x32xf32>
    %9 = arith.mulf %8, %8 : vector<128x32xf32>
    %cst_5 = arith.constant dense<0.000000e+00> : vector<32xf32>
    %10 = vector.multi_reduction <add>, %9, %cst_5 [0] : vector<128x32xf32> to vector<32xf32>
    %11 = vector.shape_cast %10 : vector<32xf32> to vector<1x32xf32>
    %cst_6 = arith.constant 1.280000e+02 : f32
    %12 = vector.broadcast %cst_6 : f32 to vector<1x32xf32>
    %13 = arith.divf %11, %12 : vector<1x32xf32>
    %cst_7 = arith.constant 9.99999974E-6 : f32
    %14 = vector.broadcast %cst_7 : f32 to vector<1x32xf32>
    %15 = arith.addf %13, %14 : vector<1x32xf32>
    %16 = math.rsqrt %15 : vector<1x32xf32>
    %17 = vector.broadcast %16 : vector<1x32xf32> to vector<128x32xf32>
    %18 = arith.mulf %8, %17 : vector<128x32xf32>
    %c0_8 = arith.constant 0 : index
    %c0_9 = arith.constant 0 : index
    %19 = vector.load %arg3[%c0_8, %c0_9] : memref<1x32xf32, #tpu.memory_space<vmem>>, vector<1x32xf32>
    %20 = vector.broadcast %19 : vector<1x32xf32> to vector<128x32xf32>
    %21 = arith.mulf %18, %20 : vector<128x32xf32>
    %c0_10 = arith.constant 0 : index
    %c0_11 = arith.constant 0 : index
    %22 = vector.load %arg4[%c0_10, %c0_11] : memref<1x32xf32, #tpu.memory_space<vmem>>, vector<1x32xf32>
    %23 = vector.broadcast %22 : vector<1x32xf32> to vector<128x32xf32>
    %24 = arith.addf %21, %23 : vector<128x32xf32>
    %cst_12 = arith.constant 0.000000e+00 : f32
    %25 = vector.broadcast %cst_12 : f32 to vector<128x32xf32>
    %26 = arith.cmpf oge, %24, %25 : vector<128x32xf32>
    %cst_13 = arith.constant 2.000000e-01 : f32
    %27 = vector.broadcast %cst_13 : f32 to vector<128x32xf32>
    %28 = arith.mulf %27, %24 : vector<128x32xf32>
    %29 = arith.select %26, %24, %28 : vector<128x32xi1>, vector<128x32xf32>
    %30 = arith.truncf %29 : vector<128x32xf32> to vector<128x32xbf16>
    %c0_14 = arith.constant 0 : index
    %c0_15 = arith.constant 0 : index
    %31 = vector.load %arg5[%c0_14, %c0_15] : memref<128x32xbf16, #tpu.memory_space<vmem>>, vector<128x32xbf16>
    tpu.vector_store %arg5[%c0_14, %c0_15], %30 {strides = array<i32>} : memref<128x32xbf16, #tpu.memory_space<vmem>>, vector<128x32xbf16>,
    return
  }
  func.func @transform_0(%arg0: i32) -> (i32, i32) {
    %c0_i32 = arith.constant 0 : i32
    %c0_i32_0 = arith.constant 0 : i32
    %c0_i32_1 = arith.constant 0 : i32
    return %c0_i32, %c0_i32_0 : i32, i32
  }
  func.func @transform_1(%arg0: i32) -> (i32, i32) {
    %c0_i32 = arith.constant 0 : i32
    %c0_i32_0 = arith.constant 0 : i32
    %c0_i32_1 = arith.constant 0 : i32
    return %c0_i32, %c0_i32_0 : i32, i32
  }
  func.func @transform_2(%arg0: i32) -> (i32, i32) {
    %c0_i32 = arith.constant 0 : i32
    %c0_i32_0 = arith.constant 0 : i32
    %c0_i32_1 = arith.constant 0 : i32
    return %c0_i32, %c0_i32_0 : i32, i32
  }
  func.func @transform_3(%arg0: i32) -> (i32, i32) {
    %c0_i32 = arith.constant 0 : i32
    %c0_i32_0 = arith.constant 0 : i32
    %c0_i32_1 = arith.constant 0 : i32
    return %c0_i32, %c0_i32_0 : i32, i32
  }
  func.func @transform_4(%arg0: i32) -> (i32, i32) {
    %c0_i32 = arith.constant 0 : i32
    %c0_i32_0 = arith.constant 0 : i32
    %c0_i32_1 = arith.constant 0 : i32
    return %c0_i32, %c0_i32_0 : i32, i32
  }
}

module attributes {stable_mosaic.version = 11 : i64} {
  func.func @_mm_bn_lrelu_kernel(%arg0: i32, %arg1: memref<32x512xbf16, #tpu.memory_space<vmem>>, %arg2: memref<512x64xbf16, #tpu.memory_space<vmem>>, %arg3: memref<1x64xf32, #tpu.memory_space<vmem>>, %arg4: memref<1x64xf32, #tpu.memory_space<vmem>>, %arg5: memref<32x64xbf16, #tpu.memory_space<vmem>>) attributes {dimension_semantics = [#tpu.dimension_semantics<arbitrary>], iteration_bounds = array<i64: 1>, scalar_prefetch = 0 : i64, scratch_operands = 0 : i64, tpu.core_type = #tpu.core_type<tc>, window_params = [{pipeline_mode = #tpu.pipeline_mode<synchronous>, transform_indices = @transform_0, window_bounds = array<i64: 32, 512>}, {pipeline_mode = #tpu.pipeline_mode<synchronous>, transform_indices = @transform_1, window_bounds = array<i64: 512, 64>}, {pipeline_mode = #tpu.pipeline_mode<synchronous>, transform_indices = @transform_2, window_bounds = array<i64: 1, 64>}, {pipeline_mode = #tpu.pipeline_mode<synchronous>, transform_indices = @transform_3, window_bounds = array<i64: 1, 64>}, {pipeline_mode = #tpu.pipeline_mode<synchronous>, transform_indices = @transform_4, window_bounds = array<i64: 32, 64>}]} {
    %c0 = arith.constant 0 : index
    %c0_0 = arith.constant 0 : index
    %0 = vector.load %arg1[%c0, %c0_0] : memref<32x512xbf16, #tpu.memory_space<vmem>>, vector<32x512xbf16>
    %c0_1 = arith.constant 0 : index
    %c0_2 = arith.constant 0 : index
    %1 = vector.load %arg2[%c0_1, %c0_2] : memref<512x64xbf16, #tpu.memory_space<vmem>>, vector<512x64xbf16>
    %cst = arith.constant dense<0.000000e+00> : vector<32x64xf32>
    %2 = tpu.matmul %0, %1, %cst {dimension_numbers = #tpu.dot_dimension_numbers<[1], [0], [0], [1], [0, 0, 1, 1], [], []>} : vector<32x512xbf16>, vector<512x64xbf16>, vector<32x64xf32> -> vector<32x64xf32>
    %cst_3 = arith.constant dense<0.000000e+00> : vector<64xf32>
    %3 = vector.multi_reduction <add>, %2, %cst_3 [0] : vector<32x64xf32> to vector<64xf32>
    %4 = vector.shape_cast %3 : vector<64xf32> to vector<1x64xf32>
    %cst_4 = arith.constant 3.200000e+01 : f32
    %5 = vector.broadcast %cst_4 : f32 to vector<1x64xf32>
    %6 = arith.divf %4, %5 : vector<1x64xf32>
    %7 = vector.broadcast %6 : vector<1x64xf32> to vector<32x64xf32>
    %8 = arith.subf %2, %7 : vector<32x64xf32>
    %9 = arith.mulf %8, %8 : vector<32x64xf32>
    %cst_5 = arith.constant dense<0.000000e+00> : vector<64xf32>
    %10 = vector.multi_reduction <add>, %9, %cst_5 [0] : vector<32x64xf32> to vector<64xf32>
    %11 = vector.shape_cast %10 : vector<64xf32> to vector<1x64xf32>
    %cst_6 = arith.constant 3.200000e+01 : f32
    %12 = vector.broadcast %cst_6 : f32 to vector<1x64xf32>
    %13 = arith.divf %11, %12 : vector<1x64xf32>
    %cst_7 = arith.constant 9.99999974E-6 : f32
    %14 = vector.broadcast %cst_7 : f32 to vector<1x64xf32>
    %15 = arith.addf %13, %14 : vector<1x64xf32>
    %16 = math.rsqrt %15 : vector<1x64xf32>
    %17 = vector.broadcast %16 : vector<1x64xf32> to vector<32x64xf32>
    %18 = arith.mulf %8, %17 : vector<32x64xf32>
    %c0_8 = arith.constant 0 : index
    %c0_9 = arith.constant 0 : index
    %19 = vector.load %arg3[%c0_8, %c0_9] : memref<1x64xf32, #tpu.memory_space<vmem>>, vector<1x64xf32>
    %20 = vector.broadcast %19 : vector<1x64xf32> to vector<32x64xf32>
    %21 = arith.mulf %18, %20 : vector<32x64xf32>
    %c0_10 = arith.constant 0 : index
    %c0_11 = arith.constant 0 : index
    %22 = vector.load %arg4[%c0_10, %c0_11] : memref<1x64xf32, #tpu.memory_space<vmem>>, vector<1x64xf32>
    %23 = vector.broadcast %22 : vector<1x64xf32> to vector<32x64xf32>
    %24 = arith.addf %21, %23 : vector<32x64xf32>
    %cst_12 = arith.constant 0.000000e+00 : f32
    %25 = vector.broadcast %cst_12 : f32 to vector<32x64xf32>
    %26 = arith.cmpf oge, %24, %25 : vector<32x64xf32>
    %cst_13 = arith.constant 2.000000e-01 : f32
    %27 = vector.broadcast %cst_13 : f32 to vector<32x64xf32>
    %28 = arith.mulf %27, %24 : vector<32x64xf32>
    %29 = arith.select %26, %24, %28 : vector<32x64xi1>, vector<32x64xf32>
    %30 = arith.truncf %29 : vector<32x64xf32> to vector<32x64xbf16>
    %c0_14 = arith.constant 0 : index
    %c0_15 = arith.constant 0 : index
    %31 = vector.load %arg5[%c0_14, %c0_15] : memref<32x64xbf16, #tpu.memory_space<vmem>>, vector<32x64xbf16>
    tpu.vector_store %arg5[%c0_14, %c0_15], %30 {strides = array<i32>} : memref<32x64xbf16, #tpu.memory_space<vmem>>, vector<32x64xbf16>,
    return
  }
  func.func @transform_0(%arg0: i32) -> (i32, i32) {
    %c0_i32 = arith.constant 0 : i32
    %c0_i32_0 = arith.constant 0 : i32
    %c0_i32_1 = arith.constant 0 : i32
    return %c0_i32, %c0_i32_0 : i32, i32
  }
  func.func @transform_1(%arg0: i32) -> (i32, i32) {
    %c0_i32 = arith.constant 0 : i32
    %c0_i32_0 = arith.constant 0 : i32
    %c0_i32_1 = arith.constant 0 : i32
    return %c0_i32, %c0_i32_0 : i32, i32
  }
  func.func @transform_2(%arg0: i32) -> (i32, i32) {
    %c0_i32 = arith.constant 0 : i32
    %c0_i32_0 = arith.constant 0 : i32
    %c0_i32_1 = arith.constant 0 : i32
    return %c0_i32, %c0_i32_0 : i32, i32
  }
  func.func @transform_3(%arg0: i32) -> (i32, i32) {
    %c0_i32 = arith.constant 0 : i32
    %c0_i32_0 = arith.constant 0 : i32
    %c0_i32_1 = arith.constant 0 : i32
    return %c0_i32, %c0_i32_0 : i32, i32
  }
  func.func @transform_4(%arg0: i32) -> (i32, i32) {
    %c0_i32 = arith.constant 0 : i32
    %c0_i32_0 = arith.constant 0 : i32
    %c0_i32_1 = arith.constant 0 : i32
    return %c0_i32, %c0_i32_0 : i32, i32
  }
}

module attributes {stable_mosaic.version = 11 : i64} {
  func.func @_mm_sigmoid_kernel(%arg0: i32, %arg1: memref<2x1024xbf16, #tpu.memory_space<vmem>>, %arg2: memref<1024x1xbf16, #tpu.memory_space<vmem>>, %arg3: memref<2x1xf32, #tpu.memory_space<vmem>>) attributes {dimension_semantics = [#tpu.dimension_semantics<arbitrary>], iteration_bounds = array<i64: 1>, scalar_prefetch = 0 : i64, scratch_operands = 0 : i64, tpu.core_type = #tpu.core_type<tc>, window_params = [{pipeline_mode = #tpu.pipeline_mode<synchronous>, transform_indices = @transform_0, window_bounds = array<i64: 2, 1024>}, {pipeline_mode = #tpu.pipeline_mode<synchronous>, transform_indices = @transform_1, window_bounds = array<i64: 1024, 1>}, {pipeline_mode = #tpu.pipeline_mode<synchronous>, transform_indices = @transform_2, window_bounds = array<i64: 2, 1>}]} {
    %c0 = arith.constant 0 : index
    %c0_0 = arith.constant 0 : index
    %0 = vector.load %arg1[%c0, %c0_0] : memref<2x1024xbf16, #tpu.memory_space<vmem>>, vector<2x1024xbf16>
    %c0_1 = arith.constant 0 : index
    %c0_2 = arith.constant 0 : index
    %1 = vector.load %arg2[%c0_1, %c0_2] : memref<1024x1xbf16, #tpu.memory_space<vmem>>, vector<1024x1xbf16>
    %cst = arith.constant dense<0.000000e+00> : vector<2x1xf32>
    %2 = tpu.matmul %0, %1, %cst {dimension_numbers = #tpu.dot_dimension_numbers<[1], [0], [0], [1], [0, 0, 1, 1], [], []>} : vector<2x1024xbf16>, vector<1024x1xbf16>, vector<2x1xf32> -> vector<2x1xf32>
    %cst_3 = arith.constant 0.000000e+00 : f32
    %3 = vector.broadcast %cst_3 : f32 to vector<2x1xf32>
    %4 = arith.subf %3, %2 : vector<2x1xf32>
    %5 = math.exp %4 : vector<2x1xf32>
    %cst_4 = arith.constant 1.000000e+00 : f32
    %6 = vector.broadcast %cst_4 : f32 to vector<2x1xf32>
    %7 = arith.addf %6, %5 : vector<2x1xf32>
    %cst_5 = arith.constant 1.000000e+00 : f32
    %8 = vector.broadcast %cst_5 : f32 to vector<2x1xf32>
    %9 = arith.divf %8, %7 : vector<2x1xf32>
    %c0_6 = arith.constant 0 : index
    %c0_7 = arith.constant 0 : index
    %10 = vector.load %arg3[%c0_6, %c0_7] : memref<2x1xf32, #tpu.memory_space<vmem>>, vector<2x1xf32>
    tpu.vector_store %arg3[%c0_6, %c0_7], %9 {strides = array<i32>} : memref<2x1xf32, #tpu.memory_space<vmem>>, vector<2x1xf32>,
    return
  }
  func.func @transform_0(%arg0: i32) -> (i32, i32) {
    %c0_i32 = arith.constant 0 : i32
    %c0_i32_0 = arith.constant 0 : i32
    %c0_i32_1 = arith.constant 0 : i32
    return %c0_i32, %c0_i32_0 : i32, i32
  }
  func.func @transform_1(%arg0: i32) -> (i32, i32) {
    %c0_i32 = arith.constant 0 : i32
    %c0_i32_0 = arith.constant 0 : i32
    %c0_i32_1 = arith.constant 0 : i32
    return %c0_i32, %c0_i32_0 : i32, i32
  }
  func.func @transform_2(%arg0: i32) -> (i32, i32) {
    %c0_i32 = arith.constant 0 : i32
    %c0_i32_0 = arith.constant 0 : i32
    %c0_i32_1 = arith.constant 0 : i32
    return %c0_i32, %c0_i32_0 : i32, i32
  }
}

</mosaic_0001>

<llo_original>
// kernel: discriminator_forward.5
$region0: #{discriminator_forward.5}
  #allocation0 [shape = 'u32[]', space=smem, size = 0x4, offset = 0x4, fixed_abs, tag = 'smem constant byte address 0x4 - core index']
  #allocation1 [shape = 'u32[144,128]{1,0:T(1,128)}', space=vmem, size = 0x12000, scoped, tag = 'internal scratch']
  %s0 = inlined_call_operand.vmem [shape: bf16[2048,128], index: 0, kind: input, shape index: {}]
  %s1 = inlined_call_operand.vmem [shape: bf16[128,8], index: 1, kind: input, shape index: {}]
  %s2 = inlined_call_operand.vmem [shape: bf16[2048,8], index: 2, kind: output, shape index: {}]
  %s3 = sld [smem:[#allocation0]]
  $region41: #{discriminator_forward.5} parent=0
    _
  %s5 = ssub.s32 1, %s3
  %s6 = scalar_select 0, %s5, %s3
  loop: start=0, step=1, limit=6
  $region2: #{discriminator_forward.5} parent=0 // loop_pre_header
    _
  $region3: #{discriminator_forward.5} parent=0 // loop_header
    %s8 = sphi 0, %s12
    %p9 = scmp.ge.s32.totalorder %s8, 6
    %s18 = sphi 0, %s20
    %s21 = sphi 0, %s18
    %s22 = sphi 0, %s21
    %s38 = sphi 0, %s22
    %s42 = sphi 0, %s42
    %s44 = sphi 0, %s42
    %s45 = sphi 0, %s44
    %s59 = sphi 0, %s45
    %s65 = sphi 0, %s67
    %s68 = sphi 0, %s65
    %s69 = sphi 0, %s68
    %s85 = sphi 0, %s69
  $region4: #{discriminator_forward.5} parent=0 // loop_header_branch
    %11 = sbr.rel (%p9) target = $region8
  $region5: #{discriminator_forward.5} parent=0 // loop_body
    %s13 = ssub.s32 %s8, 1
    %s14 = ssub.s32 %s8, 2
    %s15 = sadd.s32 %s8, 1
    %s16 = ssub.s32 %s8, %s15
    %p17 = scmp.eq.s32.totalorder %s16, 0
    %s19 = sadd.s32 %s18, 1
    %s20 = scalar_select %p17, %s18, %s19
    %p23 = pneg %p17
    %p24 = scmp.eq.s32.totalorder %s8, 3
    %p25 = por %p23, %p24
    %p26 = scmp.ne.s32.totalorder %s18, %s21
    %p27 = scmp.eq.s32.totalorder %s8, 0
    %p28 = por %p26, %p27
    %p29 = scmp.ne.s32.totalorder %s18, %s21
    %p30 = scmp.eq.s32.totalorder %s13, 3
    %p31 = por %p29, %p30
    %p32 = scmp.ne.s32.totalorder %s21, %s22
    %p33 = scmp.eq.s32.totalorder %s13, 0
    %p34 = por %p32, %p33
    %p35 = scmp.ne.s32.totalorder %s21, %s22
    %p36 = scmp.eq.s32.totalorder %s14, 3
    %p37 = por %p35, %p36
    %p39 = scmp.ne.s32.totalorder %s22, %s38
    %p40 = scmp.eq.s32.totalorder %s14, 0
    %p41 = por %p39, %p40
    %s43 = sadd.s32 %s42, 1
    %p46 = scmp.eq.s32.totalorder %s8, 3
    %p47 = scmp.ne.s32.totalorder %s42, %s44
    %p48 = scmp.eq.s32.totalorder %s8, 0
    %p49 = por %p47, %p48
    %p50 = scmp.ne.s32.totalorder %s42, %s44
    %p51 = scmp.eq.s32.totalorder %s13, 3
    %p52 = por %p50, %p51
    %p53 = scmp.ne.s32.totalorder %s44, %s45
    %p54 = scmp.eq.s32.totalorder %s13, 0
    %p55 = por %p53, %p54
    %p56 = scmp.ne.s32.totalorder %s44, %s45
    %p57 = scmp.eq.s32.totalorder %s14, 3
    %p58 = por %p56, %p57
    %p60 = scmp.ne.s32.totalorder %s45, %s59
    %p61 = scmp.eq.s32.totalorder %s14, 0
    %p62 = por %p60, %p61
    %s63 = ssub.s32 %s8, %s15
    %p64 = scmp.eq.s32.totalorder %s63, 0
    %s66 = sadd.s32 %s65, 1
    %s67 = scalar_select %p64, %s65, %s66
    %p70 = pneg %p64
    %p71 = scmp.eq.s32.totalorder %s8, 3
    %p72 = por %p70, %p71
    %p73 = scmp.ne.s32.totalorder %s65, %s68
    %p74 = scmp.eq.s32.totalorder %s8, 0
    %p75 = por %p73, %p74
    %p76 = scmp.ne.s32.totalorder %s65, %s68
    %p77 = scmp.eq.s32.totalorder %s13, 3
    %p78 = por %p76, %p77
    %p79 = scmp.ne.s32.totalorder %s68, %s69
    %p80 = scmp.eq.s32.totalorder %s13, 0
    %p81 = por %p79, %p80
    %p82 = scmp.ne.s32.totalorder %s68, %s69
    %p83 = scmp.eq.s32.totalorder %s14, 3
    %p84 = por %p82, %p83
    %p86 = scmp.ne.s32.totalorder %s69, %s85
    %p87 = scmp.eq.s32.totalorder %s14, 0
    %p88 = por %p86, %p87
    %p89 = scmp.le.s32.totalorder 1, %s8
    %p90 = scmp.lt.s32.totalorder %s8, 5
    %p91 = pnand %p89, %p90
    %p92 = pneg %p91
    // Predicated region
    $region9: #{discriminator_forward.5} parent=5 // pred_check
      _
    $region10: #{discriminator_forward.5} parent=5 // pred_check_branch
      %94 = sbr.rel (%p91) target = $region12
    $region11: #{discriminator_forward.5} parent=5 // pred_region
      %s95 = ssub.s32 %s8, 1
      // Predicated region
      $region13: #{discriminator_forward.5} parent=11 // pred_check
        %p96 = pneg %p55
      $region14: #{discriminator_forward.5} parent=11 // pred_check_branch
        %98 = sbr.rel (%p96) target = $region16
      $region15: #{discriminator_forward.5} parent=11 // pred_region
        _
      $region16: #{discriminator_forward.5} parent=11 // pred_fallthru
        _
    $region12: #{discriminator_forward.5} parent=5 // pred_fallthru
      _
    %p99 = scmp.lt.s32.totalorder %s8, 4
    // Predicated region
    $region17: #{discriminator_forward.5} parent=5 // pred_check
      %p100 = pneg %p99
    $region18: #{discriminator_forward.5} parent=5 // pred_check_branch
      %102 = sbr.rel (%p100) target = $region20
    $region19: #{discriminator_forward.5} parent=5 // pred_region
      // Predicated region
      $region21: #{discriminator_forward.5} parent=19 // pred_check
        %p103 = pneg %p28
      $region22: #{discriminator_forward.5} parent=19 // pred_check_branch
        %105 = sbr.rel (%p103) target = $region24
      $region23: #{discriminator_forward.5} parent=19 // pred_region
        %s106 = smul.u32 64, %s8
        %p107 = scmp.lt.s32.totalorder %s106, 255
        %s108 = scalar_select %p107, %s106, 255
        %s109 = smul.addr %s108, 4
        %s110 = scalar_lea.vmem %s0, %s109
        %s111 = smul.u32 64, %s8
      $region24: #{discriminator_forward.5} parent=19 // pred_fallthru
        _
    $region20: #{discriminator_forward.5} parent=5 // pred_fallthru
      _
    %p112 = scmp.le.s32.totalorder 1, %s8
    %p113 = scmp.lt.s32.totalorder %s8, 5
    %p114 = pnand %p112, %p113
    %p115 = pneg %p114
    // Predicated region
    $region25: #{discriminator_forward.5} parent=5 // pred_check
      _
    $region26: #{discriminator_forward.5} parent=5 // pred_check_branch
      %117 = sbr.rel (%p114) target = $region28
    $region27: #{discriminator_forward.5} parent=5 // pred_region
      %s118 = ssub.s32 %s8, 1
      %s119 = smul.u32 64, %s13
      %p120 = scmp.lt.s32.totalorder %s119, 255
      %s121 = scalar_select %p120, %s119, 255
      %s122 = smul.addr %s121, 4
      %s123 = scalar_lea.vmem %s0, %s122
      %p124 = pneg %p34
      %p125 = pneg %p31
      %p126 = pneg %p55
      %p127 = pneg %p52
      %p128 = pneg %p81
      %p129 = pneg %p78
      %s130 = smul.u32 64, %s13
      %p131 = scmp.lt.s32.totalorder %s130, 255
      %s132 = scalar_select %p131, %s130, 255
      %s133 = smul.addr %s132, 4
      %s134 = scalar_lea.vmem %s2, %s133
      %s135 = smul.u32 64, %s13
      %p136 = scmp.lt.s32.totalorder %s135, 255
      %s137 = scalar_select %p136, %s135, 255
      %s138 = smul.addr %s137, 4
      %s139 = scalar_lea.vmem %s0, %s138
      %s140 = smul.u32 64, %s13
      %s141 = smul.u32 64, %s13
      %p142 = scmp.lt.s32.totalorder %s141, 255
      %s143 = scalar_select %p142, %s141, 255
      %s144 = smul.addr %s143, 4
      %s145 = scalar_lea.vmem %s2, %s144
      %s146 = smul.u32 64, %s13
      %v148 = vld [vmem:[%s139] sm:$0xf]
      %v149 = vld [vmem:[%s139 + $0x4] sm:$0xf]
      %v150 = vld [vmem:[%s139 + $0x8] sm:$0xf]
      %v151 = vld [vmem:[%s139 + $0xc] sm:$0xf]
      %v152 = vld [vmem:[%s139 + $0x10] sm:$0xf]
      %v153 = vld [vmem:[%s139 + $0x14] sm:$0xf]
      %v154 = vld [vmem:[%s139 + $0x18] sm:$0xf]
      %v155 = vld [vmem:[%s139 + $0x1c] sm:$0xf]
      %v156 = vld [vmem:[%s139 + $0x20] sm:$0xf]
      %v157 = vld [vmem:[%s139 + $0x24] sm:$0xf]
      %v158 = vld [vmem:[%s139 + $0x28] sm:$0xf]
      %v159 = vld [vmem:[%s139 + $0x2c] sm:$0xf]
      %v160 = vld [vmem:[%s139 + $0x30] sm:$0xf]
      %v161 = vld [vmem:[%s139 + $0x34] sm:$0xf]
      %v162 = vld [vmem:[%s139 + $0x38] sm:$0xf]
      %v163 = vld [vmem:[%s139 + $0x3c] sm:$0xf]
      %v164 = vld [vmem:[%s139 + $0x40] sm:$0xf]
      %v165 = vld [vmem:[%s139 + $0x44] sm:$0xf]
      %v166 = vld [vmem:[%s139 + $0x48] sm:$0xf]
      %v167 = vld [vmem:[%s139 + $0x4c] sm:$0xf]
      %v168 = vld [vmem:[%s139 + $0x50] sm:$0xf]
      %v169 = vld [vmem:[%s139 + $0x54] sm:$0xf]
      %v170 = vld [vmem:[%s139 + $0x58] sm:$0xf]
      %v171 = vld [vmem:[%s139 + $0x5c] sm:$0xf]
      %v172 = vld [vmem:[%s139 + $0x60] sm:$0xf]
      %v173 = vld [vmem:[%s139 + $0x64] sm:$0xf]
      %v174 = vld [vmem:[%s139 + $0x68] sm:$0xf]
      %v175 = vld [vmem:[%s139 + $0x6c] sm:$0xf]
      %v176 = vld [vmem:[%s139 + $0x70] sm:$0xf]
      %v177 = vld [vmem:[%s139 + $0x74] sm:$0xf]
      %v178 = vld [vmem:[%s139 + $0x78] sm:$0xf]
      %v179 = vld [vmem:[%s139 + $0x7c] sm:$0xf]
      %v180 = vld [vmem:[%s139 + $0x80] sm:$0xf]
      %v181 = vld [vmem:[%s139 + $0x84] sm:$0xf]
      %v182 = vld [vmem:[%s139 + $0x88] sm:$0xf]
      %v183 = vld [vmem:[%s139 + $0x8c] sm:$0xf]
      %v184 = vld [vmem:[%s139 + $0x90] sm:$0xf]
      %v185 = vld [vmem:[%s139 + $0x94] sm:$0xf]
      %v186 = vld [vmem:[%s139 + $0x98] sm:$0xf]
      %v187 = vld [vmem:[%s139 + $0x9c] sm:$0xf]
      %v188 = vld [vmem:[%s139 + $0xa0] sm:$0xf]
      %v189 = vld [vmem:[%s139 + $0xa4] sm:$0xf]
      %v190 = vld [vmem:[%s139 + $0xa8] sm:$0xf]
      %v191 = vld [vmem:[%s139 + $0xac] sm:$0xf]
      %v192 = vld [vmem:[%s139 + $0xb0] sm:$0xf]
      %v193 = vld [vmem:[%s139 + $0xb4] sm:$0xf]
      %v194 = vld [vmem:[%s139 + $0xb8] sm:$0xf]
      %v195 = vld [vmem:[%s139 + $0xbc] sm:$0xf]
      %v196 = vld [vmem:[%s139 + $0xc0] sm:$0xf]
      %v197 = vld [vmem:[%s139 + $0xc4] sm:$0xf]
      %v198 = vld [vmem:[%s139 + $0xc8] sm:$0xf]
      %v199 = vld [vmem:[%s139 + $0xcc] sm:$0xf]
      %v200 = vld [vmem:[%s139 + $0xd0] sm:$0xf]
      %v201 = vld [vmem:[%s139 + $0xd4] sm:$0xf]
      %v202 = vld [vmem:[%s139 + $0xd8] sm:$0xf]
      %v203 = vld [vmem:[%s139 + $0xdc] sm:$0xf]
      %v204 = vld [vmem:[%s139 + $0xe0] sm:$0xf]
      %v205 = vld [vmem:[%s139 + $0xe4] sm:$0xf]
      %v206 = vld [vmem:[%s139 + $0xe8] sm:$0xf]
      %v207 = vld [vmem:[%s139 + $0xec] sm:$0xf]
      %v208 = vld [vmem:[%s139 + $0xf0] sm:$0xf]
      %v209 = vld [vmem:[%s139 + $0xf4] sm:$0xf]
      %v210 = vld [vmem:[%s139 + $0xf8] sm:$0xf]
      %v211 = vld [vmem:[%s139 + $0xfc] sm:$0xf]
      %v212 = vld [vmem:[%s1] sm:$0xf]
      %v213 = vld [vmem:[%s1 + $0x4] sm:$0xf]
      %v214 = vld [vmem:[%s1 + $0x8] sm:$0xf]
      %v215 = vld [vmem:[%s1 + $0xc] sm:$0xf]
      %v216 = vld [vmem:[%s1 + $0x10] sm:$0xf]
      %v217 = vld [vmem:[%s1 + $0x14] sm:$0xf]
      %v218 = vld [vmem:[%s1 + $0x18] sm:$0xf]
      %v219 = vld [vmem:[%s1 + $0x1c] sm:$0xf]
      %v220 = vld [vmem:[%s1 + $0x20] sm:$0xf]
      %v221 = vld [vmem:[%s1 + $0x24] sm:$0xf]
      %v222 = vld [vmem:[%s1 + $0x28] sm:$0xf]
      %v223 = vld [vmem:[%s1 + $0x2c] sm:$0xf]
      %v224 = vld [vmem:[%s1 + $0x30] sm:$0xf]
      %v225 = vld [vmem:[%s1 + $0x34] sm:$0xf]
      %v226 = vld [vmem:[%s1 + $0x38] sm:$0xf]
      %v227 = vld [vmem:[%s1 + $0x3c] sm:$0xf]
      %v292 = vunpack.c.l.b16 %v148
      %v293 = vunpack.c.l.b16 %v149
      %v294 = vunpack.c.l.b16 %v150
      %v295 = vunpack.c.l.b16 %v151
      %v296 = vunpack.c.l.b16 %v152
      %v297 = vunpack.c.l.b16 %v153
      %v298 = vunpack.c.l.b16 %v154
      %v299 = vunpack.c.l.b16 %v155
      %v300 = vunpack.c.l.b16 %v156
      %v301 = vunpack.c.l.b16 %v157
      %v302 = vunpack.c.l.b16 %v158
      %v303 = vunpack.c.l.b16 %v159
      %v304 = vunpack.c.l.b16 %v160
      %v305 = vunpack.c.l.b16 %v161
      %v306 = vunpack.c.l.b16 %v162
      %v307 = vunpack.c.l.b16 %v163
      %v308 = vunpack.c.l.b16 %v164
      %v309 = vunpack.c.l.b16 %v165
      %v310 = vunpack.c.l.b16 %v166
      %v311 = vunpack.c.l.b16 %v167
      %v312 = vunpack.c.l.b16 %v168
      %v313 = vunpack.c.l.b16 %v169
      %v314 = vunpack.c.l.b16 %v170
      %v315 = vunpack.c.l.b16 %v171
      %v316 = vunpack.c.l.b16 %v172
      %v317 = vunpack.c.l.b16 %v173
      %v318 = vunpack.c.l.b16 %v174
      %v319 = vunpack.c.l.b16 %v175
      %v320 = vunpack.c.l.b16 %v176
      %v321 = vunpack.c.l.b16 %v177
      %v322 = vunpack.c.l.b16 %v178
      %v323 = vunpack.c.l.b16 %v179
      %v324 = vunpack.c.l.b16 %v180
      %v325 = vunpack.c.l.b16 %v181
      %v326 = vunpack.c.l.b16 %v182
      %v327 = vunpack.c.l.b16 %v183
      %v328 = vunpack.c.l.b16 %v184
      %v329 = vunpack.c.l.b16 %v185
      %v330 = vunpack.c.l.b16 %v186
      %v331 = vunpack.c.l.b16 %v187
      %v332 = vunpack.c.l.b16 %v188
      %v333 = vunpack.c.l.b16 %v189
      %v334 = vunpack.c.l.b16 %v190
      %v335 = vunpack.c.l.b16 %v191
      %v336 = vunpack.c.l.b16 %v192
      %v337 = vunpack.c.l.b16 %v193
      %v338 = vunpack.c.l.b16 %v194
      %v339 = vunpack.c.l.b16 %v195
      %v340 = vunpack.c.l.b16 %v196
      %v341 = vunpack.c.l.b16 %v197
      %v342 = vunpack.c.l.b16 %v198
      %v343 = vunpack.c.l.b16 %v199
      %v344 = vunpack.c.l.b16 %v200
      %v345 = vunpack.c.l.b16 %v201
      %v346 = vunpack.c.l.b16 %v202
      %v347 = vunpack.c.l.b16 %v203
      %v348 = vunpack.c.l.b16 %v204
      %v349 = vunpack.c.l.b16 %v205
      %v350 = vunpack.c.l.b16 %v206
      %v351 = vunpack.c.l.b16 %v207
      %v352 = vunpack.c.l.b16 %v208
      %v353 = vunpack.c.l.b16 %v209
      %v354 = vunpack.c.l.b16 %v210
      %v355 = vunpack.c.l.b16 %v211
      %v356 = vpack.c.b16 %v293, %v292
      %v357 = vpack.c.b16 %v295, %v294
      %v358 = vpack.c.b16 %v297, %v296
      %v359 = vpack.c.b16 %v299, %v298
      %v360 = vpack.c.b16 %v301, %v300
      %v361 = vpack.c.b16 %v303, %v302
      %v362 = vpack.c.b16 %v305, %v304
      %v363 = vpack.c.b16 %v307, %v306
      %v364 = vpack.c.b16 %v309, %v308
      %v365 = vpack.c.b16 %v311, %v310
      %v366 = vpack.c.b16 %v313, %v312
      %v367 = vpack.c.b16 %v315, %v314
      %v368 = vpack.c.b16 %v317, %v316
      %v369 = vpack.c.b16 %v319, %v318
      %v370 = vpack.c.b16 %v321, %v320
      %v371 = vpack.c.b16 %v323, %v322
      %v372 = vpack.c.b16 %v325, %v324
      %v373 = vpack.c.b16 %v327, %v326
      %v374 = vpack.c.b16 %v329, %v328
      %v375 = vpack.c.b16 %v331, %v330
      %v376 = vpack.c.b16 %v333, %v332
      %v377 = vpack.c.b16 %v335, %v334
      %v378 = vpack.c.b16 %v337, %v336
      %v379 = vpack.c.b16 %v339, %v338
      %v380 = vpack.c.b16 %v341, %v340
      %v381 = vpack.c.b16 %v343, %v342
      %v382 = vpack.c.b16 %v345, %v344
      %v383 = vpack.c.b16 %v347, %v346
      %v384 = vpack.c.b16 %v349, %v348
      %v385 = vpack.c.b16 %v351, %v350
      %v386 = vpack.c.b16 %v353, %v352
      %v387 = vpack.c.b16 %v355, %v354
      %v436 = vunpack.c.l.b16 %v212
      %v437 = vunpack.c.l.b16 %v213
      %v438 = vunpack.c.l.b16 %v214
      %v439 = vunpack.c.l.b16 %v215
      %v440 = vunpack.c.l.b16 %v216
      %v441 = vunpack.c.l.b16 %v217
      %v442 = vunpack.c.l.b16 %v218
      %v443 = vunpack.c.l.b16 %v219
      %v444 = vunpack.c.l.b16 %v220
      %v445 = vunpack.c.l.b16 %v221
      %v446 = vunpack.c.l.b16 %v222
      %v447 = vunpack.c.l.b16 %v223
      %v448 = vunpack.c.l.b16 %v224
      %v449 = vunpack.c.l.b16 %v225
      %v450 = vunpack.c.l.b16 %v226
      %v451 = vunpack.c.l.b16 %v227
      %v452 = vpack.c.b16 %v437, %v436
      %v453 = vpack.c.b16 %v439, %v438
      %v454 = vpack.c.b16 %v441, %v440
      %v455 = vpack.c.b16 %v443, %v442
      %v456 = vpack.c.b16 %v445, %v444
      %v457 = vpack.c.b16 %v447, %v446
      %v458 = vpack.c.b16 %v449, %v448
      %v459 = vpack.c.b16 %v451, %v450
      %468 = vmatprep.subr.bf16.mxu0 0
      %469 = vmatpush1.bf16.msra.mxu0 %v459
      %470 = vmatprep.subr.bf16.mxu0 0
      %471 = vmatpush1.bf16.msra.mxu0 %v458
      %472 = vmatprep.subr.bf16.mxu0 0
      %473 = vmatpush1.bf16.msra.mxu0 %v457
      %474 = vmatprep.subr.bf16.mxu0 0
      %475 = vmatpush1.bf16.msra.mxu0 %v456
      %476 = vmatprep.subr.bf16.mxu0 0
      %477 = vmatpush1.bf16.msra.mxu0 %v455
      %478 = vmatprep.subr.bf16.mxu0 0
      %479 = vmatpush1.bf16.msra.mxu0 %v454
      %480 = vmatprep.subr.bf16.mxu0 0
      %481 = vmatpush1.bf16.msra.mxu0 %v453
      %482 = vmatprep.subr.bf16.mxu0 0
      %483 = vmatpush1.bf16.msra.mxu0 %v452
      %484 = vmatprep.subr.bf16.mxu0 0
      %485 = vmatpush2.bf16.msra.mxu0 0
      %486 = vmatprep.subr.bf16.mxu0 0
      %487 = vmatpush2.bf16.msra.mxu0 0
      %488 = vmatprep.subr.bf16.mxu0 0
      %489 = vmatpush2.bf16.msra.mxu0 0
      %490 = vmatprep.subr.bf16.mxu0 0
      %491 = vmatpush2.bf16.msra.mxu0 0
      %492 = vmatprep.subr.bf16.mxu0 0
      %493 = vmatpush2.bf16.msra.mxu0 0
      %494 = vmatprep.subr.bf16.mxu0 0
      %495 = vmatpush2.bf16.msra.mxu0 0
      %496 = vmatprep.subr.bf16.mxu0 0
      %497 = vmatpush2.bf16.msra.mxu0 0
      %498 = vmatprep.subr.bf16.mxu0 0
      %499 = vmatpush2.bf16.msra.mxu0 0
      %500 = vmatprep.mubr.bf16.mxu0 0
      %501 = vmatmul.mubr.bf16.gmra.mxu0 %v356
      %v502 = vpop.f32.mrf.mxu0
      %v503 = vadd.f32 0.0, %v502
      %v504 = vpop.f32.mrf.mxu0
      %v505 = vpop.f32.mrf.mxu0
      %v506 = vadd.f32 0.0, %v505
      %v507 = vpop.f32.mrf.mxu0
      %508 = vmatprep.mubr.bf16.mxu0 0
      %509 = vmatmul.mubr.bf16.gmra.mxu0 %v357
      %v510 = vpop.f32.mrf.mxu0
      %v511 = vadd.f32 0.0, %v510
      %v512 = vpop.f32.mrf.mxu0
      %v513 = vpop.f32.mrf.mxu0
      %v514 = vadd.f32 0.0, %v513
      %v515 = vpop.f32.mrf.mxu0
      %516 = vmatprep.mubr.bf16.mxu0 0
      %517 = vmatmul.mubr.bf16.gmra.mxu0 %v358
      %v518 = vpop.f32.mrf.mxu0
      %v519 = vadd.f32 0.0, %v518
      %v520 = vpop.f32.mrf.mxu0
      %v521 = vpop.f32.mrf.mxu0
      %v522 = vadd.f32 0.0, %v521
      %v523 = vpop.f32.mrf.mxu0
      %524 = vmatprep.mubr.bf16.mxu0 0
      %525 = vmatmul.mubr.bf16.gmra.mxu0 %v359
      %v526 = vpop.f32.mrf.mxu0
      %v527 = vadd.f32 0.0, %v526
      %v528 = vpop.f32.mrf.mxu0
      %v529 = vpop.f32.mrf.mxu0
      %v530 = vadd.f32 0.0, %v529
      %v531 = vpop.f32.mrf.mxu0
      %532 = vmatprep.mubr.bf16.mxu0 0
      %533 = vmatmul.mubr.bf16.gmra.mxu0 %v360
      %v534 = vpop.f32.mrf.mxu0
      %v535 = vadd.f32 0.0, %v534
      %v536 = vpop.f32.mrf.mxu0
      %v537 = vpop.f32.mrf.mxu0
      %v538 = vadd.f32 0.0, %v537
      %v539 = vpop.f32.mrf.mxu0
      %540 = vmatprep.mubr.bf16.mxu0 0
      %541 = vmatmul.mubr.bf16.gmra.mxu0 %v361
      %v542 = vpop.f32.mrf.mxu0
      %v543 = vadd.f32 0.0, %v542
      %v544 = vpop.f32.mrf.mxu0
      %v545 = vpop.f32.mrf.mxu0
      %v546 = vadd.f32 0.0, %v545
      %v547 = vpop.f32.mrf.mxu0
      %548 = vmatprep.mubr.bf16.mxu0 0
      %549 = vmatmul.mubr.bf16.gmra.mxu0 %v362
      %v550 = vpop.f32.mrf.mxu0
      %v551 = vadd.f32 0.0, %v550
      %v552 = vpop.f32.mrf.mxu0
      %v553 = vpop.f32.mrf.mxu0
      %v554 = vadd.f32 0.0, %v553
      %v555 = vpop.f32.mrf.mxu0
      %556 = vmatprep.mubr.bf16.mxu0 0
      %557 = vmatmul.mubr.bf16.gmra.mxu0 %v363
      %v558 = vpop.f32.mrf.mxu0
      %v559 = vadd.f32 0.0, %v558
      %v560 = vpop.f32.mrf.mxu0
      %v561 = vpop.f32.mrf.mxu0
      %v562 = vadd.f32 0.0, %v561
      %v563 = vpop.f32.mrf.mxu0
      %564 = vmatprep.mubr.bf16.mxu0 0
      %565 = vmatmul.mubr.bf16.gmra.mxu0 %v364
      %v566 = vpop.f32.mrf.mxu0
      %v567 = vadd.f32 0.0, %v566
      %v568 = vpop.f32.mrf.mxu0
      %v569 = vpop.f32.mrf.mxu0
      %v570 = vadd.f32 0.0, %v569
      %v571 = vpop.f32.mrf.mxu0
      %572 = vmatprep.mubr.bf16.mxu0 0
      %573 = vmatmul.mubr.bf16.gmra.mxu0 %v365
      %v574 = vpop.f32.mrf.mxu0
      %v575 = vadd.f32 0.0, %v574
      %v576 = vpop.f32.mrf.mxu0
      %v577 = vpop.f32.mrf.mxu0
      %v578 = vadd.f32 0.0, %v577
      %v579 = vpop.f32.mrf.mxu0
      %580 = vmatprep.mubr.bf16.mxu0 0
      %581 = vmatmul.mubr.bf16.gmra.mxu0 %v366
      %v582 = vpop.f32.mrf.mxu0
      %v583 = vadd.f32 0.0, %v582
      %v584 = vpop.f32.mrf.mxu0
      %v585 = vpop.f32.mrf.mxu0
      %v586 = vadd.f32 0.0, %v585
      %v587 = vpop.f32.mrf.mxu0
      %588 = vmatprep.mubr.bf16.mxu0 0
      %589 = vmatmul.mubr.bf16.gmra.mxu0 %v367
      %v590 = vpop.f32.mrf.mxu0
      %v591 = vadd.f32 0.0, %v590
      %v592 = vpop.f32.mrf.mxu0
      %v593 = vpop.f32.mrf.mxu0
      %v594 = vadd.f32 0.0, %v593
      %v595 = vpop.f32.mrf.mxu0
      %596 = vmatprep.mubr.bf16.mxu0 0
      %597 = vmatmul.mubr.bf16.gmra.mxu0 %v368
      %v598 = vpop.f32.mrf.mxu0
      %v599 = vadd.f32 0.0, %v598
      %v600 = vpop.f32.mrf.mxu0
      %v601 = vpop.f32.mrf.mxu0
      %v602 = vadd.f32 0.0, %v601
      %v603 = vpop.f32.mrf.mxu0
      %604 = vmatprep.mubr.bf16.mxu0 0
      %605 = vmatmul.mubr.bf16.gmra.mxu0 %v369
      %v606 = vpop.f32.mrf.mxu0
      %v607 = vadd.f32 0.0, %v606
      %v608 = vpop.f32.mrf.mxu0
      %v609 = vpop.f32.mrf.mxu0
      %v610 = vadd.f32 0.0, %v609
      %v611 = vpop.f32.mrf.mxu0
      %612 = vmatprep.mubr.bf16.mxu0 0
      %613 = vmatmul.mubr.bf16.gmra.mxu0 %v370
      %v614 = vpop.f32.mrf.mxu0
      %v615 = vadd.f32 0.0, %v614
      %v616 = vpop.f32.mrf.mxu0
      %v617 = vpop.f32.mrf.mxu0
      %v618 = vadd.f32 0.0, %v617
      %v619 = vpop.f32.mrf.mxu0
      %620 = vmatprep.mubr.bf16.mxu0 0
      %621 = vmatmul.mubr.bf16.gmra.mxu0 %v371
      %v622 = vpop.f32.mrf.mxu0
      %v623 = vadd.f32 0.0, %v622
      %v624 = vpop.f32.mrf.mxu0
      %v625 = vpop.f32.mrf.mxu0
      %v626 = vadd.f32 0.0, %v625
      %v627 = vpop.f32.mrf.mxu0
      %628 = vmatprep.mubr.bf16.mxu0 0
      %629 = vmatmul.mubr.bf16.gmra.mxu0 %v372
      %v630 = vpop.f32.mrf.mxu0
      %v631 = vadd.f32 0.0, %v630
      %v632 = vpop.f32.mrf.mxu0
      %v633 = vpop.f32.mrf.mxu0
      %v634 = vadd.f32 0.0, %v633
      %v635 = vpop.f32.mrf.mxu0
      %636 = vmatprep.mubr.bf16.mxu0 0
      %637 = vmatmul.mubr.bf16.gmra.mxu0 %v373
      %v638 = vpop.f32.mrf.mxu0
      %v639 = vadd.f32 0.0, %v638
      %v640 = vpop.f32.mrf.mxu0
      %v641 = vpop.f32.mrf.mxu0
      %v642 = vadd.f32 0.0, %v641
      %v643 = vpop.f32.mrf.mxu0
      %644 = vmatprep.mubr.bf16.mxu0 0
      %645 = vmatmul.mubr.bf16.gmra.mxu0 %v374
      %v646 = vpop.f32.mrf.mxu0
      %v647 = vadd.f32 0.0, %v646
      %v648 = vpop.f32.mrf.mxu0
      %v649 = vpop.f32.mrf.mxu0
      %v650 = vadd.f32 0.0, %v649
      %v651 = vpop.f32.mrf.mxu0
      %652 = vmatprep.mubr.bf16.mxu0 0
      %653 = vmatmul.mubr.bf16.gmra.mxu0 %v375
      %v654 = vpop.f32.mrf.mxu0
      %v655 = vadd.f32 0.0, %v654
      %v656 = vpop.f32.mrf.mxu0
      %v657 = vpop.f32.mrf.mxu0
      %v658 = vadd.f32 0.0, %v657
      %v659 = vpop.f32.mrf.mxu0
      %660 = vmatprep.mubr.bf16.mxu0 0
      %661 = vmatmul.mubr.bf16.gmra.mxu0 %v376
      %v662 = vpop.f32.mrf.mxu0
      %v663 = vadd.f32 0.0, %v662
      %v664 = vpop.f32.mrf.mxu0
      %v665 = vpop.f32.mrf.mxu0
      %v666 = vadd.f32 0.0, %v665
      %v667 = vpop.f32.mrf.mxu0
      %668 = vmatprep.mubr.bf16.mxu0 0
      %669 = vmatmul.mubr.bf16.gmra.mxu0 %v377
      %v670 = vpop.f32.mrf.mxu0
      %v671 = vadd.f32 0.0, %v670
      %v672 = vpop.f32.mrf.mxu0
      %v673 = vpop.f32.mrf.mxu0
      %v674 = vadd.f32 0.0, %v673
      %v675 = vpop.f32.mrf.mxu0
      %676 = vmatprep.mubr.bf16.mxu0 0
      %677 = vmatmul.mubr.bf16.gmra.mxu0 %v378
      %v678 = vpop.f32.mrf.mxu0
      %v679 = vadd.f32 0.0, %v678
      %v680 = vpop.f32.mrf.mxu0
      %v681 = vpop.f32.mrf.mxu0
      %v682 = vadd.f32 0.0, %v681
      %v683 = vpop.f32.mrf.mxu0
      %684 = vmatprep.mubr.bf16.mxu0 0
      %685 = vmatmul.mubr.bf16.gmra.mxu0 %v379
      %v686 = vpop.f32.mrf.mxu0
      %v687 = vadd.f32 0.0, %v686
      %v688 = vpop.f32.mrf.mxu0
      %v689 = vpop.f32.mrf.mxu0
      %v690 = vadd.f32 0.0, %v689
      %v691 = vpop.f32.mrf.mxu0
      %692 = vmatprep.mubr.bf16.mxu0 0
      %693 = vmatmul.mubr.bf16.gmra.mxu0 %v380
      %v694 = vpop.f32.mrf.mxu0
      %v695 = vadd.f32 0.0, %v694
      %v696 = vpop.f32.mrf.mxu0
      %v697 = vpop.f32.mrf.mxu0
      %v698 = vadd.f32 0.0, %v697
      %v699 = vpop.f32.mrf.mxu0
      %700 = vmatprep.mubr.bf16.mxu0 0
      %701 = vmatmul.mubr.bf16.gmra.mxu0 %v381
      %v702 = vpop.f32.mrf.mxu0
      %v703 = vadd.f32 0.0, %v702
      %v704 = vpop.f32.mrf.mxu0
      %v705 = vpop.f32.mrf.mxu0
      %v706 = vadd.f32 0.0, %v705
      %v707 = vpop.f32.mrf.mxu0
      %708 = vmatprep.mubr.bf16.mxu0 0
      %709 = vmatmul.mubr.bf16.gmra.mxu0 %v382
      %v710 = vpop.f32.mrf.mxu0
      %v711 = vadd.f32 0.0, %v710
      %v712 = vpop.f32.mrf.mxu0
      %v713 = vpop.f32.mrf.mxu0
      %v714 = vadd.f32 0.0, %v713
      %v715 = vpop.f32.mrf.mxu0
      %716 = vmatprep.mubr.bf16.mxu0 0
      %717 = vmatmul.mubr.bf16.gmra.mxu0 %v383
      %v718 = vpop.f32.mrf.mxu0
      %v719 = vadd.f32 0.0, %v718
      %v720 = vpop.f32.mrf.mxu0
      %v721 = vpop.f32.mrf.mxu0
      %v722 = vadd.f32 0.0, %v721
      %v723 = vpop.f32.mrf.mxu0
      %724 = vmatprep.mubr.bf16.mxu0 0
      %725 = vmatmul.mubr.bf16.gmra.mxu0 %v384
      %v726 = vpop.f32.mrf.mxu0
      %v727 = vadd.f32 0.0, %v726
      %v728 = vpop.f32.mrf.mxu0
      %v729 = vpop.f32.mrf.mxu0
      %v730 = vadd.f32 0.0, %v729
      %v731 = vpop.f32.mrf.mxu0
      %732 = vmatprep.mubr.bf16.mxu0 0
      %733 = vmatmul.mubr.bf16.gmra.mxu0 %v385
      %v734 = vpop.f32.mrf.mxu0
      %v735 = vadd.f32 0.0, %v734
      %v736 = vpop.f32.mrf.mxu0
      %v737 = vpop.f32.mrf.mxu0
      %v738 = vadd.f32 0.0, %v737
      %v739 = vpop.f32.mrf.mxu0
      %740 = vmatprep.mubr.bf16.mxu0 0
      %741 = vmatmul.mubr.bf16.gmra.mxu0 %v386
      %v742 = vpop.f32.mrf.mxu0
      %v743 = vadd.f32 0.0, %v742
      %v744 = vpop.f32.mrf.mxu0
      %v745 = vpop.f32.mrf.mxu0
      %v746 = vadd.f32 0.0, %v745
      %v747 = vpop.f32.mrf.mxu0
      %748 = vmatprep.mubr.bf16.mxu0 0
      %749 = vmatmul.mubr.bf16.gmra.mxu0 %v387
      %v750 = vpop.f32.mrf.mxu0
      %v751 = vadd.f32 0.0, %v750
      %v752 = vpop.f32.mrf.mxu0
      %v753 = vpop.f32.mrf.mxu0
      %v754 = vadd.f32 0.0, %v753
      %v755 = vpop.f32.mrf.mxu0
      %756 = vdwg.mxu0
      %vm757 = vcmp.ge.f32.partialorder %v503, 0.0
      %vm758 = vcmp.ge.f32.partialorder %v506, 0.0
      %vm759 = vcmp.ge.f32.partialorder %v511, 0.0
      %vm760 = vcmp.ge.f32.partialorder %v514, 0.0
      %vm761 = vcmp.ge.f32.partialorder %v519, 0.0
      %vm762 = vcmp.ge.f32.partialorder %v522, 0.0
      %vm763 = vcmp.ge.f32.partialorder %v527, 0.0
      %vm764 = vcmp.ge.f32.partialorder %v530, 0.0
      %vm765 = vcmp.ge.f32.partialorder %v535, 0.0
      %vm766 = vcmp.ge.f32.partialorder %v538, 0.0
      %vm767 = vcmp.ge.f32.partialorder %v543, 0.0
      %vm768 = vcmp.ge.f32.partialorder %v546, 0.0
      %vm769 = vcmp.ge.f32.partialorder %v551, 0.0
      %vm770 = vcmp.ge.f32.partialorder %v554, 0.0
      %vm771 = vcmp.ge.f32.partialorder %v559, 0.0
      %vm772 = vcmp.ge.f32.partialorder %v562, 0.0
      %vm773 = vcmp.ge.f32.partialorder %v567, 0.0
      %vm774 = vcmp.ge.f32.partialorder %v570, 0.0
      %vm775 = vcmp.ge.f32.partialorder %v575, 0.0
      %vm776 = vcmp.ge.f32.partialorder %v578, 0.0
      %vm777 = vcmp.ge.f32.partialorder %v583, 0.0
      %vm778 = vcmp.ge.f32.partialorder %v586, 0.0
      %vm779 = vcmp.ge.f32.partialorder %v591, 0.0
      %vm780 = vcmp.ge.f32.partialorder %v594, 0.0
      %vm781 = vcmp.ge.f32.partialorder %v599, 0.0
      %vm782 = vcmp.ge.f32.partialorder %v602, 0.0
      %vm783 = vcmp.ge.f32.partialorder %v607, 0.0
      %vm784 = vcmp.ge.f32.partialorder %v610, 0.0
      %vm785 = vcmp.ge.f32.partialorder %v615, 0.0
      %vm786 = vcmp.ge.f32.partialorder %v618, 0.0
      %vm787 = vcmp.ge.f32.partialorder %v623, 0.0
      %vm788 = vcmp.ge.f32.partialorder %v626, 0.0
      %vm789 = vcmp.ge.f32.partialorder %v631, 0.0
      %vm790 = vcmp.ge.f32.partialorder %v634, 0.0
      %vm791 = vcmp.ge.f32.partialorder %v639, 0.0
      %vm792 = vcmp.ge.f32.partialorder %v642, 0.0
      %vm793 = vcmp.ge.f32.partialorder %v647, 0.0
      %vm794 = vcmp.ge.f32.partialorder %v650, 0.0
      %vm795 = vcmp.ge.f32.partialorder %v655, 0.0
      %vm796 = vcmp.ge.f32.partialorder %v658, 0.0
      %vm797 = vcmp.ge.f32.partialorder %v663, 0.0
      %vm798 = vcmp.ge.f32.partialorder %v666, 0.0
      %vm799 = vcmp.ge.f32.partialorder %v671, 0.0
      %vm800 = vcmp.ge.f32.partialorder %v674, 0.0
      %vm801 = vcmp.ge.f32.partialorder %v679, 0.0
      %vm802 = vcmp.ge.f32.partialorder %v682, 0.0
      %vm803 = vcmp.ge.f32.partialorder %v687, 0.0
      %vm804 = vcmp.ge.f32.partialorder %v690, 0.0
      %vm805 = vcmp.ge.f32.partialorder %v695, 0.0
      %vm806 = vcmp.ge.f32.partialorder %v698, 0.0
      %vm807 = vcmp.ge.f32.partialorder %v703, 0.0
      %vm808 = vcmp.ge.f32.partialorder %v706, 0.0
      %vm809 = vcmp.ge.f32.partialorder %v711, 0.0
      %vm810 = vcmp.ge.f32.partialorder %v714, 0.0
      %vm811 = vcmp.ge.f32.partialorder %v719, 0.0
      %vm812 = vcmp.ge.f32.partialorder %v722, 0.0
      %vm813 = vcmp.ge.f32.partialorder %v727, 0.0
      %vm814 = vcmp.ge.f32.partialorder %v730, 0.0
      %vm815 = vcmp.ge.f32.partialorder %v735, 0.0
      %vm816 = vcmp.ge.f32.partialorder %v738, 0.0
      %vm817 = vcmp.ge.f32.partialorder %v743, 0.0
      %vm818 = vcmp.ge.f32.partialorder %v746, 0.0
      %vm819 = vcmp.ge.f32.partialorder %v751, 0.0
      %vm820 = vcmp.ge.f32.partialorder %v754, 0.0
      %v821 = vmul.f32 %v503, 0.2
      %v822 = vmul.f32 %v506, 0.2
      %v823 = vmul.f32 %v511, 0.2
      %v824 = vmul.f32 %v514, 0.2
      %v825 = vmul.f32 %v519, 0.2
      %v826 = vmul.f32 %v522, 0.2
      %v827 = vmul.f32 %v527, 0.2
      %v828 = vmul.f32 %v530, 0.2
      %v829 = vmul.f32 %v535, 0.2
      %v830 = vmul.f32 %v538, 0.2
      %v831 = vmul.f32 %v543, 0.2
      %v832 = vmul.f32 %v546, 0.2
      %v833 = vmul.f32 %v551, 0.2
      %v834 = vmul.f32 %v554, 0.2
      %v835 = vmul.f32 %v559, 0.2
      %v836 = vmul.f32 %v562, 0.2
      %v837 = vmul.f32 %v567, 0.2
      %v838 = vmul.f32 %v570, 0.2
      %v839 = vmul.f32 %v575, 0.2
      %v840 = vmul.f32 %v578, 0.2
      %v841 = vmul.f32 %v583, 0.2
      %v842 = vmul.f32 %v586, 0.2
      %v843 = vmul.f32 %v591, 0.2
      %v844 = vmul.f32 %v594, 0.2
      %v845 = vmul.f32 %v599, 0.2
      %v846 = vmul.f32 %v602, 0.2
      %v847 = vmul.f32 %v607, 0.2
      %v848 = vmul.f32 %v610, 0.2
      %v849 = vmul.f32 %v615, 0.2
      %v850 = vmul.f32 %v618, 0.2
      %v851 = vmul.f32 %v623, 0.2
      %v852 = vmul.f32 %v626, 0.2
      %v853 = vmul.f32 %v631, 0.2
      %v854 = vmul.f32 %v634, 0.2
      %v855 = vmul.f32 %v639, 0.2
      %v856 = vmul.f32 %v642, 0.2
      %v857 = vmul.f32 %v647, 0.2
      %v858 = vmul.f32 %v650, 0.2
      %v859 = vmul.f32 %v655, 0.2
      %v860 = vmul.f32 %v658, 0.2
      %v861 = vmul.f32 %v663, 0.2
      %v862 = vmul.f32 %v666, 0.2
      %v863 = vmul.f32 %v671, 0.2
      %v864 = vmul.f32 %v674, 0.2
      %v865 = vmul.f32 %v679, 0.2
      %v866 = vmul.f32 %v682, 0.2
      %v867 = vmul.f32 %v687, 0.2
      %v868 = vmul.f32 %v690, 0.2
      %v869 = vmul.f32 %v695, 0.2
      %v870 = vmul.f32 %v698, 0.2
      %v871 = vmul.f32 %v703, 0.2
      %v872 = vmul.f32 %v706, 0.2
      %v873 = vmul.f32 %v711, 0.2
      %v874 = vmul.f32 %v714, 0.2
      %v875 = vmul.f32 %v719, 0.2
      %v876 = vmul.f32 %v722, 0.2
      %v877 = vmul.f32 %v727, 0.2
      %v878 = vmul.f32 %v730, 0.2
      %v879 = vmul.f32 %v735, 0.2
      %v880 = vmul.f32 %v738, 0.2
      %v881 = vmul.f32 %v743, 0.2
      %v882 = vmul.f32 %v746, 0.2
      %v883 = vmul.f32 %v751, 0.2
      %v884 = vmul.f32 %v754, 0.2
      %v885 = vsel %vm757, %v503, %v821
      %v886 = vsel %vm758, %v506, %v822
      %v887 = vsel %vm759, %v511, %v823
      %v888 = vsel %vm760, %v514, %v824
      %v889 = vsel %vm761, %v519, %v825
      %v890 = vsel %vm762, %v522, %v826
      %v891 = vsel %vm763, %v527, %v827
      %v892 = vsel %vm764, %v530, %v828
      %v893 = vsel %vm765, %v535, %v829
      %v894 = vsel %vm766, %v538, %v830
      %v895 = vsel %vm767, %v543, %v831
      %v896 = vsel %vm768, %v546, %v832
      %v897 = vsel %vm769, %v551, %v833
      %v898 = vsel %vm770, %v554, %v834
      %v899 = vsel %vm771, %v559, %v835
      %v900 = vsel %vm772, %v562, %v836
      %v901 = vsel %vm773, %v567, %v837
      %v902 = vsel %vm774, %v570, %v838
      %v903 = vsel %vm775, %v575, %v839
      %v904 = vsel %vm776, %v578, %v840
      %v905 = vsel %vm777, %v583, %v841
      %v906 = vsel %vm778, %v586, %v842
      %v907 = vsel %vm779, %v591, %v843
      %v908 = vsel %vm780, %v594, %v844
      %v909 = vsel %vm781, %v599, %v845
      %v910 = vsel %vm782, %v602, %v846
      %v911 = vsel %vm783, %v607, %v847
      %v912 = vsel %vm784, %v610, %v848
      %v913 = vsel %vm785, %v615, %v849
      %v914 = vsel %vm786, %v618, %v850
      %v915 = vsel %vm787, %v623, %v851
      %v916 = vsel %vm788, %v626, %v852
      %v917 = vsel %vm789, %v631, %v853
      %v918 = vsel %vm790, %v634, %v854
      %v919 = vsel %vm791, %v639, %v855
      %v920 = vsel %vm792, %v642, %v856
      %v921 = vsel %vm793, %v647, %v857
      %v922 = vsel %vm794, %v650, %v858
      %v923 = vsel %vm795, %v655, %v859
      %v924 = vsel %vm796, %v658, %v860
      %v925 = vsel %vm797, %v663, %v861
      %v926 = vsel %vm798, %v666, %v862
      %v927 = vsel %vm799, %v671, %v863
      %v928 = vsel %vm800, %v674, %v864
      %v929 = vsel %vm801, %v679, %v865
      %v930 = vsel %vm802, %v682, %v866
      %v931 = vsel %vm803, %v687, %v867
      %v932 = vsel %vm804, %v690, %v868
      %v933 = vsel %vm805, %v695, %v869
      %v934 = vsel %vm806, %v698, %v870
      %v935 = vsel %vm807, %v703, %v871
      %v936 = vsel %vm808, %v706, %v872
      %v937 = vsel %vm809, %v711, %v873
      %v938 = vsel %vm810, %v714, %v874
      %v939 = vsel %vm811, %v719, %v875
      %v940 = vsel %vm812, %v722, %v876
      %v941 = vsel %vm813, %v727, %v877
      %v942 = vsel %vm814, %v730, %v878
      %v943 = vsel %vm815, %v735, %v879
      %v944 = vsel %vm816, %v738, %v880
      %v945 = vsel %vm817, %v743, %v881
      %v946 = vsel %vm818, %v746, %v882
      %v947 = vsel %vm819, %v751, %v883
      %v948 = vsel %vm820, %v754, %v884
      %v949 = vpack.c.bf16 %v886, %v885
      %v950 = vpack.c.bf16 %v888, %v887
      %v951 = vpack.c.bf16 %v890, %v889
      %v952 = vpack.c.bf16 %v892, %v891
      %v953 = vpack.c.bf16 %v894, %v893
      %v954 = vpack.c.bf16 %v896, %v895
      %v955 = vpack.c.bf16 %v898, %v897
      %v956 = vpack.c.bf16 %v900, %v899
      %v957 = vpack.c.bf16 %v902, %v901
      %v958 = vpack.c.bf16 %v904, %v903
      %v959 = vpack.c.bf16 %v906, %v905
      %v960 = vpack.c.bf16 %v908, %v907
      %v961 = vpack.c.bf16 %v910, %v909
      %v962 = vpack.c.bf16 %v912, %v911
      %v963 = vpack.c.bf16 %v914, %v913
      %v964 = vpack.c.bf16 %v916, %v915
      %v965 = vpack.c.bf16 %v918, %v917
      %v966 = vpack.c.bf16 %v920, %v919
      %v967 = vpack.c.bf16 %v922, %v921
      %v968 = vpack.c.bf16 %v924, %v923
      %v969 = vpack.c.bf16 %v926, %v925
      %v970 = vpack.c.bf16 %v928, %v927
      %v971 = vpack.c.bf16 %v930, %v929
      %v972 = vpack.c.bf16 %v932, %v931
      %v973 = vpack.c.bf16 %v934, %v933
      %v974 = vpack.c.bf16 %v936, %v935
      %v975 = vpack.c.bf16 %v938, %v937
      %v976 = vpack.c.bf16 %v940, %v939
      %v977 = vpack.c.bf16 %v942, %v941
      %v978 = vpack.c.bf16 %v944, %v943
      %v979 = vpack.c.bf16 %v946, %v945
      %v980 = vpack.c.bf16 %v948, %v947
      %v1013 = vunpack.c.l.b16 %v949
      %v1014 = vunpack.c.h.b16 %v949
      %v1015 = vunpack.c.l.b16 %v950
      %v1016 = vunpack.c.h.b16 %v950
      %v1017 = vunpack.c.l.b16 %v951
      %v1018 = vunpack.c.h.b16 %v951
      %v1019 = vunpack.c.l.b16 %v952
      %v1020 = vunpack.c.h.b16 %v952
      %v1021 = vunpack.c.l.b16 %v953
      %v1022 = vunpack.c.h.b16 %v953
      %v1023 = vunpack.c.l.b16 %v954
      %v1024 = vunpack.c.h.b16 %v954
      %v1025 = vunpack.c.l.b16 %v955
      %v1026 = vunpack.c.h.b16 %v955
      %v1027 = vunpack.c.l.b16 %v956
      %v1028 = vunpack.c.h.b16 %v956
      %v1029 = vunpack.c.l.b16 %v957
      %v1030 = vunpack.c.h.b16 %v957
      %v1031 = vunpack.c.l.b16 %v958
      %v1032 = vunpack.c.h.b16 %v958
      %v1033 = vunpack.c.l.b16 %v959
      %v1034 = vunpack.c.h.b16 %v959
      %v1035 = vunpack.c.l.b16 %v960
      %v1036 = vunpack.c.h.b16 %v960
      %v1037 = vunpack.c.l.b16 %v961
      %v1038 = vunpack.c.h.b16 %v961
      %v1039 = vunpack.c.l.b16 %v962
      %v1040 = vunpack.c.h.b16 %v962
      %v1041 = vunpack.c.l.b16 %v963
      %v1042 = vunpack.c.h.b16 %v963
      %v1043 = vunpack.c.l.b16 %v964
      %v1044 = vunpack.c.h.b16 %v964
      %v1045 = vunpack.c.l.b16 %v965
      %v1046 = vunpack.c.h.b16 %v965
      %v1047 = vunpack.c.l.b16 %v966
      %v1048 = vunpack.c.h.b16 %v966
      %v1049 = vunpack.c.l.b16 %v967
      %v1050 = vunpack.c.h.b16 %v967
      %v1051 = vunpack.c.l.b16 %v968
      %v1052 = vunpack.c.h.b16 %v968
      %v1053 = vunpack.c.l.b16 %v969
      %v1054 = vunpack.c.h.b16 %v969
      %v1055 = vunpack.c.l.b16 %v970
      %v1056 = vunpack.c.h.b16 %v970
      %v1057 = vunpack.c.l.b16 %v971
      %v1058 = vunpack.c.h.b16 %v971
      %v1059 = vunpack.c.l.b16 %v972
      %v1060 = vunpack.c.h.b16 %v972
      %v1061 = vunpack.c.l.b16 %v973
      %v1062 = vunpack.c.h.b16 %v973
      %v1063 = vunpack.c.l.b16 %v974
      %v1064 = vunpack.c.h.b16 %v974
      %v1065 = vunpack.c.l.b16 %v975
      %v1066 = vunpack.c.h.b16 %v975
      %v1067 = vunpack.c.l.b16 %v976
      %v1068 = vunpack.c.h.b16 %v976
      %v1069 = vunpack.c.l.b16 %v977
      %v1070 = vunpack.c.h.b16 %v977
      %v1071 = vunpack.c.l.b16 %v978
      %v1072 = vunpack.c.h.b16 %v978
      %v1073 = vunpack.c.l.b16 %v979
      %v1074 = vunpack.c.h.b16 %v979
      %v1075 = vunpack.c.l.b16 %v980
      %v1076 = vunpack.c.h.b16 %v980
      %v1077 = vpack.c.b16 %v1013, %v1013
      %v1078 = vpack.c.b16 %v1014, %v1014
      %v1079 = vpack.c.b16 %v1015, %v1015
      %v1080 = vpack.c.b16 %v1016, %v1016
      %v1081 = vpack.c.b16 %v1017, %v1017
      %v1082 = vpack.c.b16 %v1018, %v1018
      %v1083 = vpack.c.b16 %v1019, %v1019
      %v1084 = vpack.c.b16 %v1020, %v1020
      %v1085 = vpack.c.b16 %v1021, %v1021
      %v1086 = vpack.c.b16 %v1022, %v1022
      %v1087 = vpack.c.b16 %v1023, %v1023
      %v1088 = vpack.c.b16 %v1024, %v1024
      %v1089 = vpack.c.b16 %v1025, %v1025
      %v1090 = vpack.c.b16 %v1026, %v1026
      %v1091 = vpack.c.b16 %v1027, %v1027
      %v1092 = vpack.c.b16 %v1028, %v1028
      %v1093 = vpack.c.b16 %v1029, %v1029
      %v1094 = vpack.c.b16 %v1030, %v1030
      %v1095 = vpack.c.b16 %v1031, %v1031
      %v1096 = vpack.c.b16 %v1032, %v1032
      %v1097 = vpack.c.b16 %v1033, %v1033
      %v1098 = vpack.c.b16 %v1034, %v1034
      %v1099 = vpack.c.b16 %v1035, %v1035
      %v1100 = vpack.c.b16 %v1036, %v1036
      %v1101 = vpack.c.b16 %v1037, %v1037
      %v1102 = vpack.c.b16 %v1038, %v1038
      %v1103 = vpack.c.b16 %v1039, %v1039
      %v1104 = vpack.c.b16 %v1040, %v1040
      %v1105 = vpack.c.b16 %v1041, %v1041
      %v1106 = vpack.c.b16 %v1042, %v1042
      %v1107 = vpack.c.b16 %v1043, %v1043
      %v1108 = vpack.c.b16 %v1044, %v1044
      %v1109 = vpack.c.b16 %v1045, %v1045
      %v1110 = vpack.c.b16 %v1046, %v1046
      %v1111 = vpack.c.b16 %v1047, %v1047
      %v1112 = vpack.c.b16 %v1048, %v1048
      %v1113 = vpack.c.b16 %v1049, %v1049
      %v1114 = vpack.c.b16 %v1050, %v1050
      %v1115 = vpack.c.b16 %v1051, %v1051
      %v1116 = vpack.c.b16 %v1052, %v1052
      %v1117 = vpack.c.b16 %v1053, %v1053
      %v1118 = vpack.c.b16 %v1054, %v1054
      %v1119 = vpack.c.b16 %v1055, %v1055
      %v1120 = vpack.c.b16 %v1056, %v1056
      %v1121 = vpack.c.b16 %v1057, %v1057
      %v1122 = vpack.c.b16 %v1058, %v1058
      %v1123 = vpack.c.b16 %v1059, %v1059
      %v1124 = vpack.c.b16 %v1060, %v1060
      %v1125 = vpack.c.b16 %v1061, %v1061
      %v1126 = vpack.c.b16 %v1062, %v1062
      %v1127 = vpack.c.b16 %v1063, %v1063
      %v1128 = vpack.c.b16 %v1064, %v1064
      %v1129 = vpack.c.b16 %v1065, %v1065
      %v1130 = vpack.c.b16 %v1066, %v1066
      %v1131 = vpack.c.b16 %v1067, %v1067
      %v1132 = vpack.c.b16 %v1068, %v1068
      %v1133 = vpack.c.b16 %v1069, %v1069
      %v1134 = vpack.c.b16 %v1070, %v1070
      %v1135 = vpack.c.b16 %v1071, %v1071
      %v1136 = vpack.c.b16 %v1072, %v1072
      %v1137 = vpack.c.b16 %v1073, %v1073
      %v1138 = vpack.c.b16 %v1074, %v1074
      %v1139 = vpack.c.b16 %v1075, %v1075
      %v1140 = vpack.c.b16 %v1076, %v1076
      %vm1205 = vcmask 60416
      %1206 = vst.msk [vmem:[%s145] sm:$0xf] %vm1205, %v1077
      %1207 = vst.msk [vmem:[%s145 + $0x4] sm:$0xf] %vm1205, %v1078
      %1208 = vst.msk [vmem:[%s145 + $0x8] sm:$0xf] %vm1205, %v1079
      %1209 = vst.msk [vmem:[%s145 + $0xc] sm:$0xf] %vm1205, %v1080
      %1210 = vst.msk [vmem:[%s145 + $0x10] sm:$0xf] %vm1205, %v1081
      %1211 = vst.msk [vmem:[%s145 + $0x14] sm:$0xf] %vm1205, %v1082
      %1212 = vst.msk [vmem:[%s145 + $0x18] sm:$0xf] %vm1205, %v1083
      %1213 = vst.msk [vmem:[%s145 + $0x1c] sm:$0xf] %vm1205, %v1084
      %1214 = vst.msk [vmem:[%s145 + $0x20] sm:$0xf] %vm1205, %v1085
      %1215 = vst.msk [vmem:[%s145 + $0x24] sm:$0xf] %vm1205, %v1086
      %1216 = vst.msk [vmem:[%s145 + $0x28] sm:$0xf] %vm1205, %v1087
      %1217 = vst.msk [vmem:[%s145 + $0x2c] sm:$0xf] %vm1205, %v1088
      %1218 = vst.msk [vmem:[%s145 + $0x30] sm:$0xf] %vm1205, %v1089
      %1219 = vst.msk [vmem:[%s145 + $0x34] sm:$0xf] %vm1205, %v1090
      %1220 = vst.msk [vmem:[%s145 + $0x38] sm:$0xf] %vm1205, %v1091
      %1221 = vst.msk [vmem:[%s145 + $0x3c] sm:$0xf] %vm1205, %v1092
      %1222 = vst.msk [vmem:[%s145 + $0x40] sm:$0xf] %vm1205, %v1093
      %1223 = vst.msk [vmem:[%s145 + $0x44] sm:$0xf] %vm1205, %v1094
      %1224 = vst.msk [vmem:[%s145 + $0x48] sm:$0xf] %vm1205, %v1095
      %1225 = vst.msk [vmem:[%s145 + $0x4c] sm:$0xf] %vm1205, %v1096
      %1226 = vst.msk [vmem:[%s145 + $0x50] sm:$0xf] %vm1205, %v1097
      %1227 = vst.msk [vmem:[%s145 + $0x54] sm:$0xf] %vm1205, %v1098
      %1228 = vst.msk [vmem:[%s145 + $0x58] sm:$0xf] %vm1205, %v1099
      %1229 = vst.msk [vmem:[%s145 + $0x5c] sm:$0xf] %vm1205, %v1100
      %1230 = vst.msk [vmem:[%s145 + $0x60] sm:$0xf] %vm1205, %v1101
      %1231 = vst.msk [vmem:[%s145 + $0x64] sm:$0xf] %vm1205, %v1102
      %1232 = vst.msk [vmem:[%s145 + $0x68] sm:$0xf] %vm1205, %v1103
      %1233 = vst.msk [vmem:[%s145 + $0x6c] sm:$0xf] %vm1205, %v1104
      %1234 = vst.msk [vmem:[%s145 + $0x70] sm:$0xf] %vm1205, %v1105
      %1235 = vst.msk [vmem:[%s145 + $0x74] sm:$0xf] %vm1205, %v1106
      %1236 = vst.msk [vmem:[%s145 + $0x78] sm:$0xf] %vm1205, %v1107
      %1237 = vst.msk [vmem:[%s145 + $0x7c] sm:$0xf] %vm1205, %v1108
      %1238 = vst.msk [vmem:[%s145 + $0x80] sm:$0xf] %vm1205, %v1109
      %1239 = vst.msk [vmem:[%s145 + $0x84] sm:$0xf] %vm1205, %v1110
      %1240 = vst.msk [vmem:[%s145 + $0x88] sm:$0xf] %vm1205, %v1111
      %1241 = vst.msk [vmem:[%s145 + $0x8c] sm:$0xf] %vm1205, %v1112
      %1242 = vst.msk [vmem:[%s145 + $0x90] sm:$0xf] %vm1205, %v1113
      %1243 = vst.msk [vmem:[%s145 + $0x94] sm:$0xf] %vm1205, %v1114
      %1244 = vst.msk [vmem:[%s145 + $0x98] sm:$0xf] %vm1205, %v1115
      %1245 = vst.msk [vmem:[%s145 + $0x9c] sm:$0xf] %vm1205, %v1116
      %1246 = vst.msk [vmem:[%s145 + $0xa0] sm:$0xf] %vm1205, %v1117
      %1247 = vst.msk [vmem:[%s145 + $0xa4] sm:$0xf] %vm1205, %v1118
      %1248 = vst.msk [vmem:[%s145 + $0xa8] sm:$0xf] %vm1205, %v1119
      %1249 = vst.msk [vmem:[%s145 + $0xac] sm:$0xf] %vm1205, %v1120
      %1250 = vst.msk [vmem:[%s145 + $0xb0] sm:$0xf] %vm1205, %v1121
      %1251 = vst.msk [vmem:[%s145 + $0xb4] sm:$0xf] %vm1205, %v1122
      %1252 = vst.msk [vmem:[%s145 + $0xb8] sm:$0xf] %vm1205, %v1123
      %1253 = vst.msk [vmem:[%s145 + $0xbc] sm:$0xf] %vm1205, %v1124
      %1254 = vst.msk [vmem:[%s145 + $0xc0] sm:$0xf] %vm1205, %v1125
      %1255 = vst.msk [vmem:[%s145 + $0xc4] sm:$0xf] %vm1205, %v1126
      %1256 = vst.msk [vmem:[%s145 + $0xc8] sm:$0xf] %vm1205, %v1127
      %1257 = vst.msk [vmem:[%s145 + $0xcc] sm:$0xf] %vm1205, %v1128
      %1258 = vst.msk [vmem:[%s145 + $0xd0] sm:$0xf] %vm1205, %v1129
      %1259 = vst.msk [vmem:[%s145 + $0xd4] sm:$0xf] %vm1205, %v1130
      %1260 = vst.msk [vmem:[%s145 + $0xd8] sm:$0xf] %vm1205, %v1131
      %1261 = vst.msk [vmem:[%s145 + $0xdc] sm:$0xf] %vm1205, %v1132
      %1262 = vst.msk [vmem:[%s145 + $0xe0] sm:$0xf] %vm1205, %v1133
      %1263 = vst.msk [vmem:[%s145 + $0xe4] sm:$0xf] %vm1205, %v1134
      %1264 = vst.msk [vmem:[%s145 + $0xe8] sm:$0xf] %vm1205, %v1135
      %1265 = vst.msk [vmem:[%s145 + $0xec] sm:$0xf] %vm1205, %v1136
      %1266 = vst.msk [vmem:[%s145 + $0xf0] sm:$0xf] %vm1205, %v1137
      %1267 = vst.msk [vmem:[%s145 + $0xf4] sm:$0xf] %vm1205, %v1138
      %1268 = vst.msk [vmem:[%s145 + $0xf8] sm:$0xf] %vm1205, %v1139
      %1269 = vst.msk [vmem:[%s145 + $0xfc] sm:$0xf] %vm1205, %v1140
      %s1270 = smul.u32 64, %s13
      %p1271 = scmp.lt.s32.totalorder %s1270, 255
      %s1272 = scalar_select %p1271, %s1270, 255
      %s1273 = smul.addr %s1272, 4
      %s1274 = scalar_lea.vmem %s2, %s1273
      // Predicated region
      $region29: #{discriminator_forward.5} parent=27 // pred_check
        %p1275 = pneg %p78
      $region30: #{discriminator_forward.5} parent=27 // pred_check_branch
        %1277 = sbr.rel (%p1275) target = $region32
      $region31: #{discriminator_forward.5} parent=27 // pred_region
        %s1278 = smul.u32 64, %s13
      $region32: #{discriminator_forward.5} parent=27 // pred_fallthru
        _
    $region28: #{discriminator_forward.5} parent=5 // pred_fallthru
      _
    %p1279 = scmp.le.s32.totalorder 2, %s8
    // Predicated region
    $region33: #{discriminator_forward.5} parent=5 // pred_check
      %p1280 = pneg %p1279
    $region34: #{discriminator_forward.5} parent=5 // pred_check_branch
      %1282 = sbr.rel (%p1280) target = $region36
    $region35: #{discriminator_forward.5} parent=5 // pred_region
      %s1283 = ssub.s32 %s8, 2
      // Predicated region
      $region37: #{discriminator_forward.5} parent=35 // pred_check
        %p1284 = pneg %p84
      $region38: #{discriminator_forward.5} parent=35 // pred_check_branch
        %1286 = sbr.rel (%p1284) target = $region40
      $region39: #{discriminator_forward.5} parent=35 // pred_region
        %s1287 = smul.u32 64, %s14
        %p1288 = scmp.lt.s32.totalorder %s1287, 255
        %s1289 = scalar_select %p1288, %s1287, 255
        %s1290 = smul.addr %s1289, 4
        %s1291 = scalar_lea.vmem %s2, %s1290
      $region40: #{discriminator_forward.5} parent=35 // pred_fallthru
        _
    $region36: #{discriminator_forward.5} parent=5 // pred_fallthru
      _
  $region6: #{discriminator_forward.5} parent=0 // loop_footer
    %s12 = sadd.s32 1, %s8
  $region7: #{discriminator_forward.5} parent=0 // loop_footer_branch
    %7 = sbr.rel target = $region3
  $region8: #{discriminator_forward.5} parent=0 // loop_exit
    _

// kernel: discriminator_forward.6
$region0: #{discriminator_forward.6}
  #allocation0 [shape = 'u32[]', space=smem, size = 0x4, offset = 0x4, fixed_abs, tag = 'smem constant byte address 0x4 - core index']
  #allocation1 [shape = 'u32[144,128]{1,0:T(1,128)}', space=vmem, size = 0x12000, scoped, tag = 'internal scratch']
  %s0 = inlined_call_operand.vmem [shape: bf16[512,128], index: 0, kind: input, shape index: {}]
  %s1 = inlined_call_operand.vmem [shape: bf16[128,16], index: 1, kind: input, shape index: {}]
  %s2 = inlined_call_operand.vmem [shape: f32[1,16], index: 2, kind: input, shape index: {}]
  %s3 = inlined_call_operand.vmem [shape: f32[1,16], index: 3, kind: input, shape index: {}]
  %s4 = inlined_call_operand.vmem [shape: bf16[512,16], index: 4, kind: output, shape index: {}]
  %s5 = sld [smem:[#allocation0]]
  $region26: #{discriminator_forward.6} parent=0
    _
  %s7 = ssub.s32 1, %s5
  %s8 = scalar_select 0, %s7, %s5
  // Predicated region
  $region2: #{discriminator_forward.6} parent=0 // pred_check
    _
  $region3: #{discriminator_forward.6} parent=0 // pred_check_branch
    %10 = sbr.rel (0) target = $region5
  $region4: #{discriminator_forward.6} parent=0 // pred_region
    _
  $region5: #{discriminator_forward.6} parent=0 // pred_fallthru
    _
  // Predicated region
  $region6: #{discriminator_forward.6} parent=0 // pred_check
    _
  $region7: #{discriminator_forward.6} parent=0 // pred_check_branch
    %12 = sbr.rel (0) target = $region9
  $region8: #{discriminator_forward.6} parent=0 // pred_region
    _
  $region9: #{discriminator_forward.6} parent=0 // pred_fallthru
    _
  // Predicated region
  $region10: #{discriminator_forward.6} parent=0 // pred_check
    _
  $region11: #{discriminator_forward.6} parent=0 // pred_check_branch
    %14 = sbr.rel (0) target = $region13
  $region12: #{discriminator_forward.6} parent=0 // pred_region
    _
  $region13: #{discriminator_forward.6} parent=0 // pred_fallthru
    _
  // Predicated region
  $region14: #{discriminator_forward.6} parent=0 // pred_check
    _
  $region15: #{discriminator_forward.6} parent=0 // pred_check_branch
    %16 = sbr.rel (0) target = $region17
  $region16: #{discriminator_forward.6} parent=0 // pred_region
    _
  $region17: #{discriminator_forward.6} parent=0 // pred_fallthru
    _
  %v18 = vld [vmem:[%s0] sm:$0xf]
  %v19 = vld [vmem:[%s0 + $0x4] sm:$0xf]
  %v20 = vld [vmem:[%s0 + $0x8] sm:$0xf]
  %v21 = vld [vmem:[%s0 + $0xc] sm:$0xf]
  %v22 = vld [vmem:[%s0 + $0x10] sm:$0xf]
  %v23 = vld [vmem:[%s0 + $0x14] sm:$0xf]
  %v24 = vld [vmem:[%s0 + $0x18] sm:$0xf]
  %v25 = vld [vmem:[%s0 + $0x1c] sm:$0xf]
  %v26 = vld [vmem:[%s0 + $0x20] sm:$0xf]
  %v27 = vld [vmem:[%s0 + $0x24] sm:$0xf]
  %v28 = vld [vmem:[%s0 + $0x28] sm:$0xf]
  %v29 = vld [vmem:[%s0 + $0x2c] sm:$0xf]
  %v30 = vld [vmem:[%s0 + $0x30] sm:$0xf]
  %v31 = vld [vmem:[%s0 + $0x34] sm:$0xf]
  %v32 = vld [vmem:[%s0 + $0x38] sm:$0xf]
  %v33 = vld [vmem:[%s0 + $0x3c] sm:$0xf]
  %v34 = vld [vmem:[%s0 + $0x40] sm:$0xf]
  %v35 = vld [vmem:[%s0 + $0x44] sm:$0xf]
  %v36 = vld [vmem:[%s0 + $0x48] sm:$0xf]
  %v37 = vld [vmem:[%s0 + $0x4c] sm:$0xf]
  %v38 = vld [vmem:[%s0 + $0x50] sm:$0xf]
  %v39 = vld [vmem:[%s0 + $0x54] sm:$0xf]
  %v40 = vld [vmem:[%s0 + $0x58] sm:$0xf]
  %v41 = vld [vmem:[%s0 + $0x5c] sm:$0xf]
  %v42 = vld [vmem:[%s0 + $0x60] sm:$0xf]
  %v43 = vld [vmem:[%s0 + $0x64] sm:$0xf]
  %v44 = vld [vmem:[%s0 + $0x68] sm:$0xf]
  %v45 = vld [vmem:[%s0 + $0x6c] sm:$0xf]
  %v46 = vld [vmem:[%s0 + $0x70] sm:$0xf]
  %v47 = vld [vmem:[%s0 + $0x74] sm:$0xf]
  %v48 = vld [vmem:[%s0 + $0x78] sm:$0xf]
  %v49 = vld [vmem:[%s0 + $0x7c] sm:$0xf]
  %v50 = vld [vmem:[%s0 + $0x80] sm:$0xf]
  %v51 = vld [vmem:[%s0 + $0x84] sm:$0xf]
  %v52 = vld [vmem:[%s0 + $0x88] sm:$0xf]
  %v53 = vld [vmem:[%s0 + $0x8c] sm:$0xf]
  %v54 = vld [vmem:[%s0 + $0x90] sm:$0xf]
  %v55 = vld [vmem:[%s0 + $0x94] sm:$0xf]
  %v56 = vld [vmem:[%s0 + $0x98] sm:$0xf]
  %v57 = vld [vmem:[%s0 + $0x9c] sm:$0xf]
  %v58 = vld [vmem:[%s0 + $0xa0] sm:$0xf]
  %v59 = vld [vmem:[%s0 + $0xa4] sm:$0xf]
  %v60 = vld [vmem:[%s0 + $0xa8] sm:$0xf]
  %v61 = vld [vmem:[%s0 + $0xac] sm:$0xf]
  %v62 = vld [vmem:[%s0 + $0xb0] sm:$0xf]
  %v63 = vld [vmem:[%s0 + $0xb4] sm:$0xf]
  %v64 = vld [vmem:[%s0 + $0xb8] sm:$0xf]
  %v65 = vld [vmem:[%s0 + $0xbc] sm:$0xf]
  %v66 = vld [vmem:[%s0 + $0xc0] sm:$0xf]
  %v67 = vld [vmem:[%s0 + $0xc4] sm:$0xf]
  %v68 = vld [vmem:[%s0 + $0xc8] sm:$0xf]
  %v69 = vld [vmem:[%s0 + $0xcc] sm:$0xf]
  %v70 = vld [vmem:[%s0 + $0xd0] sm:$0xf]
  %v71 = vld [vmem:[%s0 + $0xd4] sm:$0xf]
  %v72 = vld [vmem:[%s0 + $0xd8] sm:$0xf]
  %v73 = vld [vmem:[%s0 + $0xdc] sm:$0xf]
  %v74 = vld [vmem:[%s0 + $0xe0] sm:$0xf]
  %v75 = vld [vmem:[%s0 + $0xe4] sm:$0xf]
  %v76 = vld [vmem:[%s0 + $0xe8] sm:$0xf]
  %v77 = vld [vmem:[%s0 + $0xec] sm:$0xf]
  %v78 = vld [vmem:[%s0 + $0xf0] sm:$0xf]
  %v79 = vld [vmem:[%s0 + $0xf4] sm:$0xf]
  %v80 = vld [vmem:[%s0 + $0xf8] sm:$0xf]
  %v81 = vld [vmem:[%s0 + $0xfc] sm:$0xf]
  %v82 = vld [vmem:[%s1] sm:$0xf]
  %v83 = vld [vmem:[%s1 + $0x4] sm:$0xf]
  %v84 = vld [vmem:[%s1 + $0x8] sm:$0xf]
  %v85 = vld [vmem:[%s1 + $0xc] sm:$0xf]
  %v86 = vld [vmem:[%s1 + $0x10] sm:$0xf]
  %v87 = vld [vmem:[%s1 + $0x14] sm:$0xf]
  %v88 = vld [vmem:[%s1 + $0x18] sm:$0xf]
  %v89 = vld [vmem:[%s1 + $0x1c] sm:$0xf]
  %v90 = vld [vmem:[%s1 + $0x20] sm:$0xf]
  %v91 = vld [vmem:[%s1 + $0x24] sm:$0xf]
  %v92 = vld [vmem:[%s1 + $0x28] sm:$0xf]
  %v93 = vld [vmem:[%s1 + $0x2c] sm:$0xf]
  %v94 = vld [vmem:[%s1 + $0x30] sm:$0xf]
  %v95 = vld [vmem:[%s1 + $0x34] sm:$0xf]
  %v96 = vld [vmem:[%s1 + $0x38] sm:$0xf]
  %v97 = vld [vmem:[%s1 + $0x3c] sm:$0xf]
  %v162 = vunpack.c.l.b16 %v18
  %v163 = vunpack.c.l.b16 %v19
  %v164 = vunpack.c.l.b16 %v20
  %v165 = vunpack.c.l.b16 %v21
  %v166 = vunpack.c.l.b16 %v22
  %v167 = vunpack.c.l.b16 %v23
  %v168 = vunpack.c.l.b16 %v24
  %v169 = vunpack.c.l.b16 %v25
  %v170 = vunpack.c.l.b16 %v26
  %v171 = vunpack.c.l.b16 %v27
  %v172 = vunpack.c.l.b16 %v28
  %v173 = vunpack.c.l.b16 %v29
  %v174 = vunpack.c.l.b16 %v30
  %v175 = vunpack.c.l.b16 %v31
  %v176 = vunpack.c.l.b16 %v32
  %v177 = vunpack.c.l.b16 %v33
  %v178 = vunpack.c.l.b16 %v34
  %v179 = vunpack.c.l.b16 %v35
  %v180 = vunpack.c.l.b16 %v36
  %v181 = vunpack.c.l.b16 %v37
  %v182 = vunpack.c.l.b16 %v38
  %v183 = vunpack.c.l.b16 %v39
  %v184 = vunpack.c.l.b16 %v40
  %v185 = vunpack.c.l.b16 %v41
  %v186 = vunpack.c.l.b16 %v42
  %v187 = vunpack.c.l.b16 %v43
  %v188 = vunpack.c.l.b16 %v44
  %v189 = vunpack.c.l.b16 %v45
  %v190 = vunpack.c.l.b16 %v46
  %v191 = vunpack.c.l.b16 %v47
  %v192 = vunpack.c.l.b16 %v48
  %v193 = vunpack.c.l.b16 %v49
  %v194 = vunpack.c.l.b16 %v50
  %v195 = vunpack.c.l.b16 %v51
  %v196 = vunpack.c.l.b16 %v52
  %v197 = vunpack.c.l.b16 %v53
  %v198 = vunpack.c.l.b16 %v54
  %v199 = vunpack.c.l.b16 %v55
  %v200 = vunpack.c.l.b16 %v56
  %v201 = vunpack.c.l.b16 %v57
  %v202 = vunpack.c.l.b16 %v58
  %v203 = vunpack.c.l.b16 %v59
  %v204 = vunpack.c.l.b16 %v60
  %v205 = vunpack.c.l.b16 %v61
  %v206 = vunpack.c.l.b16 %v62
  %v207 = vunpack.c.l.b16 %v63
  %v208 = vunpack.c.l.b16 %v64
  %v209 = vunpack.c.l.b16 %v65
  %v210 = vunpack.c.l.b16 %v66
  %v211 = vunpack.c.l.b16 %v67
  %v212 = vunpack.c.l.b16 %v68
  %v213 = vunpack.c.l.b16 %v69
  %v214 = vunpack.c.l.b16 %v70
  %v215 = vunpack.c.l.b16 %v71
  %v216 = vunpack.c.l.b16 %v72
  %v217 = vunpack.c.l.b16 %v73
  %v218 = vunpack.c.l.b16 %v74
  %v219 = vunpack.c.l.b16 %v75
  %v220 = vunpack.c.l.b16 %v76
  %v221 = vunpack.c.l.b16 %v77
  %v222 = vunpack.c.l.b16 %v78
  %v223 = vunpack.c.l.b16 %v79
  %v224 = vunpack.c.l.b16 %v80
  %v225 = vunpack.c.l.b16 %v81
  %v226 = vpack.c.b16 %v163, %v162
  %v227 = vpack.c.b16 %v165, %v164
  %v228 = vpack.c.b16 %v167, %v166
  %v229 = vpack.c.b16 %v169, %v168
  %v230 = vpack.c.b16 %v171, %v170
  %v231 = vpack.c.b16 %v173, %v172
  %v232 = vpack.c.b16 %v175, %v174
  %v233 = vpack.c.b16 %v177, %v176
  %v234 = vpack.c.b16 %v179, %v178
  %v235 = vpack.c.b16 %v181, %v180
  %v236 = vpack.c.b16 %v183, %v182
  %v237 = vpack.c.b16 %v185, %v184
  %v238 = vpack.c.b16 %v187, %v186
  %v239 = vpack.c.b16 %v189, %v188
  %v240 = vpack.c.b16 %v191, %v190
  %v241 = vpack.c.b16 %v193, %v192
  %v242 = vpack.c.b16 %v195, %v194
  %v243 = vpack.c.b16 %v197, %v196
  %v244 = vpack.c.b16 %v199, %v198
  %v245 = vpack.c.b16 %v201, %v200
  %v246 = vpack.c.b16 %v203, %v202
  %v247 = vpack.c.b16 %v205, %v204
  %v248 = vpack.c.b16 %v207, %v206
  %v249 = vpack.c.b16 %v209, %v208
  %v250 = vpack.c.b16 %v211, %v210
  %v251 = vpack.c.b16 %v213, %v212
  %v252 = vpack.c.b16 %v215, %v214
  %v253 = vpack.c.b16 %v217, %v216
  %v254 = vpack.c.b16 %v219, %v218
  %v255 = vpack.c.b16 %v221, %v220
  %v256 = vpack.c.b16 %v223, %v222
  %v257 = vpack.c.b16 %v225, %v224
  %v306 = vunpack.c.l.b16 %v82
  %v307 = vunpack.c.l.b16 %v83
  %v308 = vunpack.c.l.b16 %v84
  %v309 = vunpack.c.l.b16 %v85
  %v310 = vunpack.c.l.b16 %v86
  %v311 = vunpack.c.l.b16 %v87
  %v312 = vunpack.c.l.b16 %v88
  %v313 = vunpack.c.l.b16 %v89
  %v314 = vunpack.c.l.b16 %v90
  %v315 = vunpack.c.l.b16 %v91
  %v316 = vunpack.c.l.b16 %v92
  %v317 = vunpack.c.l.b16 %v93
  %v318 = vunpack.c.l.b16 %v94
  %v319 = vunpack.c.l.b16 %v95
  %v320 = vunpack.c.l.b16 %v96
  %v321 = vunpack.c.l.b16 %v97
  %v322 = vpack.c.b16 %v307, %v306
  %v323 = vpack.c.b16 %v309, %v308
  %v324 = vpack.c.b16 %v311, %v310
  %v325 = vpack.c.b16 %v313, %v312
  %v326 = vpack.c.b16 %v315, %v314
  %v327 = vpack.c.b16 %v317, %v316
  %v328 = vpack.c.b16 %v319, %v318
  %v329 = vpack.c.b16 %v321, %v320
  %338 = vmatprep.subr.bf16.mxu0 0
  %339 = vmatpush1.bf16.msra.mxu0 %v329
  %340 = vmatprep.subr.bf16.mxu0 0
  %341 = vmatpush1.bf16.msra.mxu0 %v328
  %342 = vmatprep.subr.bf16.mxu0 0
  %343 = vmatpush1.bf16.msra.mxu0 %v327
  %344 = vmatprep.subr.bf16.mxu0 0
  %345 = vmatpush1.bf16.msra.mxu0 %v326
  %346 = vmatprep.subr.bf16.mxu0 0
  %347 = vmatpush1.bf16.msra.mxu0 %v325
  %348 = vmatprep.subr.bf16.mxu0 0
  %349 = vmatpush1.bf16.msra.mxu0 %v324
  %350 = vmatprep.subr.bf16.mxu0 0
  %351 = vmatpush1.bf16.msra.mxu0 %v323
  %352 = vmatprep.subr.bf16.mxu0 0
  %353 = vmatpush1.bf16.msra.mxu0 %v322
  %354 = vmatprep.subr.bf16.mxu0 0
  %355 = vmatpush2.bf16.msra.mxu0 0
  %356 = vmatprep.subr.bf16.mxu0 0
  %357 = vmatpush2.bf16.msra.mxu0 0
  %358 = vmatprep.subr.bf16.mxu0 0
  %359 = vmatpush2.bf16.msra.mxu0 0
  %360 = vmatprep.subr.bf16.mxu0 0
  %361 = vmatpush2.bf16.msra.mxu0 0
  %362 = vmatprep.subr.bf16.mxu0 0
  %363 = vmatpush2.bf16.msra.mxu0 0
  %364 = vmatprep.subr.bf16.mxu0 0
  %365 = vmatpush2.bf16.msra.mxu0 0
  %366 = vmatprep.subr.bf16.mxu0 0
  %367 = vmatpush2.bf16.msra.mxu0 0
  %368 = vmatprep.subr.bf16.mxu0 0
  %369 = vmatpush2.bf16.msra.mxu0 0
  %370 = vmatprep.mubr.bf16.mxu0 0
  %371 = vmatmul.mubr.bf16.gmra.mxu0 %v226
  %v372 = vpop.f32.mrf.mxu0
  %v373 = vadd.f32 0.0, %v372
  %v374 = vpop.f32.mrf.mxu0
  %v375 = vpop.f32.mrf.mxu0
  %v376 = vadd.f32 0.0, %v375
  %v377 = vpop.f32.mrf.mxu0
  %378 = vmatprep.mubr.bf16.mxu0 0
  %379 = vmatmul.mubr.bf16.gmra.mxu0 %v227
  %v380 = vpop.f32.mrf.mxu0
  %v381 = vadd.f32 0.0, %v380
  %v382 = vpop.f32.mrf.mxu0
  %v383 = vpop.f32.mrf.mxu0
  %v384 = vadd.f32 0.0, %v383
  %v385 = vpop.f32.mrf.mxu0
  %386 = vmatprep.mubr.bf16.mxu0 0
  %387 = vmatmul.mubr.bf16.gmra.mxu0 %v228
  %v388 = vpop.f32.mrf.mxu0
  %v389 = vadd.f32 0.0, %v388
  %v390 = vpop.f32.mrf.mxu0
  %v391 = vpop.f32.mrf.mxu0
  %v392 = vadd.f32 0.0, %v391
  %v393 = vpop.f32.mrf.mxu0
  %394 = vmatprep.mubr.bf16.mxu0 0
  %395 = vmatmul.mubr.bf16.gmra.mxu0 %v229
  %v396 = vpop.f32.mrf.mxu0
  %v397 = vadd.f32 0.0, %v396
  %v398 = vpop.f32.mrf.mxu0
  %v399 = vpop.f32.mrf.mxu0
  %v400 = vadd.f32 0.0, %v399
  %v401 = vpop.f32.mrf.mxu0
  %402 = vmatprep.mubr.bf16.mxu0 0
  %403 = vmatmul.mubr.bf16.gmra.mxu0 %v230
  %v404 = vpop.f32.mrf.mxu0
  %v405 = vadd.f32 0.0, %v404
  %v406 = vpop.f32.mrf.mxu0
  %v407 = vpop.f32.mrf.mxu0
  %v408 = vadd.f32 0.0, %v407
  %v409 = vpop.f32.mrf.mxu0
  %410 = vmatprep.mubr.bf16.mxu0 0
  %411 = vmatmul.mubr.bf16.gmra.mxu0 %v231
  %v412 = vpop.f32.mrf.mxu0
  %v413 = vadd.f32 0.0, %v412
  %v414 = vpop.f32.mrf.mxu0
  %v415 = vpop.f32.mrf.mxu0
  %v416 = vadd.f32 0.0, %v415
  %v417 = vpop.f32.mrf.mxu0
  %418 = vmatprep.mubr.bf16.mxu0 0
  %419 = vmatmul.mubr.bf16.gmra.mxu0 %v232
  %v420 = vpop.f32.mrf.mxu0
  %v421 = vadd.f32 0.0, %v420
  %v422 = vpop.f32.mrf.mxu0
  %v423 = vpop.f32.mrf.mxu0
  %v424 = vadd.f32 0.0, %v423
  %v425 = vpop.f32.mrf.mxu0
  %426 = vmatprep.mubr.bf16.mxu0 0
  %427 = vmatmul.mubr.bf16.gmra.mxu0 %v233
  %v428 = vpop.f32.mrf.mxu0
  %v429 = vadd.f32 0.0, %v428
  %v430 = vpop.f32.mrf.mxu0
  %v431 = vpop.f32.mrf.mxu0
  %v432 = vadd.f32 0.0, %v431
  %v433 = vpop.f32.mrf.mxu0
  %434 = vmatprep.mubr.bf16.mxu0 0
  %435 = vmatmul.mubr.bf16.gmra.mxu0 %v234
  %v436 = vpop.f32.mrf.mxu0
  %v437 = vadd.f32 0.0, %v436
  %v438 = vpop.f32.mrf.mxu0
  %v439 = vpop.f32.mrf.mxu0
  %v440 = vadd.f32 0.0, %v439
  %v441 = vpop.f32.mrf.mxu0
  %442 = vmatprep.mubr.bf16.mxu0 0
  %443 = vmatmul.mubr.bf16.gmra.mxu0 %v235
  %v444 = vpop.f32.mrf.mxu0
  %v445 = vadd.f32 0.0, %v444
  %v446 = vpop.f32.mrf.mxu0
  %v447 = vpop.f32.mrf.mxu0
  %v448 = vadd.f32 0.0, %v447
  %v449 = vpop.f32.mrf.mxu0
  %450 = vmatprep.mubr.bf16.mxu0 0
  %451 = vmatmul.mubr.bf16.gmra.mxu0 %v236
  %v452 = vpop.f32.mrf.mxu0
  %v453 = vadd.f32 0.0, %v452
  %v454 = vpop.f32.mrf.mxu0
  %v455 = vpop.f32.mrf.mxu0
  %v456 = vadd.f32 0.0, %v455
  %v457 = vpop.f32.mrf.mxu0
  %458 = vmatprep.mubr.bf16.mxu0 0
  %459 = vmatmul.mubr.bf16.gmra.mxu0 %v237
  %v460 = vpop.f32.mrf.mxu0
  %v461 = vadd.f32 0.0, %v460
  %v462 = vpop.f32.mrf.mxu0
  %v463 = vpop.f32.mrf.mxu0
  %v464 = vadd.f32 0.0, %v463
  %v465 = vpop.f32.mrf.mxu0
  %466 = vmatprep.mubr.bf16.mxu0 0
  %467 = vmatmul.mubr.bf16.gmra.mxu0 %v238
  %v468 = vpop.f32.mrf.mxu0
  %v469 = vadd.f32 0.0, %v468
  %v470 = vpop.f32.mrf.mxu0
  %v471 = vpop.f32.mrf.mxu0
  %v472 = vadd.f32 0.0, %v471
  %v473 = vpop.f32.mrf.mxu0
  %474 = vmatprep.mubr.bf16.mxu0 0
  %475 = vmatmul.mubr.bf16.gmra.mxu0 %v239
  %v476 = vpop.f32.mrf.mxu0
  %v477 = vadd.f32 0.0, %v476
  %v478 = vpop.f32.mrf.mxu0
  %v479 = vpop.f32.mrf.mxu0
  %v480 = vadd.f32 0.0, %v479
  %v481 = vpop.f32.mrf.mxu0
  %482 = vmatprep.mubr.bf16.mxu0 0
  %483 = vmatmul.mubr.bf16.gmra.mxu0 %v240
  %v484 = vpop.f32.mrf.mxu0
  %v485 = vadd.f32 0.0, %v484
  %v486 = vpop.f32.mrf.mxu0
  %v487 = vpop.f32.mrf.mxu0
  %v488 = vadd.f32 0.0, %v487
  %v489 = vpop.f32.mrf.mxu0
  %490 = vmatprep.mubr.bf16.mxu0 0
  %491 = vmatmul.mubr.bf16.gmra.mxu0 %v241
  %v492 = vpop.f32.mrf.mxu0
  %v493 = vadd.f32 0.0, %v492
  %v494 = vpop.f32.mrf.mxu0
  %v495 = vpop.f32.mrf.mxu0
  %v496 = vadd.f32 0.0, %v495
  %v497 = vpop.f32.mrf.mxu0
  %498 = vmatprep.mubr.bf16.mxu0 0
  %499 = vmatmul.mubr.bf16.gmra.mxu0 %v242
  %v500 = vpop.f32.mrf.mxu0
  %v501 = vadd.f32 0.0, %v500
  %v502 = vpop.f32.mrf.mxu0
  %v503 = vpop.f32.mrf.mxu0
  %v504 = vadd.f32 0.0, %v503
  %v505 = vpop.f32.mrf.mxu0
  %506 = vmatprep.mubr.bf16.mxu0 0
  %507 = vmatmul.mubr.bf16.gmra.mxu0 %v243
  %v508 = vpop.f32.mrf.mxu0
  %v509 = vadd.f32 0.0, %v508
  %v510 = vpop.f32.mrf.mxu0
  %v511 = vpop.f32.mrf.mxu0
  %v512 = vadd.f32 0.0, %v511
  %v513 = vpop.f32.mrf.mxu0
  %514 = vmatprep.mubr.bf16.mxu0 0
  %515 = vmatmul.mubr.bf16.gmra.mxu0 %v244
  %v516 = vpop.f32.mrf.mxu0
  %v517 = vadd.f32 0.0, %v516
  %v518 = vpop.f32.mrf.mxu0
  %v519 = vpop.f32.mrf.mxu0
  %v520 = vadd.f32 0.0, %v519
  %v521 = vpop.f32.mrf.mxu0
  %522 = vmatprep.mubr.bf16.mxu0 0
  %523 = vmatmul.mubr.bf16.gmra.mxu0 %v245
  %v524 = vpop.f32.mrf.mxu0
  %v525 = vadd.f32 0.0, %v524
  %v526 = vpop.f32.mrf.mxu0
  %v527 = vpop.f32.mrf.mxu0
  %v528 = vadd.f32 0.0, %v527
  %v529 = vpop.f32.mrf.mxu0
  %530 = vmatprep.mubr.bf16.mxu0 0
  %531 = vmatmul.mubr.bf16.gmra.mxu0 %v246
  %v532 = vpop.f32.mrf.mxu0
  %v533 = vadd.f32 0.0, %v532
  %v534 = vpop.f32.mrf.mxu0
  %v535 = vpop.f32.mrf.mxu0
  %v536 = vadd.f32 0.0, %v535
  %v537 = vpop.f32.mrf.mxu0
  %538 = vmatprep.mubr.bf16.mxu0 0
  %539 = vmatmul.mubr.bf16.gmra.mxu0 %v247
  %v540 = vpop.f32.mrf.mxu0
  %v541 = vadd.f32 0.0, %v540
  %v542 = vpop.f32.mrf.mxu0
  %v543 = vpop.f32.mrf.mxu0
  %v544 = vadd.f32 0.0, %v543
  %v545 = vpop.f32.mrf.mxu0
  %546 = vmatprep.mubr.bf16.mxu0 0
  %547 = vmatmul.mubr.bf16.gmra.mxu0 %v248
  %v548 = vpop.f32.mrf.mxu0
  %v549 = vadd.f32 0.0, %v548
  %v550 = vpop.f32.mrf.mxu0
  %v551 = vpop.f32.mrf.mxu0
  %v552 = vadd.f32 0.0, %v551
  %v553 = vpop.f32.mrf.mxu0
  %554 = vmatprep.mubr.bf16.mxu0 0
  %555 = vmatmul.mubr.bf16.gmra.mxu0 %v249
  %v556 = vpop.f32.mrf.mxu0
  %v557 = vadd.f32 0.0, %v556
  %v558 = vpop.f32.mrf.mxu0
  %v559 = vpop.f32.mrf.mxu0
  %v560 = vadd.f32 0.0, %v559
  %v561 = vpop.f32.mrf.mxu0
  %562 = vmatprep.mubr.bf16.mxu0 0
  %563 = vmatmul.mubr.bf16.gmra.mxu0 %v250
  %v564 = vpop.f32.mrf.mxu0
  %v565 = vadd.f32 0.0, %v564
  %v566 = vpop.f32.mrf.mxu0
  %v567 = vpop.f32.mrf.mxu0
  %v568 = vadd.f32 0.0, %v567
  %v569 = vpop.f32.mrf.mxu0
  %570 = vmatprep.mubr.bf16.mxu0 0
  %571 = vmatmul.mubr.bf16.gmra.mxu0 %v251
  %v572 = vpop.f32.mrf.mxu0
  %v573 = vadd.f32 0.0, %v572
  %v574 = vpop.f32.mrf.mxu0
  %v575 = vpop.f32.mrf.mxu0
  %v576 = vadd.f32 0.0, %v575
  %v577 = vpop.f32.mrf.mxu0
  %578 = vmatprep.mubr.bf16.mxu0 0
  %579 = vmatmul.mubr.bf16.gmra.mxu0 %v252
  %v580 = vpop.f32.mrf.mxu0
  %v581 = vadd.f32 0.0, %v580
  %v582 = vpop.f32.mrf.mxu0
  %v583 = vpop.f32.mrf.mxu0
  %v584 = vadd.f32 0.0, %v583
  %v585 = vpop.f32.mrf.mxu0
  %586 = vmatprep.mubr.bf16.mxu0 0
  %587 = vmatmul.mubr.bf16.gmra.mxu0 %v253
  %v588 = vpop.f32.mrf.mxu0
  %v589 = vadd.f32 0.0, %v588
  %v590 = vpop.f32.mrf.mxu0
  %v591 = vpop.f32.mrf.mxu0
  %v592 = vadd.f32 0.0, %v591
  %v593 = vpop.f32.mrf.mxu0
  %594 = vmatprep.mubr.bf16.mxu0 0
  %595 = vmatmul.mubr.bf16.gmra.mxu0 %v254
  %v596 = vpop.f32.mrf.mxu0
  %v597 = vadd.f32 0.0, %v596
  %v598 = vpop.f32.mrf.mxu0
  %v599 = vpop.f32.mrf.mxu0
  %v600 = vadd.f32 0.0, %v599
  %v601 = vpop.f32.mrf.mxu0
  %602 = vmatprep.mubr.bf16.mxu0 0
  %603 = vmatmul.mubr.bf16.gmra.mxu0 %v255
  %v604 = vpop.f32.mrf.mxu0
  %v605 = vadd.f32 0.0, %v604
  %v606 = vpop.f32.mrf.mxu0
  %v607 = vpop.f32.mrf.mxu0
  %v608 = vadd.f32 0.0, %v607
  %v609 = vpop.f32.mrf.mxu0
  %610 = vmatprep.mubr.bf16.mxu0 0
  %611 = vmatmul.mubr.bf16.gmra.mxu0 %v256
  %v612 = vpop.f32.mrf.mxu0
  %v613 = vadd.f32 0.0, %v612
  %v614 = vpop.f32.mrf.mxu0
  %v615 = vpop.f32.mrf.mxu0
  %v616 = vadd.f32 0.0, %v615
  %v617 = vpop.f32.mrf.mxu0
  %618 = vmatprep.mubr.bf16.mxu0 0
  %619 = vmatmul.mubr.bf16.gmra.mxu0 %v257
  %v620 = vpop.f32.mrf.mxu0
  %v621 = vadd.f32 0.0, %v620
  %v622 = vpop.f32.mrf.mxu0
  %v623 = vpop.f32.mrf.mxu0
  %v624 = vadd.f32 0.0, %v623
  %v625 = vpop.f32.mrf.mxu0
  %626 = vdwg.mxu0
  %vm627 = vcmask 130048
  %v628 = vsel %vm627, %v373, 0.0
  %v629 = vsel %vm627, %v376, 0.0
  %v630 = vadd.f32 %v628, %v629
  %v631 = vsel %vm627, %v381, 0.0
  %v632 = vadd.f32 %v630, %v631
  %v633 = vsel %vm627, %v384, 0.0
  %v634 = vadd.f32 %v632, %v633
  %v635 = vsel %vm627, %v389, 0.0
  %v636 = vadd.f32 %v634, %v635
  %v637 = vsel %vm627, %v392, 0.0
  %v638 = vadd.f32 %v636, %v637
  %v639 = vsel %vm627, %v397, 0.0
  %v640 = vadd.f32 %v638, %v639
  %v641 = vsel %vm627, %v400, 0.0
  %v642 = vadd.f32 %v640, %v641
  %v643 = vsel %vm627, %v405, 0.0
  %v644 = vadd.f32 %v642, %v643
  %v645 = vsel %vm627, %v408, 0.0
  %v646 = vadd.f32 %v644, %v645
  %v647 = vsel %vm627, %v413, 0.0
  %v648 = vadd.f32 %v646, %v647
  %v649 = vsel %vm627, %v416, 0.0
  %v650 = vadd.f32 %v648, %v649
  %v651 = vsel %vm627, %v421, 0.0
  %v652 = vadd.f32 %v650, %v651
  %v653 = vsel %vm627, %v424, 0.0
  %v654 = vadd.f32 %v652, %v653
  %v655 = vsel %vm627, %v429, 0.0
  %v656 = vadd.f32 %v654, %v655
  %v657 = vsel %vm627, %v432, 0.0
  %v658 = vadd.f32 %v656, %v657
  %v659 = vsel %vm627, %v437, 0.0
  %v660 = vadd.f32 %v658, %v659
  %v661 = vsel %vm627, %v440, 0.0
  %v662 = vadd.f32 %v660, %v661
  %v663 = vsel %vm627, %v445, 0.0
  %v664 = vadd.f32 %v662, %v663
  %v665 = vsel %vm627, %v448, 0.0
  %v666 = vadd.f32 %v664, %v665
  %v667 = vsel %vm627, %v453, 0.0
  %v668 = vadd.f32 %v666, %v667
  %v669 = vsel %vm627, %v456, 0.0
  %v670 = vadd.f32 %v668, %v669
  %v671 = vsel %vm627, %v461, 0.0
  %v672 = vadd.f32 %v670, %v671
  %v673 = vsel %vm627, %v464, 0.0
  %v674 = vadd.f32 %v672, %v673
  %v675 = vsel %vm627, %v469, 0.0
  %v676 = vadd.f32 %v674, %v675
  %v677 = vsel %vm627, %v472, 0.0
  %v678 = vadd.f32 %v676, %v677
  %v679 = vsel %vm627, %v477, 0.0
  %v680 = vadd.f32 %v678, %v679
  %v681 = vsel %vm627, %v480, 0.0
  %v682 = vadd.f32 %v680, %v681
  %v683 = vsel %vm627, %v485, 0.0
  %v684 = vadd.f32 %v682, %v683
  %v685 = vsel %vm627, %v488, 0.0
  %v686 = vadd.f32 %v684, %v685
  %v687 = vsel %vm627, %v493, 0.0
  %v688 = vadd.f32 %v686, %v687
  %v689 = vsel %vm627, %v496, 0.0
  %v690 = vadd.f32 %v688, %v689
  %v691 = vsel %vm627, %v501, 0.0
  %v692 = vadd.f32 %v690, %v691
  %v693 = vsel %vm627, %v504, 0.0
  %v694 = vadd.f32 %v692, %v693
  %v695 = vsel %vm627, %v509, 0.0
  %v696 = vadd.f32 %v694, %v695
  %v697 = vsel %vm627, %v512, 0.0
  %v698 = vadd.f32 %v696, %v697
  %v699 = vsel %vm627, %v517, 0.0
  %v700 = vadd.f32 %v698, %v699
  %v701 = vsel %vm627, %v520, 0.0
  %v702 = vadd.f32 %v700, %v701
  %v703 = vsel %vm627, %v525, 0.0
  %v704 = vadd.f32 %v702, %v703
  %v705 = vsel %vm627, %v528, 0.0
  %v706 = vadd.f32 %v704, %v705
  %v707 = vsel %vm627, %v533, 0.0
  %v708 = vadd.f32 %v706, %v707
  %v709 = vsel %vm627, %v536, 0.0
  %v710 = vadd.f32 %v708, %v709
  %v711 = vsel %vm627, %v541, 0.0
  %v712 = vadd.f32 %v710, %v711
  %v713 = vsel %vm627, %v544, 0.0
  %v714 = vadd.f32 %v712, %v713
  %v715 = vsel %vm627, %v549, 0.0
  %v716 = vadd.f32 %v714, %v715
  %v717 = vsel %vm627, %v552, 0.0
  %v718 = vadd.f32 %v716, %v717
  %v719 = vsel %vm627, %v557, 0.0
  %v720 = vadd.f32 %v718, %v719
  %v721 = vsel %vm627, %v560, 0.0
  %v722 = vadd.f32 %v720, %v721
  %v723 = vsel %vm627, %v565, 0.0
  %v724 = vadd.f32 %v722, %v723
  %v725 = vsel %vm627, %v568, 0.0
  %v726 = vadd.f32 %v724, %v725
  %v727 = vsel %vm627, %v573, 0.0
  %v728 = vadd.f32 %v726, %v727
  %v729 = vsel %vm627, %v576, 0.0
  %v730 = vadd.f32 %v728, %v729
  %v731 = vsel %vm627, %v581, 0.0
  %v732 = vadd.f32 %v730, %v731
  %v733 = vsel %vm627, %v584, 0.0
  %v734 = vadd.f32 %v732, %v733
  %v735 = vsel %vm627, %v589, 0.0
  %v736 = vadd.f32 %v734, %v735
  %v737 = vsel %vm627, %v592, 0.0
  %v738 = vadd.f32 %v736, %v737
  %v739 = vsel %vm627, %v597, 0.0
  %v740 = vadd.f32 %v738, %v739
  %v741 = vsel %vm627, %v600, 0.0
  %v742 = vadd.f32 %v740, %v741
  %v743 = vsel %vm627, %v605, 0.0
  %v744 = vadd.f32 %v742, %v743
  %v745 = vsel %vm627, %v608, 0.0
  %v746 = vadd.f32 %v744, %v745
  %v747 = vsel %vm627, %v613, 0.0
  %v748 = vadd.f32 %v746, %v747
  %v749 = vsel %vm627, %v616, 0.0
  %v750 = vadd.f32 %v748, %v749
  %v751 = vsel %vm627, %v621, 0.0
  %v752 = vadd.f32 %v750, %v751
  %v753 = vsel %vm627, %v624, 0.0
  %v754 = vadd.f32 %v752, %v753
  %v755 = vrot.slane %v754, 4
  %v756 = vadd.f32 %v754, %v755
  %v757 = vrot.slane %v756, 2
  %v758 = vadd.f32 %v756, %v757
  %v759 = vrot.slane %v758, 1
  %v760 = vadd.f32 %v758, %v759
  %v761 = vrcp.pop 512.0
  %v762 = vmul.f32 %v760, %v761
  %v763 = vsub.f32 %v373, %v762
  %v764 = vsub.f32 %v376, %v762
  %v765 = vsub.f32 %v381, %v762
  %v766 = vsub.f32 %v384, %v762
  %v767 = vsub.f32 %v389, %v762
  %v768 = vsub.f32 %v392, %v762
  %v769 = vsub.f32 %v397, %v762
  %v770 = vsub.f32 %v400, %v762
  %v771 = vsub.f32 %v405, %v762
  %v772 = vsub.f32 %v408, %v762
  %v773 = vsub.f32 %v413, %v762
  %v774 = vsub.f32 %v416, %v762
  %v775 = vsub.f32 %v421, %v762
  %v776 = vsub.f32 %v424, %v762
  %v777 = vsub.f32 %v429, %v762
  %v778 = vsub.f32 %v432, %v762
  %v779 = vsub.f32 %v437, %v762
  %v780 = vsub.f32 %v440, %v762
  %v781 = vsub.f32 %v445, %v762
  %v782 = vsub.f32 %v448, %v762
  %v783 = vsub.f32 %v453, %v762
  %v784 = vsub.f32 %v456, %v762
  %v785 = vsub.f32 %v461, %v762
  %v786 = vsub.f32 %v464, %v762
  %v787 = vsub.f32 %v469, %v762
  %v788 = vsub.f32 %v472, %v762
  %v789 = vsub.f32 %v477, %v762
  %v790 = vsub.f32 %v480, %v762
  %v791 = vsub.f32 %v485, %v762
  %v792 = vsub.f32 %v488, %v762
  %v793 = vsub.f32 %v493, %v762
  %v794 = vsub.f32 %v496, %v762
  %v795 = vsub.f32 %v501, %v762
  %v796 = vsub.f32 %v504, %v762
  %v797 = vsub.f32 %v509, %v762
  %v798 = vsub.f32 %v512, %v762
  %v799 = vsub.f32 %v517, %v762
  %v800 = vsub.f32 %v520, %v762
  %v801 = vsub.f32 %v525, %v762
  %v802 = vsub.f32 %v528, %v762
  %v803 = vsub.f32 %v533, %v762
  %v804 = vsub.f32 %v536, %v762
  %v805 = vsub.f32 %v541, %v762
  %v806 = vsub.f32 %v544, %v762
  %v807 = vsub.f32 %v549, %v762
  %v808 = vsub.f32 %v552, %v762
  %v809 = vsub.f32 %v557, %v762
  %v810 = vsub.f32 %v560, %v762
  %v811 = vsub.f32 %v565, %v762
  %v812 = vsub.f32 %v568, %v762
  %v813 = vsub.f32 %v573, %v762
  %v814 = vsub.f32 %v576, %v762
  %v815 = vsub.f32 %v581, %v762
  %v816 = vsub.f32 %v584, %v762
  %v817 = vsub.f32 %v589, %v762
  %v818 = vsub.f32 %v592, %v762
  %v819 = vsub.f32 %v597, %v762
  %v820 = vsub.f32 %v600, %v762
  %v821 = vsub.f32 %v605, %v762
  %v822 = vsub.f32 %v608, %v762
  %v823 = vsub.f32 %v613, %v762
  %v824 = vsub.f32 %v616, %v762
  %v825 = vsub.f32 %v621, %v762
  %v826 = vsub.f32 %v624, %v762
  %v827 = vmul.f32 %v763, %v763
  %v828 = vmul.f32 %v764, %v764
  %v829 = vmul.f32 %v765, %v765
  %v830 = vmul.f32 %v766, %v766
  %v831 = vmul.f32 %v767, %v767
  %v832 = vmul.f32 %v768, %v768
  %v833 = vmul.f32 %v769, %v769
  %v834 = vmul.f32 %v770, %v770
  %v835 = vmul.f32 %v771, %v771
  %v836 = vmul.f32 %v772, %v772
  %v837 = vmul.f32 %v773, %v773
  %v838 = vmul.f32 %v774, %v774
  %v839 = vmul.f32 %v775, %v775
  %v840 = vmul.f32 %v776, %v776
  %v841 = vmul.f32 %v777, %v777
  %v842 = vmul.f32 %v778, %v778
  %v843 = vmul.f32 %v779, %v779
  %v844 = vmul.f32 %v780, %v780
  %v845 = vmul.f32 %v781, %v781
  %v846 = vmul.f32 %v782, %v782
  %v847 = vmul.f32 %v783, %v783
  %v848 = vmul.f32 %v784, %v784
  %v849 = vmul.f32 %v785, %v785
  %v850 = vmul.f32 %v786, %v786
  %v851 = vmul.f32 %v787, %v787
  %v852 = vmul.f32 %v788, %v788
  %v853 = vmul.f32 %v789, %v789
  %v854 = vmul.f32 %v790, %v790
  %v855 = vmul.f32 %v791, %v791
  %v856 = vmul.f32 %v792, %v792
  %v857 = vmul.f32 %v793, %v793
  %v858 = vmul.f32 %v794, %v794
  %v859 = vmul.f32 %v795, %v795
  %v860 = vmul.f32 %v796, %v796
  %v861 = vmul.f32 %v797, %v797
  %v862 = vmul.f32 %v798, %v798
  %v863 = vmul.f32 %v799, %v799
  %v864 = vmul.f32 %v800, %v800
  %v865 = vmul.f32 %v801, %v801
  %v866 = vmul.f32 %v802, %v802
  %v867 = vmul.f32 %v803, %v803
  %v868 = vmul.f32 %v804, %v804
  %v869 = vmul.f32 %v805, %v805
  %v870 = vmul.f32 %v806, %v806
  %v871 = vmul.f32 %v807, %v807
  %v872 = vmul.f32 %v808, %v808
  %v873 = vmul.f32 %v809, %v809
  %v874 = vmul.f32 %v810, %v810
  %v875 = vmul.f32 %v811, %v811
  %v876 = vmul.f32 %v812, %v812
  %v877 = vmul.f32 %v813, %v813
  %v878 = vmul.f32 %v814, %v814
  %v879 = vmul.f32 %v815, %v815
  %v880 = vmul.f32 %v816, %v816
  %v881 = vmul.f32 %v817, %v817
  %v882 = vmul.f32 %v818, %v818
  %v883 = vmul.f32 %v819, %v819
  %v884 = vmul.f32 %v820, %v820
  %v885 = vmul.f32 %v821, %v821
  %v886 = vmul.f32 %v822, %v822
  %v887 = vmul.f32 %v823, %v823
  %v888 = vmul.f32 %v824, %v824
  %v889 = vmul.f32 %v825, %v825
  %v890 = vmul.f32 %v826, %v826
  %v891 = vsel %vm627, %v827, 0.0
  %v892 = vsel %vm627, %v828, 0.0
  %v893 = vadd.f32 %v891, %v892
  %v894 = vsel %vm627, %v829, 0.0
  %v895 = vadd.f32 %v893, %v894
  %v896 = vsel %vm627, %v830, 0.0
  %v897 = vadd.f32 %v895, %v896
  %v898 = vsel %vm627, %v831, 0.0
  %v899 = vadd.f32 %v897, %v898
  %v900 = vsel %vm627, %v832, 0.0
  %v901 = vadd.f32 %v899, %v900
  %v902 = vsel %vm627, %v833, 0.0
  %v903 = vadd.f32 %v901, %v902
  %v904 = vsel %vm627, %v834, 0.0
  %v905 = vadd.f32 %v903, %v904
  %v906 = vsel %vm627, %v835, 0.0
  %v907 = vadd.f32 %v905, %v906
  %v908 = vsel %vm627, %v836, 0.0
  %v909 = vadd.f32 %v907, %v908
  %v910 = vsel %vm627, %v837, 0.0
  %v911 = vadd.f32 %v909, %v910
  %v912 = vsel %vm627, %v838, 0.0
  %v913 = vadd.f32 %v911, %v912
  %v914 = vsel %vm627, %v839, 0.0
  %v915 = vadd.f32 %v913, %v914
  %v916 = vsel %vm627, %v840, 0.0
  %v917 = vadd.f32 %v915, %v916
  %v918 = vsel %vm627, %v841, 0.0
  %v919 = vadd.f32 %v917, %v918
  %v920 = vsel %vm627, %v842, 0.0
  %v921 = vadd.f32 %v919, %v920
  %v922 = vsel %vm627, %v843, 0.0
  %v923 = vadd.f32 %v921, %v922
  %v924 = vsel %vm627, %v844, 0.0
  %v925 = vadd.f32 %v923, %v924
  %v926 = vsel %vm627, %v845, 0.0
  %v927 = vadd.f32 %v925, %v926
  %v928 = vsel %vm627, %v846, 0.0
  %v929 = vadd.f32 %v927, %v928
  %v930 = vsel %vm627, %v847, 0.0
  %v931 = vadd.f32 %v929, %v930
  %v932 = vsel %vm627, %v848, 0.0
  %v933 = vadd.f32 %v931, %v932
  %v934 = vsel %vm627, %v849, 0.0
  %v935 = vadd.f32 %v933, %v934
  %v936 = vsel %vm627, %v850, 0.0
  %v937 = vadd.f32 %v935, %v936
  %v938 = vsel %vm627, %v851, 0.0
  %v939 = vadd.f32 %v937, %v938
  %v940 = vsel %vm627, %v852, 0.0
  %v941 = vadd.f32 %v939, %v940
  %v942 = vsel %vm627, %v853, 0.0
  %v943 = vadd.f32 %v941, %v942
  %v944 = vsel %vm627, %v854, 0.0
  %v945 = vadd.f32 %v943, %v944
  %v946 = vsel %vm627, %v855, 0.0
  %v947 = vadd.f32 %v945, %v946
  %v948 = vsel %vm627, %v856, 0.0
  %v949 = vadd.f32 %v947, %v948
  %v950 = vsel %vm627, %v857, 0.0
  %v951 = vadd.f32 %v949, %v950
  %v952 = vsel %vm627, %v858, 0.0
  %v953 = vadd.f32 %v951, %v952
  %v954 = vsel %vm627, %v859, 0.0
  %v955 = vadd.f32 %v953, %v954
  %v956 = vsel %vm627, %v860, 0.0
  %v957 = vadd.f32 %v955, %v956
  %v958 = vsel %vm627, %v861, 0.0
  %v959 = vadd.f32 %v957, %v958
  %v960 = vsel %vm627, %v862, 0.0
  %v961 = vadd.f32 %v959, %v960
  %v962 = vsel %vm627, %v863, 0.0
  %v963 = vadd.f32 %v961, %v962
  %v964 = vsel %vm627, %v864, 0.0
  %v965 = vadd.f32 %v963, %v964
  %v966 = vsel %vm627, %v865, 0.0
  %v967 = vadd.f32 %v965, %v966
  %v968 = vsel %vm627, %v866, 0.0
  %v969 = vadd.f32 %v967, %v968
  %v970 = vsel %vm627, %v867, 0.0
  %v971 = vadd.f32 %v969, %v970
  %v972 = vsel %vm627, %v868, 0.0
  %v973 = vadd.f32 %v971, %v972
  %v974 = vsel %vm627, %v869, 0.0
  %v975 = vadd.f32 %v973, %v974
  %v976 = vsel %vm627, %v870, 0.0
  %v977 = vadd.f32 %v975, %v976
  %v978 = vsel %vm627, %v871, 0.0
  %v979 = vadd.f32 %v977, %v978
  %v980 = vsel %vm627, %v872, 0.0
  %v981 = vadd.f32 %v979, %v980
  %v982 = vsel %vm627, %v873, 0.0
  %v983 = vadd.f32 %v981, %v982
  %v984 = vsel %vm627, %v874, 0.0
  %v985 = vadd.f32 %v983, %v984
  %v986 = vsel %vm627, %v875, 0.0
  %v987 = vadd.f32 %v985, %v986
  %v988 = vsel %vm627, %v876, 0.0
  %v989 = vadd.f32 %v987, %v988
  %v990 = vsel %vm627, %v877, 0.0
  %v991 = vadd.f32 %v989, %v990
  %v992 = vsel %vm627, %v878, 0.0
  %v993 = vadd.f32 %v991, %v992
  %v994 = vsel %vm627, %v879, 0.0
  %v995 = vadd.f32 %v993, %v994
  %v996 = vsel %vm627, %v880, 0.0
  %v997 = vadd.f32 %v995, %v996
  %v998 = vsel %vm627, %v881, 0.0
  %v999 = vadd.f32 %v997, %v998
  %v1000 = vsel %vm627, %v882, 0.0
  %v1001 = vadd.f32 %v999, %v1000
  %v1002 = vsel %vm627, %v883, 0.0
  %v1003 = vadd.f32 %v1001, %v1002
  %v1004 = vsel %vm627, %v884, 0.0
  %v1005 = vadd.f32 %v1003, %v1004
  %v1006 = vsel %vm627, %v885, 0.0
  %v1007 = vadd.f32 %v1005, %v1006
  %v1008 = vsel %vm627, %v886, 0.0
  %v1009 = vadd.f32 %v1007, %v1008
  %v1010 = vsel %vm627, %v887, 0.0
  %v1011 = vadd.f32 %v1009, %v1010
  %v1012 = vsel %vm627, %v888, 0.0
  %v1013 = vadd.f32 %v1011, %v1012
  %v1014 = vsel %vm627, %v889, 0.0
  %v1015 = vadd.f32 %v1013, %v1014
  %v1016 = vsel %vm627, %v890, 0.0
  %v1017 = vadd.f32 %v1015, %v1016
  %v1018 = vrot.slane %v1017, 4
  %v1019 = vadd.f32 %v1017, %v1018
  %v1020 = vrot.slane %v1019, 2
  %v1021 = vadd.f32 %v1019, %v1020
  %v1022 = vrot.slane %v1021, 1
  %v1023 = vadd.f32 %v1021, %v1022
  %v1024 = vmul.f32 %v1023, %v761
  %v1025 = vadd.f32 %v1024, 1e-05
  %v1026 = vrsqrt.pop %v1025
  %v1027 = vmul.f32 %v763, %v1026
  %v1028 = vmul.f32 %v764, %v1026
  %v1029 = vmul.f32 %v765, %v1026
  %v1030 = vmul.f32 %v766, %v1026
  %v1031 = vmul.f32 %v767, %v1026
  %v1032 = vmul.f32 %v768, %v1026
  %v1033 = vmul.f32 %v769, %v1026
  %v1034 = vmul.f32 %v770, %v1026
  %v1035 = vmul.f32 %v771, %v1026
  %v1036 = vmul.f32 %v772, %v1026
  %v1037 = vmul.f32 %v773, %v1026
  %v1038 = vmul.f32 %v774, %v1026
  %v1039 = vmul.f32 %v775, %v1026
  %v1040 = vmul.f32 %v776, %v1026
  %v1041 = vmul.f32 %v777, %v1026
  %v1042 = vmul.f32 %v778, %v1026
  %v1043 = vmul.f32 %v779, %v1026
  %v1044 = vmul.f32 %v780, %v1026
  %v1045 = vmul.f32 %v781, %v1026
  %v1046 = vmul.f32 %v782, %v1026
  %v1047 = vmul.f32 %v783, %v1026
  %v1048 = vmul.f32 %v784, %v1026
  %v1049 = vmul.f32 %v785, %v1026
  %v1050 = vmul.f32 %v786, %v1026
  %v1051 = vmul.f32 %v787, %v1026
  %v1052 = vmul.f32 %v788, %v1026
  %v1053 = vmul.f32 %v789, %v1026
  %v1054 = vmul.f32 %v790, %v1026
  %v1055 = vmul.f32 %v791, %v1026
  %v1056 = vmul.f32 %v792, %v1026
  %v1057 = vmul.f32 %v793, %v1026
  %v1058 = vmul.f32 %v794, %v1026
  %v1059 = vmul.f32 %v795, %v1026
  %v1060 = vmul.f32 %v796, %v1026
  %v1061 = vmul.f32 %v797, %v1026
  %v1062 = vmul.f32 %v798, %v1026
  %v1063 = vmul.f32 %v799, %v1026
  %v1064 = vmul.f32 %v800, %v1026
  %v1065 = vmul.f32 %v801, %v1026
  %v1066 = vmul.f32 %v802, %v1026
  %v1067 = vmul.f32 %v803, %v1026
  %v1068 = vmul.f32 %v804, %v1026
  %v1069 = vmul.f32 %v805, %v1026
  %v1070 = vmul.f32 %v806, %v1026
  %v1071 = vmul.f32 %v807, %v1026
  %v1072 = vmul.f32 %v808, %v1026
  %v1073 = vmul.f32 %v809, %v1026
  %v1074 = vmul.f32 %v810, %v1026
  %v1075 = vmul.f32 %v811, %v1026
  %v1076 = vmul.f32 %v812, %v1026
  %v1077 = vmul.f32 %v813, %v1026
  %v1078 = vmul.f32 %v814, %v1026
  %v1079 = vmul.f32 %v815, %v1026
  %v1080 = vmul.f32 %v816, %v1026
  %v1081 = vmul.f32 %v817, %v1026
  %v1082 = vmul.f32 %v818, %v1026
  %v1083 = vmul.f32 %v819, %v1026
  %v1084 = vmul.f32 %v820, %v1026
  %v1085 = vmul.f32 %v821, %v1026
  %v1086 = vmul.f32 %v822, %v1026
  %v1087 = vmul.f32 %v823, %v1026
  %v1088 = vmul.f32 %v824, %v1026
  %v1089 = vmul.f32 %v825, %v1026
  %v1090 = vmul.f32 %v826, %v1026
  %v1091 = vld [vmem:[%s2] sm:$0x1]
  %v1093 = vlaneseq
  %v1094 = vshrl.u32 %v1093, 7
  %v1095 = vsub.s32 0, %v1094
  %v1096 = vrot.slane %v1091, %v1095
  %v1098 = vmul.f32 %v1027, %v1096
  %v1099 = vmul.f32 %v1028, %v1096
  %v1100 = vmul.f32 %v1029, %v1096
  %v1101 = vmul.f32 %v1030, %v1096
  %v1102 = vmul.f32 %v1031, %v1096
  %v1103 = vmul.f32 %v1032, %v1096
  %v1104 = vmul.f32 %v1033, %v1096
  %v1105 = vmul.f32 %v1034, %v1096
  %v1106 = vmul.f32 %v1035, %v1096
  %v1107 = vmul.f32 %v1036, %v1096
  %v1108 = vmul.f32 %v1037, %v1096
  %v1109 = vmul.f32 %v1038, %v1096
  %v1110 = vmul.f32 %v1039, %v1096
  %v1111 = vmul.f32 %v1040, %v1096
  %v1112 = vmul.f32 %v1041, %v1096
  %v1113 = vmul.f32 %v1042, %v1096
  %v1114 = vmul.f32 %v1043, %v1096
  %v1115 = vmul.f32 %v1044, %v1096
  %v1116 = vmul.f32 %v1045, %v1096
  %v1117 = vmul.f32 %v1046, %v1096
  %v1118 = vmul.f32 %v1047, %v1096
  %v1119 = vmul.f32 %v1048, %v1096
  %v1120 = vmul.f32 %v1049, %v1096
  %v1121 = vmul.f32 %v1050, %v1096
  %v1122 = vmul.f32 %v1051, %v1096
  %v1123 = vmul.f32 %v1052, %v1096
  %v1124 = vmul.f32 %v1053, %v1096
  %v1125 = vmul.f32 %v1054, %v1096
  %v1126 = vmul.f32 %v1055, %v1096
  %v1127 = vmul.f32 %v1056, %v1096
  %v1128 = vmul.f32 %v1057, %v1096
  %v1129 = vmul.f32 %v1058, %v1096
  %v1130 = vmul.f32 %v1059, %v1096
  %v1131 = vmul.f32 %v1060, %v1096
  %v1132 = vmul.f32 %v1061, %v1096
  %v1133 = vmul.f32 %v1062, %v1096
  %v1134 = vmul.f32 %v1063, %v1096
  %v1135 = vmul.f32 %v1064, %v1096
  %v1136 = vmul.f32 %v1065, %v1096
  %v1137 = vmul.f32 %v1066, %v1096
  %v1138 = vmul.f32 %v1067, %v1096
  %v1139 = vmul.f32 %v1068, %v1096
  %v1140 = vmul.f32 %v1069, %v1096
  %v1141 = vmul.f32 %v1070, %v1096
  %v1142 = vmul.f32 %v1071, %v1096
  %v1143 = vmul.f32 %v1072, %v1096
  %v1144 = vmul.f32 %v1073, %v1096
  %v1145 = vmul.f32 %v1074, %v1096
  %v1146 = vmul.f32 %v1075, %v1096
  %v1147 = vmul.f32 %v1076, %v1096
  %v1148 = vmul.f32 %v1077, %v1096
  %v1149 = vmul.f32 %v1078, %v1096
  %v1150 = vmul.f32 %v1079, %v1096
  %v1151 = vmul.f32 %v1080, %v1096
  %v1152 = vmul.f32 %v1081, %v1096
  %v1153 = vmul.f32 %v1082, %v1096
  %v1154 = vmul.f32 %v1083, %v1096
  %v1155 = vmul.f32 %v1084, %v1096
  %v1156 = vmul.f32 %v1085, %v1096
  %v1157 = vmul.f32 %v1086, %v1096
  %v1158 = vmul.f32 %v1087, %v1096
  %v1159 = vmul.f32 %v1088, %v1096
  %v1160 = vmul.f32 %v1089, %v1096
  %v1161 = vmul.f32 %v1090, %v1096
  %v1162 = vld [vmem:[%s3] sm:$0x1]
  %v1164 = vlaneseq
  %v1165 = vshrl.u32 %v1164, 7
  %v1166 = vsub.s32 0, %v1165
  %v1167 = vrot.slane %v1162, %v1166
  %v1169 = vadd.f32 %v1098, %v1167
  %v1170 = vadd.f32 %v1099, %v1167
  %v1171 = vadd.f32 %v1100, %v1167
  %v1172 = vadd.f32 %v1101, %v1167
  %v1173 = vadd.f32 %v1102, %v1167
  %v1174 = vadd.f32 %v1103, %v1167
  %v1175 = vadd.f32 %v1104, %v1167
  %v1176 = vadd.f32 %v1105, %v1167
  %v1177 = vadd.f32 %v1106, %v1167
  %v1178 = vadd.f32 %v1107, %v1167
  %v1179 = vadd.f32 %v1108, %v1167
  %v1180 = vadd.f32 %v1109, %v1167
  %v1181 = vadd.f32 %v1110, %v1167
  %v1182 = vadd.f32 %v1111, %v1167
  %v1183 = vadd.f32 %v1112, %v1167
  %v1184 = vadd.f32 %v1113, %v1167
  %v1185 = vadd.f32 %v1114, %v1167
  %v1186 = vadd.f32 %v1115, %v1167
  %v1187 = vadd.f32 %v1116, %v1167
  %v1188 = vadd.f32 %v1117, %v1167
  %v1189 = vadd.f32 %v1118, %v1167
  %v1190 = vadd.f32 %v1119, %v1167
  %v1191 = vadd.f32 %v1120, %v1167
  %v1192 = vadd.f32 %v1121, %v1167
  %v1193 = vadd.f32 %v1122, %v1167
  %v1194 = vadd.f32 %v1123, %v1167
  %v1195 = vadd.f32 %v1124, %v1167
  %v1196 = vadd.f32 %v1125, %v1167
  %v1197 = vadd.f32 %v1126, %v1167
  %v1198 = vadd.f32 %v1127, %v1167
  %v1199 = vadd.f32 %v1128, %v1167
  %v1200 = vadd.f32 %v1129, %v1167
  %v1201 = vadd.f32 %v1130, %v1167
  %v1202 = vadd.f32 %v1131, %v1167
  %v1203 = vadd.f32 %v1132, %v1167
  %v1204 = vadd.f32 %v1133, %v1167
  %v1205 = vadd.f32 %v1134, %v1167
  %v1206 = vadd.f32 %v1135, %v1167
  %v1207 = vadd.f32 %v1136, %v1167
  %v1208 = vadd.f32 %v1137, %v1167
  %v1209 = vadd.f32 %v1138, %v1167
  %v1210 = vadd.f32 %v1139, %v1167
  %v1211 = vadd.f32 %v1140, %v1167
  %v1212 = vadd.f32 %v1141, %v1167
  %v1213 = vadd.f32 %v1142, %v1167
  %v1214 = vadd.f32 %v1143, %v1167
  %v1215 = vadd.f32 %v1144, %v1167
  %v1216 = vadd.f32 %v1145, %v1167
  %v1217 = vadd.f32 %v1146, %v1167
  %v1218 = vadd.f32 %v1147, %v1167
  %v1219 = vadd.f32 %v1148, %v1167
  %v1220 = vadd.f32 %v1149, %v1167
  %v1221 = vadd.f32 %v1150, %v1167
  %v1222 = vadd.f32 %v1151, %v1167
  %v1223 = vadd.f32 %v1152, %v1167
  %v1224 = vadd.f32 %v1153, %v1167
  %v1225 = vadd.f32 %v1154, %v1167
  %v1226 = vadd.f32 %v1155, %v1167
  %v1227 = vadd.f32 %v1156, %v1167
  %v1228 = vadd.f32 %v1157, %v1167
  %v1229 = vadd.f32 %v1158, %v1167
  %v1230 = vadd.f32 %v1159, %v1167
  %v1231 = vadd.f32 %v1160, %v1167
  %v1232 = vadd.f32 %v1161, %v1167
  %vm1233 = vcmp.ge.f32.partialorder %v1169, 0.0
  %vm1234 = vcmp.ge.f32.partialorder %v1170, 0.0
  %vm1235 = vcmp.ge.f32.partialorder %v1171, 0.0
  %vm1236 = vcmp.ge.f32.partialorder %v1172, 0.0
  %vm1237 = vcmp.ge.f32.partialorder %v1173, 0.0
  %vm1238 = vcmp.ge.f32.partialorder %v1174, 0.0
  %vm1239 = vcmp.ge.f32.partialorder %v1175, 0.0
  %vm1240 = vcmp.ge.f32.partialorder %v1176, 0.0
  %vm1241 = vcmp.ge.f32.partialorder %v1177, 0.0
  %vm1242 = vcmp.ge.f32.partialorder %v1178, 0.0
  %vm1243 = vcmp.ge.f32.partialorder %v1179, 0.0
  %vm1244 = vcmp.ge.f32.partialorder %v1180, 0.0
  %vm1245 = vcmp.ge.f32.partialorder %v1181, 0.0
  %vm1246 = vcmp.ge.f32.partialorder %v1182, 0.0
  %vm1247 = vcmp.ge.f32.partialorder %v1183, 0.0
  %vm1248 = vcmp.ge.f32.partialorder %v1184, 0.0
  %vm1249 = vcmp.ge.f32.partialorder %v1185, 0.0
  %vm1250 = vcmp.ge.f32.partialorder %v1186, 0.0
  %vm1251 = vcmp.ge.f32.partialorder %v1187, 0.0
  %vm1252 = vcmp.ge.f32.partialorder %v1188, 0.0
  %vm1253 = vcmp.ge.f32.partialorder %v1189, 0.0
  %vm1254 = vcmp.ge.f32.partialorder %v1190, 0.0
  %vm1255 = vcmp.ge.f32.partialorder %v1191, 0.0
  %vm1256 = vcmp.ge.f32.partialorder %v1192, 0.0
  %vm1257 = vcmp.ge.f32.partialorder %v1193, 0.0
  %vm1258 = vcmp.ge.f32.partialorder %v1194, 0.0
  %vm1259 = vcmp.ge.f32.partialorder %v1195, 0.0
  %vm1260 = vcmp.ge.f32.partialorder %v1196, 0.0
  %vm1261 = vcmp.ge.f32.partialorder %v1197, 0.0
  %vm1262 = vcmp.ge.f32.partialorder %v1198, 0.0
  %vm1263 = vcmp.ge.f32.partialorder %v1199, 0.0
  %vm1264 = vcmp.ge.f32.partialorder %v1200, 0.0
  %vm1265 = vcmp.ge.f32.partialorder %v1201, 0.0
  %vm1266 = vcmp.ge.f32.partialorder %v1202, 0.0
  %vm1267 = vcmp.ge.f32.partialorder %v1203, 0.0
  %vm1268 = vcmp.ge.f32.partialorder %v1204, 0.0
  %vm1269 = vcmp.ge.f32.partialorder %v1205, 0.0
  %vm1270 = vcmp.ge.f32.partialorder %v1206, 0.0
  %vm1271 = vcmp.ge.f32.partialorder %v1207, 0.0
  %vm1272 = vcmp.ge.f32.partialorder %v1208, 0.0
  %vm1273 = vcmp.ge.f32.partialorder %v1209, 0.0
  %vm1274 = vcmp.ge.f32.partialorder %v1210, 0.0
  %vm1275 = vcmp.ge.f32.partialorder %v1211, 0.0
  %vm1276 = vcmp.ge.f32.partialorder %v1212, 0.0
  %vm1277 = vcmp.ge.f32.partialorder %v1213, 0.0
  %vm1278 = vcmp.ge.f32.partialorder %v1214, 0.0
  %vm1279 = vcmp.ge.f32.partialorder %v1215, 0.0
  %vm1280 = vcmp.ge.f32.partialorder %v1216, 0.0
  %vm1281 = vcmp.ge.f32.partialorder %v1217, 0.0
  %vm1282 = vcmp.ge.f32.partialorder %v1218, 0.0
  %vm1283 = vcmp.ge.f32.partialorder %v1219, 0.0
  %vm1284 = vcmp.ge.f32.partialorder %v1220, 0.0
  %vm1285 = vcmp.ge.f32.partialorder %v1221, 0.0
  %vm1286 = vcmp.ge.f32.partialorder %v1222, 0.0
  %vm1287 = vcmp.ge.f32.partialorder %v1223, 0.0
  %vm1288 = vcmp.ge.f32.partialorder %v1224, 0.0
  %vm1289 = vcmp.ge.f32.partialorder %v1225, 0.0
  %vm1290 = vcmp.ge.f32.partialorder %v1226, 0.0
  %vm1291 = vcmp.ge.f32.partialorder %v1227, 0.0
  %vm1292 = vcmp.ge.f32.partialorder %v1228, 0.0
  %vm1293 = vcmp.ge.f32.partialorder %v1229, 0.0
  %vm1294 = vcmp.ge.f32.partialorder %v1230, 0.0
  %vm1295 = vcmp.ge.f32.partialorder %v1231, 0.0
  %vm1296 = vcmp.ge.f32.partialorder %v1232, 0.0
  %v1297 = vmul.f32 %v1169, 0.2
  %v1298 = vmul.f32 %v1170, 0.2
  %v1299 = vmul.f32 %v1171, 0.2
  %v1300 = vmul.f32 %v1172, 0.2
  %v1301 = vmul.f32 %v1173, 0.2
  %v1302 = vmul.f32 %v1174, 0.2
  %v1303 = vmul.f32 %v1175, 0.2
  %v1304 = vmul.f32 %v1176, 0.2
  %v1305 = vmul.f32 %v1177, 0.2
  %v1306 = vmul.f32 %v1178, 0.2
  %v1307 = vmul.f32 %v1179, 0.2
  %v1308 = vmul.f32 %v1180, 0.2
  %v1309 = vmul.f32 %v1181, 0.2
  %v1310 = vmul.f32 %v1182, 0.2
  %v1311 = vmul.f32 %v1183, 0.2
  %v1312 = vmul.f32 %v1184, 0.2
  %v1313 = vmul.f32 %v1185, 0.2
  %v1314 = vmul.f32 %v1186, 0.2
  %v1315 = vmul.f32 %v1187, 0.2
  %v1316 = vmul.f32 %v1188, 0.2
  %v1317 = vmul.f32 %v1189, 0.2
  %v1318 = vmul.f32 %v1190, 0.2
  %v1319 = vmul.f32 %v1191, 0.2
  %v1320 = vmul.f32 %v1192, 0.2
  %v1321 = vmul.f32 %v1193, 0.2
  %v1322 = vmul.f32 %v1194, 0.2
  %v1323 = vmul.f32 %v1195, 0.2
  %v1324 = vmul.f32 %v1196, 0.2
  %v1325 = vmul.f32 %v1197, 0.2
  %v1326 = vmul.f32 %v1198, 0.2
  %v1327 = vmul.f32 %v1199, 0.2
  %v1328 = vmul.f32 %v1200, 0.2
  %v1329 = vmul.f32 %v1201, 0.2
  %v1330 = vmul.f32 %v1202, 0.2
  %v1331 = vmul.f32 %v1203, 0.2
  %v1332 = vmul.f32 %v1204, 0.2
  %v1333 = vmul.f32 %v1205, 0.2
  %v1334 = vmul.f32 %v1206, 0.2
  %v1335 = vmul.f32 %v1207, 0.2
  %v1336 = vmul.f32 %v1208, 0.2
  %v1337 = vmul.f32 %v1209, 0.2
  %v1338 = vmul.f32 %v1210, 0.2
  %v1339 = vmul.f32 %v1211, 0.2
  %v1340 = vmul.f32 %v1212, 0.2
  %v1341 = vmul.f32 %v1213, 0.2
  %v1342 = vmul.f32 %v1214, 0.2
  %v1343 = vmul.f32 %v1215, 0.2
  %v1344 = vmul.f32 %v1216, 0.2
  %v1345 = vmul.f32 %v1217, 0.2
  %v1346 = vmul.f32 %v1218, 0.2
  %v1347 = vmul.f32 %v1219, 0.2
  %v1348 = vmul.f32 %v1220, 0.2
  %v1349 = vmul.f32 %v1221, 0.2
  %v1350 = vmul.f32 %v1222, 0.2
  %v1351 = vmul.f32 %v1223, 0.2
  %v1352 = vmul.f32 %v1224, 0.2
  %v1353 = vmul.f32 %v1225, 0.2
  %v1354 = vmul.f32 %v1226, 0.2
  %v1355 = vmul.f32 %v1227, 0.2
  %v1356 = vmul.f32 %v1228, 0.2
  %v1357 = vmul.f32 %v1229, 0.2
  %v1358 = vmul.f32 %v1230, 0.2
  %v1359 = vmul.f32 %v1231, 0.2
  %v1360 = vmul.f32 %v1232, 0.2
  %v1361 = vsel %vm1233, %v1169, %v1297
  %v1362 = vsel %vm1234, %v1170, %v1298
  %v1363 = vsel %vm1235, %v1171, %v1299
  %v1364 = vsel %vm1236, %v1172, %v1300
  %v1365 = vsel %vm1237, %v1173, %v1301
  %v1366 = vsel %vm1238, %v1174, %v1302
  %v1367 = vsel %vm1239, %v1175, %v1303
  %v1368 = vsel %vm1240, %v1176, %v1304
  %v1369 = vsel %vm1241, %v1177, %v1305
  %v1370 = vsel %vm1242, %v1178, %v1306
  %v1371 = vsel %vm1243, %v1179, %v1307
  %v1372 = vsel %vm1244, %v1180, %v1308
  %v1373 = vsel %vm1245, %v1181, %v1309
  %v1374 = vsel %vm1246, %v1182, %v1310
  %v1375 = vsel %vm1247, %v1183, %v1311
  %v1376 = vsel %vm1248, %v1184, %v1312
  %v1377 = vsel %vm1249, %v1185, %v1313
  %v1378 = vsel %vm1250, %v1186, %v1314
  %v1379 = vsel %vm1251, %v1187, %v1315
  %v1380 = vsel %vm1252, %v1188, %v1316
  %v1381 = vsel %vm1253, %v1189, %v1317
  %v1382 = vsel %vm1254, %v1190, %v1318
  %v1383 = vsel %vm1255, %v1191, %v1319
  %v1384 = vsel %vm1256, %v1192, %v1320
  %v1385 = vsel %vm1257, %v1193, %v1321
  %v1386 = vsel %vm1258, %v1194, %v1322
  %v1387 = vsel %vm1259, %v1195, %v1323
  %v1388 = vsel %vm1260, %v1196, %v1324
  %v1389 = vsel %vm1261, %v1197, %v1325
  %v1390 = vsel %vm1262, %v1198, %v1326
  %v1391 = vsel %vm1263, %v1199, %v1327
  %v1392 = vsel %vm1264, %v1200, %v1328
  %v1393 = vsel %vm1265, %v1201, %v1329
  %v1394 = vsel %vm1266, %v1202, %v1330
  %v1395 = vsel %vm1267, %v1203, %v1331
  %v1396 = vsel %vm1268, %v1204, %v1332
  %v1397 = vsel %vm1269, %v1205, %v1333
  %v1398 = vsel %vm1270, %v1206, %v1334
  %v1399 = vsel %vm1271, %v1207, %v1335
  %v1400 = vsel %vm1272, %v1208, %v1336
  %v1401 = vsel %vm1273, %v1209, %v1337
  %v1402 = vsel %vm1274, %v1210, %v1338
  %v1403 = vsel %vm1275, %v1211, %v1339
  %v1404 = vsel %vm1276, %v1212, %v1340
  %v1405 = vsel %vm1277, %v1213, %v1341
  %v1406 = vsel %vm1278, %v1214, %v1342
  %v1407 = vsel %vm1279, %v1215, %v1343
  %v1408 = vsel %vm1280, %v1216, %v1344
  %v1409 = vsel %vm1281, %v1217, %v1345
  %v1410 = vsel %vm1282, %v1218, %v1346
  %v1411 = vsel %vm1283, %v1219, %v1347
  %v1412 = vsel %vm1284, %v1220, %v1348
  %v1413 = vsel %vm1285, %v1221, %v1349
  %v1414 = vsel %vm1286, %v1222, %v1350
  %v1415 = vsel %vm1287, %v1223, %v1351
  %v1416 = vsel %vm1288, %v1224, %v1352
  %v1417 = vsel %vm1289, %v1225, %v1353
  %v1418 = vsel %vm1290, %v1226, %v1354
  %v1419 = vsel %vm1291, %v1227, %v1355
  %v1420 = vsel %vm1292, %v1228, %v1356
  %v1421 = vsel %vm1293, %v1229, %v1357
  %v1422 = vsel %vm1294, %v1230, %v1358
  %v1423 = vsel %vm1295, %v1231, %v1359
  %v1424 = vsel %vm1296, %v1232, %v1360
  %v1425 = vpack.c.bf16 %v1362, %v1361
  %v1426 = vpack.c.bf16 %v1364, %v1363
  %v1427 = vpack.c.bf16 %v1366, %v1365
  %v1428 = vpack.c.bf16 %v1368, %v1367
  %v1429 = vpack.c.bf16 %v1370, %v1369
  %v1430 = vpack.c.bf16 %v1372, %v1371
  %v1431 = vpack.c.bf16 %v1374, %v1373
  %v1432 = vpack.c.bf16 %v1376, %v1375
  %v1433 = vpack.c.bf16 %v1378, %v1377
  %v1434 = vpack.c.bf16 %v1380, %v1379
  %v1435 = vpack.c.bf16 %v1382, %v1381
  %v1436 = vpack.c.bf16 %v1384, %v1383
  %v1437 = vpack.c.bf16 %v1386, %v1385
  %v1438 = vpack.c.bf16 %v1388, %v1387
  %v1439 = vpack.c.bf16 %v1390, %v1389
  %v1440 = vpack.c.bf16 %v1392, %v1391
  %v1441 = vpack.c.bf16 %v1394, %v1393
  %v1442 = vpack.c.bf16 %v1396, %v1395
  %v1443 = vpack.c.bf16 %v1398, %v1397
  %v1444 = vpack.c.bf16 %v1400, %v1399
  %v1445 = vpack.c.bf16 %v1402, %v1401
  %v1446 = vpack.c.bf16 %v1404, %v1403
  %v1447 = vpack.c.bf16 %v1406, %v1405
  %v1448 = vpack.c.bf16 %v1408, %v1407
  %v1449 = vpack.c.bf16 %v1410, %v1409
  %v1450 = vpack.c.bf16 %v1412, %v1411
  %v1451 = vpack.c.bf16 %v1414, %v1413
  %v1452 = vpack.c.bf16 %v1416, %v1415
  %v1453 = vpack.c.bf16 %v1418, %v1417
  %v1454 = vpack.c.bf16 %v1420, %v1419
  %v1455 = vpack.c.bf16 %v1422, %v1421
  %v1456 = vpack.c.bf16 %v1424, %v1423
  %v1489 = vunpack.c.l.b16 %v1425
  %v1490 = vunpack.c.h.b16 %v1425
  %v1491 = vunpack.c.l.b16 %v1426
  %v1492 = vunpack.c.h.b16 %v1426
  %v1493 = vunpack.c.l.b16 %v1427
  %v1494 = vunpack.c.h.b16 %v1427
  %v1495 = vunpack.c.l.b16 %v1428
  %v1496 = vunpack.c.h.b16 %v1428
  %v1497 = vunpack.c.l.b16 %v1429
  %v1498 = vunpack.c.h.b16 %v1429
  %v1499 = vunpack.c.l.b16 %v1430
  %v1500 = vunpack.c.h.b16 %v1430
  %v1501 = vunpack.c.l.b16 %v1431
  %v1502 = vunpack.c.h.b16 %v1431
  %v1503 = vunpack.c.l.b16 %v1432
  %v1504 = vunpack.c.h.b16 %v1432
  %v1505 = vunpack.c.l.b16 %v1433
  %v1506 = vunpack.c.h.b16 %v1433
  %v1507 = vunpack.c.l.b16 %v1434
  %v1508 = vunpack.c.h.b16 %v1434
  %v1509 = vunpack.c.l.b16 %v1435
  %v1510 = vunpack.c.h.b16 %v1435
  %v1511 = vunpack.c.l.b16 %v1436
  %v1512 = vunpack.c.h.b16 %v1436
  %v1513 = vunpack.c.l.b16 %v1437
  %v1514 = vunpack.c.h.b16 %v1437
  %v1515 = vunpack.c.l.b16 %v1438
  %v1516 = vunpack.c.h.b16 %v1438
  %v1517 = vunpack.c.l.b16 %v1439
  %v1518 = vunpack.c.h.b16 %v1439
  %v1519 = vunpack.c.l.b16 %v1440
  %v1520 = vunpack.c.h.b16 %v1440
  %v1521 = vunpack.c.l.b16 %v1441
  %v1522 = vunpack.c.h.b16 %v1441
  %v1523 = vunpack.c.l.b16 %v1442
  %v1524 = vunpack.c.h.b16 %v1442
  %v1525 = vunpack.c.l.b16 %v1443
  %v1526 = vunpack.c.h.b16 %v1443
  %v1527 = vunpack.c.l.b16 %v1444
  %v1528 = vunpack.c.h.b16 %v1444
  %v1529 = vunpack.c.l.b16 %v1445
  %v1530 = vunpack.c.h.b16 %v1445
  %v1531 = vunpack.c.l.b16 %v1446
  %v1532 = vunpack.c.h.b16 %v1446
  %v1533 = vunpack.c.l.b16 %v1447
  %v1534 = vunpack.c.h.b16 %v1447
  %v1535 = vunpack.c.l.b16 %v1448
  %v1536 = vunpack.c.h.b16 %v1448
  %v1537 = vunpack.c.l.b16 %v1449
  %v1538 = vunpack.c.h.b16 %v1449
  %v1539 = vunpack.c.l.b16 %v1450
  %v1540 = vunpack.c.h.b16 %v1450
  %v1541 = vunpack.c.l.b16 %v1451
  %v1542 = vunpack.c.h.b16 %v1451
  %v1543 = vunpack.c.l.b16 %v1452
  %v1544 = vunpack.c.h.b16 %v1452
  %v1545 = vunpack.c.l.b16 %v1453
  %v1546 = vunpack.c.h.b16 %v1453
  %v1547 = vunpack.c.l.b16 %v1454
  %v1548 = vunpack.c.h.b16 %v1454
  %v1549 = vunpack.c.l.b16 %v1455
  %v1550 = vunpack.c.h.b16 %v1455
  %v1551 = vunpack.c.l.b16 %v1456
  %v1552 = vunpack.c.h.b16 %v1456
  %v1553 = vpack.c.b16 %v1489, %v1489
  %v1554 = vpack.c.b16 %v1490, %v1490
  %v1555 = vpack.c.b16 %v1491, %v1491
  %v1556 = vpack.c.b16 %v1492, %v1492
  %v1557 = vpack.c.b16 %v1493, %v1493
  %v1558 = vpack.c.b16 %v1494, %v1494
  %v1559 = vpack.c.b16 %v1495, %v1495
  %v1560 = vpack.c.b16 %v1496, %v1496
  %v1561 = vpack.c.b16 %v1497, %v1497
  %v1562 = vpack.c.b16 %v1498, %v1498
  %v1563 = vpack.c.b16 %v1499, %v1499
  %v1564 = vpack.c.b16 %v1500, %v1500
  %v1565 = vpack.c.b16 %v1501, %v1501
  %v1566 = vpack.c.b16 %v1502, %v1502
  %v1567 = vpack.c.b16 %v1503, %v1503
  %v1568 = vpack.c.b16 %v1504, %v1504
  %v1569 = vpack.c.b16 %v1505, %v1505
  %v1570 = vpack.c.b16 %v1506, %v1506
  %v1571 = vpack.c.b16 %v1507, %v1507
  %v1572 = vpack.c.b16 %v1508, %v1508
  %v1573 = vpack.c.b16 %v1509, %v1509
  %v1574 = vpack.c.b16 %v1510, %v1510
  %v1575 = vpack.c.b16 %v1511, %v1511
  %v1576 = vpack.c.b16 %v1512, %v1512
  %v1577 = vpack.c.b16 %v1513, %v1513
  %v1578 = vpack.c.b16 %v1514, %v1514
  %v1579 = vpack.c.b16 %v1515, %v1515
  %v1580 = vpack.c.b16 %v1516, %v1516
  %v1581 = vpack.c.b16 %v1517, %v1517
  %v1582 = vpack.c.b16 %v1518, %v1518
  %v1583 = vpack.c.b16 %v1519, %v1519
  %v1584 = vpack.c.b16 %v1520, %v1520
  %v1585 = vpack.c.b16 %v1521, %v1521
  %v1586 = vpack.c.b16 %v1522, %v1522
  %v1587 = vpack.c.b16 %v1523, %v1523
  %v1588 = vpack.c.b16 %v1524, %v1524
  %v1589 = vpack.c.b16 %v1525, %v1525
  %v1590 = vpack.c.b16 %v1526, %v1526
  %v1591 = vpack.c.b16 %v1527, %v1527
  %v1592 = vpack.c.b16 %v1528, %v1528
  %v1593 = vpack.c.b16 %v1529, %v1529
  %v1594 = vpack.c.b16 %v1530, %v1530
  %v1595 = vpack.c.b16 %v1531, %v1531
  %v1596 = vpack.c.b16 %v1532, %v1532
  %v1597 = vpack.c.b16 %v1533, %v1533
  %v1598 = vpack.c.b16 %v1534, %v1534
  %v1599 = vpack.c.b16 %v1535, %v1535
  %v1600 = vpack.c.b16 %v1536, %v1536
  %v1601 = vpack.c.b16 %v1537, %v1537
  %v1602 = vpack.c.b16 %v1538, %v1538
  %v1603 = vpack.c.b16 %v1539, %v1539
  %v1604 = vpack.c.b16 %v1540, %v1540
  %v1605 = vpack.c.b16 %v1541, %v1541
  %v1606 = vpack.c.b16 %v1542, %v1542
  %v1607 = vpack.c.b16 %v1543, %v1543
  %v1608 = vpack.c.b16 %v1544, %v1544
  %v1609 = vpack.c.b16 %v1545, %v1545
  %v1610 = vpack.c.b16 %v1546, %v1546
  %v1611 = vpack.c.b16 %v1547, %v1547
  %v1612 = vpack.c.b16 %v1548, %v1548
  %v1613 = vpack.c.b16 %v1549, %v1549
  %v1614 = vpack.c.b16 %v1550, %v1550
  %v1615 = vpack.c.b16 %v1551, %v1551
  %v1616 = vpack.c.b16 %v1552, %v1552
  %vm1681 = vcmask 125952
  %1682 = vst.msk [vmem:[%s4] sm:$0xf] %vm1681, %v1553
  %1683 = vst.msk [vmem:[%s4 + $0x4] sm:$0xf] %vm1681, %v1554
  %1684 = vst.msk [vmem:[%s4 + $0x8] sm:$0xf] %vm1681, %v1555
  %1685 = vst.msk [vmem:[%s4 + $0xc] sm:$0xf] %vm1681, %v1556
  %1686 = vst.msk [vmem:[%s4 + $0x10] sm:$0xf] %vm1681, %v1557
  %1687 = vst.msk [vmem:[%s4 + $0x14] sm:$0xf] %vm1681, %v1558
  %1688 = vst.msk [vmem:[%s4 + $0x18] sm:$0xf] %vm1681, %v1559
  %1689 = vst.msk [vmem:[%s4 + $0x1c] sm:$0xf] %vm1681, %v1560
  %1690 = vst.msk [vmem:[%s4 + $0x20] sm:$0xf] %vm1681, %v1561
  %1691 = vst.msk [vmem:[%s4 + $0x24] sm:$0xf] %vm1681, %v1562
  %1692 = vst.msk [vmem:[%s4 + $0x28] sm:$0xf] %vm1681, %v1563
  %1693 = vst.msk [vmem:[%s4 + $0x2c] sm:$0xf] %vm1681, %v1564
  %1694 = vst.msk [vmem:[%s4 + $0x30] sm:$0xf] %vm1681, %v1565
  %1695 = vst.msk [vmem:[%s4 + $0x34] sm:$0xf] %vm1681, %v1566
  %1696 = vst.msk [vmem:[%s4 + $0x38] sm:$0xf] %vm1681, %v1567
  %1697 = vst.msk [vmem:[%s4 + $0x3c] sm:$0xf] %vm1681, %v1568
  %1698 = vst.msk [vmem:[%s4 + $0x40] sm:$0xf] %vm1681, %v1569
  %1699 = vst.msk [vmem:[%s4 + $0x44] sm:$0xf] %vm1681, %v1570
  %1700 = vst.msk [vmem:[%s4 + $0x48] sm:$0xf] %vm1681, %v1571
  %1701 = vst.msk [vmem:[%s4 + $0x4c] sm:$0xf] %vm1681, %v1572
  %1702 = vst.msk [vmem:[%s4 + $0x50] sm:$0xf] %vm1681, %v1573
  %1703 = vst.msk [vmem:[%s4 + $0x54] sm:$0xf] %vm1681, %v1574
  %1704 = vst.msk [vmem:[%s4 + $0x58] sm:$0xf] %vm1681, %v1575
  %1705 = vst.msk [vmem:[%s4 + $0x5c] sm:$0xf] %vm1681, %v1576
  %1706 = vst.msk [vmem:[%s4 + $0x60] sm:$0xf] %vm1681, %v1577
  %1707 = vst.msk [vmem:[%s4 + $0x64] sm:$0xf] %vm1681, %v1578
  %1708 = vst.msk [vmem:[%s4 + $0x68] sm:$0xf] %vm1681, %v1579
  %1709 = vst.msk [vmem:[%s4 + $0x6c] sm:$0xf] %vm1681, %v1580
  %1710 = vst.msk [vmem:[%s4 + $0x70] sm:$0xf] %vm1681, %v1581
  %1711 = vst.msk [vmem:[%s4 + $0x74] sm:$0xf] %vm1681, %v1582
  %1712 = vst.msk [vmem:[%s4 + $0x78] sm:$0xf] %vm1681, %v1583
  %1713 = vst.msk [vmem:[%s4 + $0x7c] sm:$0xf] %vm1681, %v1584
  %1714 = vst.msk [vmem:[%s4 + $0x80] sm:$0xf] %vm1681, %v1585
  %1715 = vst.msk [vmem:[%s4 + $0x84] sm:$0xf] %vm1681, %v1586
  %1716 = vst.msk [vmem:[%s4 + $0x88] sm:$0xf] %vm1681, %v1587
  %1717 = vst.msk [vmem:[%s4 + $0x8c] sm:$0xf] %vm1681, %v1588
  %1718 = vst.msk [vmem:[%s4 + $0x90] sm:$0xf] %vm1681, %v1589
  %1719 = vst.msk [vmem:[%s4 + $0x94] sm:$0xf] %vm1681, %v1590
  %1720 = vst.msk [vmem:[%s4 + $0x98] sm:$0xf] %vm1681, %v1591
  %1721 = vst.msk [vmem:[%s4 + $0x9c] sm:$0xf] %vm1681, %v1592
  %1722 = vst.msk [vmem:[%s4 + $0xa0] sm:$0xf] %vm1681, %v1593
  %1723 = vst.msk [vmem:[%s4 + $0xa4] sm:$0xf] %vm1681, %v1594
  %1724 = vst.msk [vmem:[%s4 + $0xa8] sm:$0xf] %vm1681, %v1595
  %1725 = vst.msk [vmem:[%s4 + $0xac] sm:$0xf] %vm1681, %v1596
  %1726 = vst.msk [vmem:[%s4 + $0xb0] sm:$0xf] %vm1681, %v1597
  %1727 = vst.msk [vmem:[%s4 + $0xb4] sm:$0xf] %vm1681, %v1598
  %1728 = vst.msk [vmem:[%s4 + $0xb8] sm:$0xf] %vm1681, %v1599
  %1729 = vst.msk [vmem:[%s4 + $0xbc] sm:$0xf] %vm1681, %v1600
  %1730 = vst.msk [vmem:[%s4 + $0xc0] sm:$0xf] %vm1681, %v1601
  %1731 = vst.msk [vmem:[%s4 + $0xc4] sm:$0xf] %vm1681, %v1602
  %1732 = vst.msk [vmem:[%s4 + $0xc8] sm:$0xf] %vm1681, %v1603
  %1733 = vst.msk [vmem:[%s4 + $0xcc] sm:$0xf] %vm1681, %v1604
  %1734 = vst.msk [vmem:[%s4 + $0xd0] sm:$0xf] %vm1681, %v1605
  %1735 = vst.msk [vmem:[%s4 + $0xd4] sm:$0xf] %vm1681, %v1606
  %1736 = vst.msk [vmem:[%s4 + $0xd8] sm:$0xf] %vm1681, %v1607
  %1737 = vst.msk [vmem:[%s4 + $0xdc] sm:$0xf] %vm1681, %v1608
  %1738 = vst.msk [vmem:[%s4 + $0xe0] sm:$0xf] %vm1681, %v1609
  %1739 = vst.msk [vmem:[%s4 + $0xe4] sm:$0xf] %vm1681, %v1610
  %1740 = vst.msk [vmem:[%s4 + $0xe8] sm:$0xf] %vm1681, %v1611
  %1741 = vst.msk [vmem:[%s4 + $0xec] sm:$0xf] %vm1681, %v1612
  %1742 = vst.msk [vmem:[%s4 + $0xf0] sm:$0xf] %vm1681, %v1613
  %1743 = vst.msk [vmem:[%s4 + $0xf4] sm:$0xf] %vm1681, %v1614
  %1744 = vst.msk [vmem:[%s4 + $0xf8] sm:$0xf] %vm1681, %v1615
  %1745 = vst.msk [vmem:[%s4 + $0xfc] sm:$0xf] %vm1681, %v1616
  // Predicated region
  $region18: #{discriminator_forward.6} parent=0 // pred_check
    _
  $region19: #{discriminator_forward.6} parent=0 // pred_check_branch
    %1747 = sbr.rel (0) target = $region21
  $region20: #{discriminator_forward.6} parent=0 // pred_region
    _
  $region21: #{discriminator_forward.6} parent=0 // pred_fallthru
    _
  // Predicated region
  $region22: #{discriminator_forward.6} parent=0 // pred_check
    _
  $region23: #{discriminator_forward.6} parent=0 // pred_check_branch
    %1749 = sbr.rel (0) target = $region25
  $region24: #{discriminator_forward.6} parent=0 // pred_region
    _
  $region25: #{discriminator_forward.6} parent=0 // pred_fallthru
    _

// kernel: discriminator_forward.7
$region0: #{discriminator_forward.7}
  #allocation0 [shape = 'u32[]', space=smem, size = 0x4, offset = 0x4, fixed_abs, tag = 'smem constant byte address 0x4 - core index']
  #allocation1 [shape = 'u32[144,128]{1,0:T(1,128)}', space=vmem, size = 0x12000, scoped, tag = 'internal scratch']
  %s0 = inlined_call_operand.vmem [shape: bf16[128,256], index: 0, kind: input, shape index: {}]
  %s1 = inlined_call_operand.vmem [shape: bf16[256,32], index: 1, kind: input, shape index: {}]
  %s2 = inlined_call_operand.vmem [shape: f32[1,32], index: 2, kind: input, shape index: {}]
  %s3 = inlined_call_operand.vmem [shape: f32[1,32], index: 3, kind: input, shape index: {}]
  %s4 = inlined_call_operand.vmem [shape: bf16[128,32], index: 4, kind: output, shape index: {}]
  %s5 = sld [smem:[#allocation0]]
  $region26: #{discriminator_forward.7} parent=0
    _
  %s7 = ssub.s32 1, %s5
  %s8 = scalar_select 0, %s7, %s5
  // Predicated region
  $region2: #{discriminator_forward.7} parent=0 // pred_check
    _
  $region3: #{discriminator_forward.7} parent=0 // pred_check_branch
    %10 = sbr.rel (0) target = $region5
  $region4: #{discriminator_forward.7} parent=0 // pred_region
    _
  $region5: #{discriminator_forward.7} parent=0 // pred_fallthru
    _
  // Predicated region
  $region6: #{discriminator_forward.7} parent=0 // pred_check
    _
  $region7: #{discriminator_forward.7} parent=0 // pred_check_branch
    %12 = sbr.rel (0) target = $region9
  $region8: #{discriminator_forward.7} parent=0 // pred_region
    _
  $region9: #{discriminator_forward.7} parent=0 // pred_fallthru
    _
  // Predicated region
  $region10: #{discriminator_forward.7} parent=0 // pred_check
    _
  $region11: #{discriminator_forward.7} parent=0 // pred_check_branch
    %14 = sbr.rel (0) target = $region13
  $region12: #{discriminator_forward.7} parent=0 // pred_region
    _
  $region13: #{discriminator_forward.7} parent=0 // pred_fallthru
    _
  // Predicated region
  $region14: #{discriminator_forward.7} parent=0 // pred_check
    _
  $region15: #{discriminator_forward.7} parent=0 // pred_check_branch
    %16 = sbr.rel (0) target = $region17
  $region16: #{discriminator_forward.7} parent=0 // pred_region
    _
  $region17: #{discriminator_forward.7} parent=0 // pred_fallthru
    _
  %v18 = vld [vmem:[%s0] sm:$0xff]
  %v19 = vld [vmem:[%s0 + $0x8] sm:$0xff]
  %v20 = vld [vmem:[%s0 + $0x10] sm:$0xff]
  %v21 = vld [vmem:[%s0 + $0x18] sm:$0xff]
  %v22 = vld [vmem:[%s0 + $0x20] sm:$0xff]
  %v23 = vld [vmem:[%s0 + $0x28] sm:$0xff]
  %v24 = vld [vmem:[%s0 + $0x30] sm:$0xff]
  %v25 = vld [vmem:[%s0 + $0x38] sm:$0xff]
  %v26 = vld [vmem:[%s0 + $0x40] sm:$0xff]
  %v27 = vld [vmem:[%s0 + $0x48] sm:$0xff]
  %v28 = vld [vmem:[%s0 + $0x50] sm:$0xff]
  %v29 = vld [vmem:[%s0 + $0x58] sm:$0xff]
  %v30 = vld [vmem:[%s0 + $0x60] sm:$0xff]
  %v31 = vld [vmem:[%s0 + $0x68] sm:$0xff]
  %v32 = vld [vmem:[%s0 + $0x70] sm:$0xff]
  %v33 = vld [vmem:[%s0 + $0x78] sm:$0xff]
  %v34 = vld [vmem:[%s1] sm:$0xf]
  %v35 = vld [vmem:[%s1 + $0x4] sm:$0xf]
  %v36 = vld [vmem:[%s1 + $0x8] sm:$0xf]
  %v37 = vld [vmem:[%s1 + $0xc] sm:$0xf]
  %v38 = vld [vmem:[%s1 + $0x10] sm:$0xf]
  %v39 = vld [vmem:[%s1 + $0x14] sm:$0xf]
  %v40 = vld [vmem:[%s1 + $0x18] sm:$0xf]
  %v41 = vld [vmem:[%s1 + $0x1c] sm:$0xf]
  %v42 = vld [vmem:[%s1 + $0x20] sm:$0xf]
  %v43 = vld [vmem:[%s1 + $0x24] sm:$0xf]
  %v44 = vld [vmem:[%s1 + $0x28] sm:$0xf]
  %v45 = vld [vmem:[%s1 + $0x2c] sm:$0xf]
  %v46 = vld [vmem:[%s1 + $0x30] sm:$0xf]
  %v47 = vld [vmem:[%s1 + $0x34] sm:$0xf]
  %v48 = vld [vmem:[%s1 + $0x38] sm:$0xf]
  %v49 = vld [vmem:[%s1 + $0x3c] sm:$0xf]
  %v50 = vld [vmem:[%s1 + $0x40] sm:$0xf]
  %v51 = vld [vmem:[%s1 + $0x44] sm:$0xf]
  %v52 = vld [vmem:[%s1 + $0x48] sm:$0xf]
  %v53 = vld [vmem:[%s1 + $0x4c] sm:$0xf]
  %v54 = vld [vmem:[%s1 + $0x50] sm:$0xf]
  %v55 = vld [vmem:[%s1 + $0x54] sm:$0xf]
  %v56 = vld [vmem:[%s1 + $0x58] sm:$0xf]
  %v57 = vld [vmem:[%s1 + $0x5c] sm:$0xf]
  %v58 = vld [vmem:[%s1 + $0x60] sm:$0xf]
  %v59 = vld [vmem:[%s1 + $0x64] sm:$0xf]
  %v60 = vld [vmem:[%s1 + $0x68] sm:$0xf]
  %v61 = vld [vmem:[%s1 + $0x6c] sm:$0xf]
  %v62 = vld [vmem:[%s1 + $0x70] sm:$0xf]
  %v63 = vld [vmem:[%s1 + $0x74] sm:$0xf]
  %v64 = vld [vmem:[%s1 + $0x78] sm:$0xf]
  %v65 = vld [vmem:[%s1 + $0x7c] sm:$0xf]
  %v82 = vunpack.c.l.b16 %v18
  %v83 = vunpack.c.h.b16 %v18
  %v84 = vunpack.c.l.b16 %v19
  %v85 = vunpack.c.h.b16 %v19
  %v86 = vunpack.c.l.b16 %v20
  %v87 = vunpack.c.h.b16 %v20
  %v88 = vunpack.c.l.b16 %v21
  %v89 = vunpack.c.h.b16 %v21
  %v90 = vunpack.c.l.b16 %v22
  %v91 = vunpack.c.h.b16 %v22
  %v92 = vunpack.c.l.b16 %v23
  %v93 = vunpack.c.h.b16 %v23
  %v94 = vunpack.c.l.b16 %v24
  %v95 = vunpack.c.h.b16 %v24
  %v96 = vunpack.c.l.b16 %v25
  %v97 = vunpack.c.h.b16 %v25
  %v98 = vunpack.c.l.b16 %v26
  %v99 = vunpack.c.h.b16 %v26
  %v100 = vunpack.c.l.b16 %v27
  %v101 = vunpack.c.h.b16 %v27
  %v102 = vunpack.c.l.b16 %v28
  %v103 = vunpack.c.h.b16 %v28
  %v104 = vunpack.c.l.b16 %v29
  %v105 = vunpack.c.h.b16 %v29
  %v106 = vunpack.c.l.b16 %v30
  %v107 = vunpack.c.h.b16 %v30
  %v108 = vunpack.c.l.b16 %v31
  %v109 = vunpack.c.h.b16 %v31
  %v110 = vunpack.c.l.b16 %v32
  %v111 = vunpack.c.h.b16 %v32
  %v112 = vunpack.c.l.b16 %v33
  %v113 = vunpack.c.h.b16 %v33
  %v114 = vpack.c.b16 %v84, %v82
  %v115 = vpack.c.b16 %v85, %v83
  %v116 = vpack.c.b16 %v88, %v86
  %v117 = vpack.c.b16 %v89, %v87
  %v118 = vpack.c.b16 %v92, %v90
  %v119 = vpack.c.b16 %v93, %v91
  %v120 = vpack.c.b16 %v96, %v94
  %v121 = vpack.c.b16 %v97, %v95
  %v122 = vpack.c.b16 %v100, %v98
  %v123 = vpack.c.b16 %v101, %v99
  %v124 = vpack.c.b16 %v104, %v102
  %v125 = vpack.c.b16 %v105, %v103
  %v126 = vpack.c.b16 %v108, %v106
  %v127 = vpack.c.b16 %v109, %v107
  %v128 = vpack.c.b16 %v112, %v110
  %v129 = vpack.c.b16 %v113, %v111
  %v178 = vunpack.c.l.b16 %v34
  %v179 = vunpack.c.l.b16 %v35
  %v180 = vunpack.c.l.b16 %v36
  %v181 = vunpack.c.l.b16 %v37
  %v182 = vunpack.c.l.b16 %v38
  %v183 = vunpack.c.l.b16 %v39
  %v184 = vunpack.c.l.b16 %v40
  %v185 = vunpack.c.l.b16 %v41
  %v186 = vunpack.c.l.b16 %v42
  %v187 = vunpack.c.l.b16 %v43
  %v188 = vunpack.c.l.b16 %v44
  %v189 = vunpack.c.l.b16 %v45
  %v190 = vunpack.c.l.b16 %v46
  %v191 = vunpack.c.l.b16 %v47
  %v192 = vunpack.c.l.b16 %v48
  %v193 = vunpack.c.l.b16 %v49
  %v194 = vunpack.c.l.b16 %v50
  %v195 = vunpack.c.l.b16 %v51
  %v196 = vunpack.c.l.b16 %v52
  %v197 = vunpack.c.l.b16 %v53
  %v198 = vunpack.c.l.b16 %v54
  %v199 = vunpack.c.l.b16 %v55
  %v200 = vunpack.c.l.b16 %v56
  %v201 = vunpack.c.l.b16 %v57
  %v202 = vunpack.c.l.b16 %v58
  %v203 = vunpack.c.l.b16 %v59
  %v204 = vunpack.c.l.b16 %v60
  %v205 = vunpack.c.l.b16 %v61
  %v206 = vunpack.c.l.b16 %v62
  %v207 = vunpack.c.l.b16 %v63
  %v208 = vunpack.c.l.b16 %v64
  %v209 = vunpack.c.l.b16 %v65
  %v210 = vpack.c.b16 %v179, %v178
  %v211 = vpack.c.b16 %v181, %v180
  %v212 = vpack.c.b16 %v183, %v182
  %v213 = vpack.c.b16 %v185, %v184
  %v214 = vpack.c.b16 %v187, %v186
  %v215 = vpack.c.b16 %v189, %v188
  %v216 = vpack.c.b16 %v191, %v190
  %v217 = vpack.c.b16 %v193, %v192
  %v218 = vpack.c.b16 %v195, %v194
  %v219 = vpack.c.b16 %v197, %v196
  %v220 = vpack.c.b16 %v199, %v198
  %v221 = vpack.c.b16 %v201, %v200
  %v222 = vpack.c.b16 %v203, %v202
  %v223 = vpack.c.b16 %v205, %v204
  %v224 = vpack.c.b16 %v207, %v206
  %v225 = vpack.c.b16 %v209, %v208
  %242 = vmatprep.subr.bf16.mxu0 0
  %243 = vmatpush1.bf16.msra.mxu0 %v217
  %244 = vmatprep.subr.bf16.mxu0 0
  %245 = vmatpush1.bf16.msra.mxu0 %v216
  %246 = vmatprep.subr.bf16.mxu0 0
  %247 = vmatpush1.bf16.msra.mxu0 %v215
  %248 = vmatprep.subr.bf16.mxu0 0
  %249 = vmatpush1.bf16.msra.mxu0 %v214
  %250 = vmatprep.subr.bf16.mxu0 0
  %251 = vmatpush1.bf16.msra.mxu0 %v213
  %252 = vmatprep.subr.bf16.mxu0 0
  %253 = vmatpush1.bf16.msra.mxu0 %v212
  %254 = vmatprep.subr.bf16.mxu0 0
  %255 = vmatpush1.bf16.msra.mxu0 %v211
  %256 = vmatprep.subr.bf16.mxu0 0
  %257 = vmatpush1.bf16.msra.mxu0 %v210
  %258 = vmatprep.subr.bf16.mxu0 0
  %259 = vmatpush2.bf16.msra.mxu0 %v225
  %260 = vmatprep.subr.bf16.mxu0 0
  %261 = vmatpush2.bf16.msra.mxu0 %v224
  %262 = vmatprep.subr.bf16.mxu0 0
  %263 = vmatpush2.bf16.msra.mxu0 %v223
  %264 = vmatprep.subr.bf16.mxu0 0
  %265 = vmatpush2.bf16.msra.mxu0 %v222
  %266 = vmatprep.subr.bf16.mxu0 0
  %267 = vmatpush2.bf16.msra.mxu0 %v221
  %268 = vmatprep.subr.bf16.mxu0 0
  %269 = vmatpush2.bf16.msra.mxu0 %v220
  %270 = vmatprep.subr.bf16.mxu0 0
  %271 = vmatpush2.bf16.msra.mxu0 %v219
  %272 = vmatprep.subr.bf16.mxu0 0
  %273 = vmatpush2.bf16.msra.mxu0 %v218
  %274 = vmatprep.mubr.bf16.mxu0 %v115
  %275 = vmatmul.mubr.bf16.gmra.mxu0 %v114
  %v276 = vpop.f32.mrf.mxu0
  %v277 = vadd.f32 0.0, %v276
  %v278 = vpop.f32.mrf.mxu0
  %v279 = vpop.f32.mrf.mxu0
  %v280 = vadd.f32 0.0, %v279
  %v281 = vpop.f32.mrf.mxu0
  %282 = vmatprep.mubr.bf16.mxu0 %v117
  %283 = vmatmul.mubr.bf16.gmra.mxu0 %v116
  %v284 = vpop.f32.mrf.mxu0
  %v285 = vadd.f32 0.0, %v284
  %v286 = vpop.f32.mrf.mxu0
  %v287 = vpop.f32.mrf.mxu0
  %v288 = vadd.f32 0.0, %v287
  %v289 = vpop.f32.mrf.mxu0
  %290 = vmatprep.mubr.bf16.mxu0 %v119
  %291 = vmatmul.mubr.bf16.gmra.mxu0 %v118
  %v292 = vpop.f32.mrf.mxu0
  %v293 = vadd.f32 0.0, %v292
  %v294 = vpop.f32.mrf.mxu0
  %v295 = vpop.f32.mrf.mxu0
  %v296 = vadd.f32 0.0, %v295
  %v297 = vpop.f32.mrf.mxu0
  %298 = vmatprep.mubr.bf16.mxu0 %v121
  %299 = vmatmul.mubr.bf16.gmra.mxu0 %v120
  %v300 = vpop.f32.mrf.mxu0
  %v301 = vadd.f32 0.0, %v300
  %v302 = vpop.f32.mrf.mxu0
  %v303 = vpop.f32.mrf.mxu0
  %v304 = vadd.f32 0.0, %v303
  %v305 = vpop.f32.mrf.mxu0
  %306 = vmatprep.mubr.bf16.mxu0 %v123
  %307 = vmatmul.mubr.bf16.gmra.mxu0 %v122
  %v308 = vpop.f32.mrf.mxu0
  %v309 = vadd.f32 0.0, %v308
  %v310 = vpop.f32.mrf.mxu0
  %v311 = vpop.f32.mrf.mxu0
  %v312 = vadd.f32 0.0, %v311
  %v313 = vpop.f32.mrf.mxu0
  %314 = vmatprep.mubr.bf16.mxu0 %v125
  %315 = vmatmul.mubr.bf16.gmra.mxu0 %v124
  %v316 = vpop.f32.mrf.mxu0
  %v317 = vadd.f32 0.0, %v316
  %v318 = vpop.f32.mrf.mxu0
  %v319 = vpop.f32.mrf.mxu0
  %v320 = vadd.f32 0.0, %v319
  %v321 = vpop.f32.mrf.mxu0
  %322 = vmatprep.mubr.bf16.mxu0 %v127
  %323 = vmatmul.mubr.bf16.gmra.mxu0 %v126
  %v324 = vpop.f32.mrf.mxu0
  %v325 = vadd.f32 0.0, %v324
  %v326 = vpop.f32.mrf.mxu0
  %v327 = vpop.f32.mrf.mxu0
  %v328 = vadd.f32 0.0, %v327
  %v329 = vpop.f32.mrf.mxu0
  %330 = vmatprep.mubr.bf16.mxu0 %v129
  %331 = vmatmul.mubr.bf16.gmra.mxu0 %v128
  %v332 = vpop.f32.mrf.mxu0
  %v333 = vadd.f32 0.0, %v332
  %v334 = vpop.f32.mrf.mxu0
  %v335 = vpop.f32.mrf.mxu0
  %v336 = vadd.f32 0.0, %v335
  %v337 = vpop.f32.mrf.mxu0
  %338 = vdwg.mxu0
  %vm339 = vcmask 261120
  %v340 = vsel %vm339, %v277, 0.0
  %v341 = vsel %vm339, %v280, 0.0
  %v342 = vadd.f32 %v340, %v341
  %v343 = vsel %vm339, %v285, 0.0
  %v344 = vadd.f32 %v342, %v343
  %v345 = vsel %vm339, %v288, 0.0
  %v346 = vadd.f32 %v344, %v345
  %v347 = vsel %vm339, %v293, 0.0
  %v348 = vadd.f32 %v346, %v347
  %v349 = vsel %vm339, %v296, 0.0
  %v350 = vadd.f32 %v348, %v349
  %v351 = vsel %vm339, %v301, 0.0
  %v352 = vadd.f32 %v350, %v351
  %v353 = vsel %vm339, %v304, 0.0
  %v354 = vadd.f32 %v352, %v353
  %v355 = vsel %vm339, %v309, 0.0
  %v356 = vadd.f32 %v354, %v355
  %v357 = vsel %vm339, %v312, 0.0
  %v358 = vadd.f32 %v356, %v357
  %v359 = vsel %vm339, %v317, 0.0
  %v360 = vadd.f32 %v358, %v359
  %v361 = vsel %vm339, %v320, 0.0
  %v362 = vadd.f32 %v360, %v361
  %v363 = vsel %vm339, %v325, 0.0
  %v364 = vadd.f32 %v362, %v363
  %v365 = vsel %vm339, %v328, 0.0
  %v366 = vadd.f32 %v364, %v365
  %v367 = vsel %vm339, %v333, 0.0
  %v368 = vadd.f32 %v366, %v367
  %v369 = vsel %vm339, %v336, 0.0
  %v370 = vadd.f32 %v368, %v369
  %v371 = vrot.slane %v370, 4
  %v372 = vadd.f32 %v370, %v371
  %v373 = vrot.slane %v372, 2
  %v374 = vadd.f32 %v372, %v373
  %v375 = vrot.slane %v374, 1
  %v376 = vadd.f32 %v374, %v375
  %v377 = vrcp.pop 128.0
  %v378 = vmul.f32 %v376, %v377
  %v379 = vsub.f32 %v277, %v378
  %v380 = vsub.f32 %v280, %v378
  %v381 = vsub.f32 %v285, %v378
  %v382 = vsub.f32 %v288, %v378
  %v383 = vsub.f32 %v293, %v378
  %v384 = vsub.f32 %v296, %v378
  %v385 = vsub.f32 %v301, %v378
  %v386 = vsub.f32 %v304, %v378
  %v387 = vsub.f32 %v309, %v378
  %v388 = vsub.f32 %v312, %v378
  %v389 = vsub.f32 %v317, %v378
  %v390 = vsub.f32 %v320, %v378
  %v391 = vsub.f32 %v325, %v378
  %v392 = vsub.f32 %v328, %v378
  %v393 = vsub.f32 %v333, %v378
  %v394 = vsub.f32 %v336, %v378
  %v395 = vmul.f32 %v379, %v379
  %v396 = vmul.f32 %v380, %v380
  %v397 = vmul.f32 %v381, %v381
  %v398 = vmul.f32 %v382, %v382
  %v399 = vmul.f32 %v383, %v383
  %v400 = vmul.f32 %v384, %v384
  %v401 = vmul.f32 %v385, %v385
  %v402 = vmul.f32 %v386, %v386
  %v403 = vmul.f32 %v387, %v387
  %v404 = vmul.f32 %v388, %v388
  %v405 = vmul.f32 %v389, %v389
  %v406 = vmul.f32 %v390, %v390
  %v407 = vmul.f32 %v391, %v391
  %v408 = vmul.f32 %v392, %v392
  %v409 = vmul.f32 %v393, %v393
  %v410 = vmul.f32 %v394, %v394
  %v411 = vsel %vm339, %v395, 0.0
  %v412 = vsel %vm339, %v396, 0.0
  %v413 = vadd.f32 %v411, %v412
  %v414 = vsel %vm339, %v397, 0.0
  %v415 = vadd.f32 %v413, %v414
  %v416 = vsel %vm339, %v398, 0.0
  %v417 = vadd.f32 %v415, %v416
  %v418 = vsel %vm339, %v399, 0.0
  %v419 = vadd.f32 %v417, %v418
  %v420 = vsel %vm339, %v400, 0.0
  %v421 = vadd.f32 %v419, %v420
  %v422 = vsel %vm339, %v401, 0.0
  %v423 = vadd.f32 %v421, %v422
  %v424 = vsel %vm339, %v402, 0.0
  %v425 = vadd.f32 %v423, %v424
  %v426 = vsel %vm339, %v403, 0.0
  %v427 = vadd.f32 %v425, %v426
  %v428 = vsel %vm339, %v404, 0.0
  %v429 = vadd.f32 %v427, %v428
  %v430 = vsel %vm339, %v405, 0.0
  %v431 = vadd.f32 %v429, %v430
  %v432 = vsel %vm339, %v406, 0.0
  %v433 = vadd.f32 %v431, %v432
  %v434 = vsel %vm339, %v407, 0.0
  %v435 = vadd.f32 %v433, %v434
  %v436 = vsel %vm339, %v408, 0.0
  %v437 = vadd.f32 %v435, %v436
  %v438 = vsel %vm339, %v409, 0.0
  %v439 = vadd.f32 %v437, %v438
  %v440 = vsel %vm339, %v410, 0.0
  %v441 = vadd.f32 %v439, %v440
  %v442 = vrot.slane %v441, 4
  %v443 = vadd.f32 %v441, %v442
  %v444 = vrot.slane %v443, 2
  %v445 = vadd.f32 %v443, %v444
  %v446 = vrot.slane %v445, 1
  %v447 = vadd.f32 %v445, %v446
  %v448 = vmul.f32 %v447, %v377
  %v449 = vadd.f32 %v448, 1e-05
  %v450 = vrsqrt.pop %v449
  %v451 = vmul.f32 %v379, %v450
  %v452 = vmul.f32 %v380, %v450
  %v453 = vmul.f32 %v381, %v450
  %v454 = vmul.f32 %v382, %v450
  %v455 = vmul.f32 %v383, %v450
  %v456 = vmul.f32 %v384, %v450
  %v457 = vmul.f32 %v385, %v450
  %v458 = vmul.f32 %v386, %v450
  %v459 = vmul.f32 %v387, %v450
  %v460 = vmul.f32 %v388, %v450
  %v461 = vmul.f32 %v389, %v450
  %v462 = vmul.f32 %v390, %v450
  %v463 = vmul.f32 %v391, %v450
  %v464 = vmul.f32 %v392, %v450
  %v465 = vmul.f32 %v393, %v450
  %v466 = vmul.f32 %v394, %v450
  %v467 = vld [vmem:[%s2] sm:$0x1]
  %v469 = vlaneseq
  %v470 = vshrl.u32 %v469, 7
  %v471 = vsub.s32 0, %v470
  %v472 = vrot.slane %v467, %v471
  %v474 = vmul.f32 %v451, %v472
  %v475 = vmul.f32 %v452, %v472
  %v476 = vmul.f32 %v453, %v472
  %v477 = vmul.f32 %v454, %v472
  %v478 = vmul.f32 %v455, %v472
  %v479 = vmul.f32 %v456, %v472
  %v480 = vmul.f32 %v457, %v472
  %v481 = vmul.f32 %v458, %v472
  %v482 = vmul.f32 %v459, %v472
  %v483 = vmul.f32 %v460, %v472
  %v484 = vmul.f32 %v461, %v472
  %v485 = vmul.f32 %v462, %v472
  %v486 = vmul.f32 %v463, %v472
  %v487 = vmul.f32 %v464, %v472
  %v488 = vmul.f32 %v465, %v472
  %v489 = vmul.f32 %v466, %v472
  %v490 = vld [vmem:[%s3] sm:$0x1]
  %v492 = vlaneseq
  %v493 = vshrl.u32 %v492, 7
  %v494 = vsub.s32 0, %v493
  %v495 = vrot.slane %v490, %v494
  %v497 = vadd.f32 %v474, %v495
  %v498 = vadd.f32 %v475, %v495
  %v499 = vadd.f32 %v476, %v495
  %v500 = vadd.f32 %v477, %v495
  %v501 = vadd.f32 %v478, %v495
  %v502 = vadd.f32 %v479, %v495
  %v503 = vadd.f32 %v480, %v495
  %v504 = vadd.f32 %v481, %v495
  %v505 = vadd.f32 %v482, %v495
  %v506 = vadd.f32 %v483, %v495
  %v507 = vadd.f32 %v484, %v495
  %v508 = vadd.f32 %v485, %v495
  %v509 = vadd.f32 %v486, %v495
  %v510 = vadd.f32 %v487, %v495
  %v511 = vadd.f32 %v488, %v495
  %v512 = vadd.f32 %v489, %v495
  %vm513 = vcmp.ge.f32.partialorder %v497, 0.0
  %vm514 = vcmp.ge.f32.partialorder %v498, 0.0
  %vm515 = vcmp.ge.f32.partialorder %v499, 0.0
  %vm516 = vcmp.ge.f32.partialorder %v500, 0.0
  %vm517 = vcmp.ge.f32.partialorder %v501, 0.0
  %vm518 = vcmp.ge.f32.partialorder %v502, 0.0
  %vm519 = vcmp.ge.f32.partialorder %v503, 0.0
  %vm520 = vcmp.ge.f32.partialorder %v504, 0.0
  %vm521 = vcmp.ge.f32.partialorder %v505, 0.0
  %vm522 = vcmp.ge.f32.partialorder %v506, 0.0
  %vm523 = vcmp.ge.f32.partialorder %v507, 0.0
  %vm524 = vcmp.ge.f32.partialorder %v508, 0.0
  %vm525 = vcmp.ge.f32.partialorder %v509, 0.0
  %vm526 = vcmp.ge.f32.partialorder %v510, 0.0
  %vm527 = vcmp.ge.f32.partialorder %v511, 0.0
  %vm528 = vcmp.ge.f32.partialorder %v512, 0.0
  %v529 = vmul.f32 %v497, 0.2
  %v530 = vmul.f32 %v498, 0.2
  %v531 = vmul.f32 %v499, 0.2
  %v532 = vmul.f32 %v500, 0.2
  %v533 = vmul.f32 %v501, 0.2
  %v534 = vmul.f32 %v502, 0.2
  %v535 = vmul.f32 %v503, 0.2
  %v536 = vmul.f32 %v504, 0.2
  %v537 = vmul.f32 %v505, 0.2
  %v538 = vmul.f32 %v506, 0.2
  %v539 = vmul.f32 %v507, 0.2
  %v540 = vmul.f32 %v508, 0.2
  %v541 = vmul.f32 %v509, 0.2
  %v542 = vmul.f32 %v510, 0.2
  %v543 = vmul.f32 %v511, 0.2
  %v544 = vmul.f32 %v512, 0.2
  %v545 = vsel %vm513, %v497, %v529
  %v546 = vsel %vm514, %v498, %v530
  %v547 = vsel %vm515, %v499, %v531
  %v548 = vsel %vm516, %v500, %v532
  %v549 = vsel %vm517, %v501, %v533
  %v550 = vsel %vm518, %v502, %v534
  %v551 = vsel %vm519, %v503, %v535
  %v552 = vsel %vm520, %v504, %v536
  %v553 = vsel %vm521, %v505, %v537
  %v554 = vsel %vm522, %v506, %v538
  %v555 = vsel %vm523, %v507, %v539
  %v556 = vsel %vm524, %v508, %v540
  %v557 = vsel %vm525, %v509, %v541
  %v558 = vsel %vm526, %v510, %v542
  %v559 = vsel %vm527, %v511, %v543
  %v560 = vsel %vm528, %v512, %v544
  %v561 = vpack.c.bf16 %v546, %v545
  %v562 = vpack.c.bf16 %v548, %v547
  %v563 = vpack.c.bf16 %v550, %v549
  %v564 = vpack.c.bf16 %v552, %v551
  %v565 = vpack.c.bf16 %v554, %v553
  %v566 = vpack.c.bf16 %v556, %v555
  %v567 = vpack.c.bf16 %v558, %v557
  %v568 = vpack.c.bf16 %v560, %v559
  %v577 = vunpack.c.l.b16 %v561
  %v578 = vunpack.c.h.b16 %v561
  %v579 = vunpack.c.l.b16 %v562
  %v580 = vunpack.c.h.b16 %v562
  %v581 = vunpack.c.l.b16 %v563
  %v582 = vunpack.c.h.b16 %v563
  %v583 = vunpack.c.l.b16 %v564
  %v584 = vunpack.c.h.b16 %v564
  %v585 = vunpack.c.l.b16 %v565
  %v586 = vunpack.c.h.b16 %v565
  %v587 = vunpack.c.l.b16 %v566
  %v588 = vunpack.c.h.b16 %v566
  %v589 = vunpack.c.l.b16 %v567
  %v590 = vunpack.c.h.b16 %v567
  %v591 = vunpack.c.l.b16 %v568
  %v592 = vunpack.c.h.b16 %v568
  %v593 = vpack.c.b16 %v577, %v577
  %v594 = vpack.c.b16 %v578, %v578
  %v595 = vpack.c.b16 %v579, %v579
  %v596 = vpack.c.b16 %v580, %v580
  %v597 = vpack.c.b16 %v581, %v581
  %v598 = vpack.c.b16 %v582, %v582
  %v599 = vpack.c.b16 %v583, %v583
  %v600 = vpack.c.b16 %v584, %v584
  %v601 = vpack.c.b16 %v585, %v585
  %v602 = vpack.c.b16 %v586, %v586
  %v603 = vpack.c.b16 %v587, %v587
  %v604 = vpack.c.b16 %v588, %v588
  %v605 = vpack.c.b16 %v589, %v589
  %v606 = vpack.c.b16 %v590, %v590
  %v607 = vpack.c.b16 %v591, %v591
  %v608 = vpack.c.b16 %v592, %v592
  %vm625 = vcmask 257024
  %626 = vst.msk [vmem:[%s4] sm:$0xf] %vm625, %v593
  %627 = vst.msk [vmem:[%s4 + $0x4] sm:$0xf] %vm625, %v594
  %628 = vst.msk [vmem:[%s4 + $0x8] sm:$0xf] %vm625, %v595
  %629 = vst.msk [vmem:[%s4 + $0xc] sm:$0xf] %vm625, %v596
  %630 = vst.msk [vmem:[%s4 + $0x10] sm:$0xf] %vm625, %v597
  %631 = vst.msk [vmem:[%s4 + $0x14] sm:$0xf] %vm625, %v598
  %632 = vst.msk [vmem:[%s4 + $0x18] sm:$0xf] %vm625, %v599
  %633 = vst.msk [vmem:[%s4 + $0x1c] sm:$0xf] %vm625, %v600
  %634 = vst.msk [vmem:[%s4 + $0x20] sm:$0xf] %vm625, %v601
  %635 = vst.msk [vmem:[%s4 + $0x24] sm:$0xf] %vm625, %v602
  %636 = vst.msk [vmem:[%s4 + $0x28] sm:$0xf] %vm625, %v603
  %637 = vst.msk [vmem:[%s4 + $0x2c] sm:$0xf] %vm625, %v604
  %638 = vst.msk [vmem:[%s4 + $0x30] sm:$0xf] %vm625, %v605
  %639 = vst.msk [vmem:[%s4 + $0x34] sm:$0xf] %vm625, %v606
  %640 = vst.msk [vmem:[%s4 + $0x38] sm:$0xf] %vm625, %v607
  %641 = vst.msk [vmem:[%s4 + $0x3c] sm:$0xf] %vm625, %v608
  // Predicated region
  $region18: #{discriminator_forward.7} parent=0 // pred_check
    _
  $region19: #{discriminator_forward.7} parent=0 // pred_check_branch
    %643 = sbr.rel (0) target = $region21
  $region20: #{discriminator_forward.7} parent=0 // pred_region
    _
  $region21: #{discriminator_forward.7} parent=0 // pred_fallthru
    _
  // Predicated region
  $region22: #{discriminator_forward.7} parent=0 // pred_check
    _
  $region23: #{discriminator_forward.7} parent=0 // pred_check_branch
    %645 = sbr.rel (0) target = $region25
  $region24: #{discriminator_forward.7} parent=0 // pred_region
    _
  $region25: #{discriminator_forward.7} parent=0 // pred_fallthru
    _

// kernel: discriminator_forward.8
$region0: #{discriminator_forward.8}
  #allocation0 [shape = 'u32[]', space=smem, size = 0x4, offset = 0x4, fixed_abs, tag = 'smem constant byte address 0x4 - core index']
  #allocation1 [shape = 'u32[144,128]{1,0:T(1,128)}', space=vmem, size = 0x12000, scoped, tag = 'internal scratch']
  %s0 = inlined_call_operand.vmem [shape: bf16[32,512], index: 0, kind: input, shape index: {}]
  %s1 = inlined_call_operand.vmem [shape: bf16[512,64], index: 1, kind: input, shape index: {}]
  %s2 = inlined_call_operand.vmem [shape: f32[1,64], index: 2, kind: input, shape index: {}]
  %s3 = inlined_call_operand.vmem [shape: f32[1,64], index: 3, kind: input, shape index: {}]
  %s4 = inlined_call_operand.vmem [shape: bf16[32,64], index: 4, kind: output, shape index: {}]
  %s5 = sld [smem:[#allocation0]]
  $region26: #{discriminator_forward.8} parent=0
    _
  %s7 = ssub.s32 1, %s5
  %s8 = scalar_select 0, %s7, %s5
  // Predicated region
  $region2: #{discriminator_forward.8} parent=0 // pred_check
    _
  $region3: #{discriminator_forward.8} parent=0 // pred_check_branch
    %10 = sbr.rel (0) target = $region5
  $region4: #{discriminator_forward.8} parent=0 // pred_region
    _
  $region5: #{discriminator_forward.8} parent=0 // pred_fallthru
    _
  // Predicated region
  $region6: #{discriminator_forward.8} parent=0 // pred_check
    _
  $region7: #{discriminator_forward.8} parent=0 // pred_check_branch
    %12 = sbr.rel (0) target = $region9
  $region8: #{discriminator_forward.8} parent=0 // pred_region
    _
  $region9: #{discriminator_forward.8} parent=0 // pred_fallthru
    _
  // Predicated region
  $region10: #{discriminator_forward.8} parent=0 // pred_check
    _
  $region11: #{discriminator_forward.8} parent=0 // pred_check_branch
    %14 = sbr.rel (0) target = $region13
  $region12: #{discriminator_forward.8} parent=0 // pred_region
    _
  $region13: #{discriminator_forward.8} parent=0 // pred_fallthru
    _
  // Predicated region
  $region14: #{discriminator_forward.8} parent=0 // pred_check
    _
  $region15: #{discriminator_forward.8} parent=0 // pred_check_branch
    %16 = sbr.rel (0) target = $region17
  $region16: #{discriminator_forward.8} parent=0 // pred_region
    _
  $region17: #{discriminator_forward.8} parent=0 // pred_fallthru
    _
  %v18 = vld [vmem:[%s0] sm:$0xff]
  %v19 = vld [vmem:[%s0 + $0x8] sm:$0xff]
  %v20 = vld [vmem:[%s0 + $0x10] sm:$0xff]
  %v21 = vld [vmem:[%s0 + $0x18] sm:$0xff]
  %v22 = vld [vmem:[%s0 + $0x20] sm:$0xff]
  %v23 = vld [vmem:[%s0 + $0x28] sm:$0xff]
  %v24 = vld [vmem:[%s0 + $0x30] sm:$0xff]
  %v25 = vld [vmem:[%s0 + $0x38] sm:$0xff]
  %v26 = vld [vmem:[%s1] sm:$0xf]
  %v27 = vld [vmem:[%s1 + $0x4] sm:$0xf]
  %v28 = vld [vmem:[%s1 + $0x8] sm:$0xf]
  %v29 = vld [vmem:[%s1 + $0xc] sm:$0xf]
  %v30 = vld [vmem:[%s1 + $0x10] sm:$0xf]
  %v31 = vld [vmem:[%s1 + $0x14] sm:$0xf]
  %v32 = vld [vmem:[%s1 + $0x18] sm:$0xf]
  %v33 = vld [vmem:[%s1 + $0x1c] sm:$0xf]
  %v34 = vld [vmem:[%s1 + $0x20] sm:$0xf]
  %v35 = vld [vmem:[%s1 + $0x24] sm:$0xf]
  %v36 = vld [vmem:[%s1 + $0x28] sm:$0xf]
  %v37 = vld [vmem:[%s1 + $0x2c] sm:$0xf]
  %v38 = vld [vmem:[%s1 + $0x30] sm:$0xf]
  %v39 = vld [vmem:[%s1 + $0x34] sm:$0xf]
  %v40 = vld [vmem:[%s1 + $0x38] sm:$0xf]
  %v41 = vld [vmem:[%s1 + $0x3c] sm:$0xf]
  %v42 = vld [vmem:[%s1 + $0x40] sm:$0xf]
  %v43 = vld [vmem:[%s1 + $0x44] sm:$0xf]
  %v44 = vld [vmem:[%s1 + $0x48] sm:$0xf]
  %v45 = vld [vmem:[%s1 + $0x4c] sm:$0xf]
  %v46 = vld [vmem:[%s1 + $0x50] sm:$0xf]
  %v47 = vld [vmem:[%s1 + $0x54] sm:$0xf]
  %v48 = vld [vmem:[%s1 + $0x58] sm:$0xf]
  %v49 = vld [vmem:[%s1 + $0x5c] sm:$0xf]
  %v50 = vld [vmem:[%s1 + $0x60] sm:$0xf]
  %v51 = vld [vmem:[%s1 + $0x64] sm:$0xf]
  %v52 = vld [vmem:[%s1 + $0x68] sm:$0xf]
  %v53 = vld [vmem:[%s1 + $0x6c] sm:$0xf]
  %v54 = vld [vmem:[%s1 + $0x70] sm:$0xf]
  %v55 = vld [vmem:[%s1 + $0x74] sm:$0xf]
  %v56 = vld [vmem:[%s1 + $0x78] sm:$0xf]
  %v57 = vld [vmem:[%s1 + $0x7c] sm:$0xf]
  %v58 = vld [vmem:[%s1 + $0x80] sm:$0xf]
  %v59 = vld [vmem:[%s1 + $0x84] sm:$0xf]
  %v60 = vld [vmem:[%s1 + $0x88] sm:$0xf]
  %v61 = vld [vmem:[%s1 + $0x8c] sm:$0xf]
  %v62 = vld [vmem:[%s1 + $0x90] sm:$0xf]
  %v63 = vld [vmem:[%s1 + $0x94] sm:$0xf]
  %v64 = vld [vmem:[%s1 + $0x98] sm:$0xf]
  %v65 = vld [vmem:[%s1 + $0x9c] sm:$0xf]
  %v66 = vld [vmem:[%s1 + $0xa0] sm:$0xf]
  %v67 = vld [vmem:[%s1 + $0xa4] sm:$0xf]
  %v68 = vld [vmem:[%s1 + $0xa8] sm:$0xf]
  %v69 = vld [vmem:[%s1 + $0xac] sm:$0xf]
  %v70 = vld [vmem:[%s1 + $0xb0] sm:$0xf]
  %v71 = vld [vmem:[%s1 + $0xb4] sm:$0xf]
  %v72 = vld [vmem:[%s1 + $0xb8] sm:$0xf]
  %v73 = vld [vmem:[%s1 + $0xbc] sm:$0xf]
  %v74 = vld [vmem:[%s1 + $0xc0] sm:$0xf]
  %v75 = vld [vmem:[%s1 + $0xc4] sm:$0xf]
  %v76 = vld [vmem:[%s1 + $0xc8] sm:$0xf]
  %v77 = vld [vmem:[%s1 + $0xcc] sm:$0xf]
  %v78 = vld [vmem:[%s1 + $0xd0] sm:$0xf]
  %v79 = vld [vmem:[%s1 + $0xd4] sm:$0xf]
  %v80 = vld [vmem:[%s1 + $0xd8] sm:$0xf]
  %v81 = vld [vmem:[%s1 + $0xdc] sm:$0xf]
  %v82 = vld [vmem:[%s1 + $0xe0] sm:$0xf]
  %v83 = vld [vmem:[%s1 + $0xe4] sm:$0xf]
  %v84 = vld [vmem:[%s1 + $0xe8] sm:$0xf]
  %v85 = vld [vmem:[%s1 + $0xec] sm:$0xf]
  %v86 = vld [vmem:[%s1 + $0xf0] sm:$0xf]
  %v87 = vld [vmem:[%s1 + $0xf4] sm:$0xf]
  %v88 = vld [vmem:[%s1 + $0xf8] sm:$0xf]
  %v89 = vld [vmem:[%s1 + $0xfc] sm:$0xf]
  %v98 = vunpack.c.l.b16 %v18
  %v99 = vunpack.c.h.b16 %v18
  %v100 = vunpack.c.l.b16 %v19
  %v101 = vunpack.c.h.b16 %v19
  %v102 = vunpack.c.l.b16 %v20
  %v103 = vunpack.c.h.b16 %v20
  %v104 = vunpack.c.l.b16 %v21
  %v105 = vunpack.c.h.b16 %v21
  %v106 = vunpack.c.l.b16 %v22
  %v107 = vunpack.c.h.b16 %v22
  %v108 = vunpack.c.l.b16 %v23
  %v109 = vunpack.c.h.b16 %v23
  %v110 = vunpack.c.l.b16 %v24
  %v111 = vunpack.c.h.b16 %v24
  %v112 = vunpack.c.l.b16 %v25
  %v113 = vunpack.c.h.b16 %v25
  %v114 = vpack.c.b16 %v102, %v98
  %v115 = vpack.c.b16 %v103, %v99
  %v116 = vpack.c.b16 %v104, %v100
  %v117 = vpack.c.b16 %v105, %v101
  %v118 = vpack.c.b16 %v110, %v106
  %v119 = vpack.c.b16 %v111, %v107
  %v120 = vpack.c.b16 %v112, %v108
  %v121 = vpack.c.b16 %v113, %v109
  %v194 = vunpack.c.l.b16 %v26
  %v195 = vunpack.c.l.b16 %v27
  %v196 = vunpack.c.l.b16 %v28
  %v197 = vunpack.c.l.b16 %v29
  %v198 = vunpack.c.l.b16 %v30
  %v199 = vunpack.c.l.b16 %v31
  %v200 = vunpack.c.l.b16 %v32
  %v201 = vunpack.c.l.b16 %v33
  %v202 = vunpack.c.l.b16 %v34
  %v203 = vunpack.c.l.b16 %v35
  %v204 = vunpack.c.l.b16 %v36
  %v205 = vunpack.c.l.b16 %v37
  %v206 = vunpack.c.l.b16 %v38
  %v207 = vunpack.c.l.b16 %v39
  %v208 = vunpack.c.l.b16 %v40
  %v209 = vunpack.c.l.b16 %v41
  %v210 = vunpack.c.l.b16 %v42
  %v211 = vunpack.c.l.b16 %v43
  %v212 = vunpack.c.l.b16 %v44
  %v213 = vunpack.c.l.b16 %v45
  %v214 = vunpack.c.l.b16 %v46
  %v215 = vunpack.c.l.b16 %v47
  %v216 = vunpack.c.l.b16 %v48
  %v217 = vunpack.c.l.b16 %v49
  %v218 = vunpack.c.l.b16 %v50
  %v219 = vunpack.c.l.b16 %v51
  %v220 = vunpack.c.l.b16 %v52
  %v221 = vunpack.c.l.b16 %v53
  %v222 = vunpack.c.l.b16 %v54
  %v223 = vunpack.c.l.b16 %v55
  %v224 = vunpack.c.l.b16 %v56
  %v225 = vunpack.c.l.b16 %v57
  %v226 = vunpack.c.l.b16 %v58
  %v227 = vunpack.c.l.b16 %v59
  %v228 = vunpack.c.l.b16 %v60
  %v229 = vunpack.c.l.b16 %v61
  %v230 = vunpack.c.l.b16 %v62
  %v231 = vunpack.c.l.b16 %v63
  %v232 = vunpack.c.l.b16 %v64
  %v233 = vunpack.c.l.b16 %v65
  %v234 = vunpack.c.l.b16 %v66
  %v235 = vunpack.c.l.b16 %v67
  %v236 = vunpack.c.l.b16 %v68
  %v237 = vunpack.c.l.b16 %v69
  %v238 = vunpack.c.l.b16 %v70
  %v239 = vunpack.c.l.b16 %v71
  %v240 = vunpack.c.l.b16 %v72
  %v241 = vunpack.c.l.b16 %v73
  %v242 = vunpack.c.l.b16 %v74
  %v243 = vunpack.c.l.b16 %v75
  %v244 = vunpack.c.l.b16 %v76
  %v245 = vunpack.c.l.b16 %v77
  %v246 = vunpack.c.l.b16 %v78
  %v247 = vunpack.c.l.b16 %v79
  %v248 = vunpack.c.l.b16 %v80
  %v249 = vunpack.c.l.b16 %v81
  %v250 = vunpack.c.l.b16 %v82
  %v251 = vunpack.c.l.b16 %v83
  %v252 = vunpack.c.l.b16 %v84
  %v253 = vunpack.c.l.b16 %v85
  %v254 = vunpack.c.l.b16 %v86
  %v255 = vunpack.c.l.b16 %v87
  %v256 = vunpack.c.l.b16 %v88
  %v257 = vunpack.c.l.b16 %v89
  %v258 = vpack.c.b16 %v195, %v194
  %v259 = vpack.c.b16 %v197, %v196
  %v260 = vpack.c.b16 %v199, %v198
  %v261 = vpack.c.b16 %v201, %v200
  %v262 = vpack.c.b16 %v203, %v202
  %v263 = vpack.c.b16 %v205, %v204
  %v264 = vpack.c.b16 %v207, %v206
  %v265 = vpack.c.b16 %v209, %v208
  %v266 = vpack.c.b16 %v211, %v210
  %v267 = vpack.c.b16 %v213, %v212
  %v268 = vpack.c.b16 %v215, %v214
  %v269 = vpack.c.b16 %v217, %v216
  %v270 = vpack.c.b16 %v219, %v218
  %v271 = vpack.c.b16 %v221, %v220
  %v272 = vpack.c.b16 %v223, %v222
  %v273 = vpack.c.b16 %v225, %v224
  %v274 = vpack.c.b16 %v227, %v226
  %v275 = vpack.c.b16 %v229, %v228
  %v276 = vpack.c.b16 %v231, %v230
  %v277 = vpack.c.b16 %v233, %v232
  %v278 = vpack.c.b16 %v235, %v234
  %v279 = vpack.c.b16 %v237, %v236
  %v280 = vpack.c.b16 %v239, %v238
  %v281 = vpack.c.b16 %v241, %v240
  %v282 = vpack.c.b16 %v243, %v242
  %v283 = vpack.c.b16 %v245, %v244
  %v284 = vpack.c.b16 %v247, %v246
  %v285 = vpack.c.b16 %v249, %v248
  %v286 = vpack.c.b16 %v251, %v250
  %v287 = vpack.c.b16 %v253, %v252
  %v288 = vpack.c.b16 %v255, %v254
  %v289 = vpack.c.b16 %v257, %v256
  %322 = vmatprep.subr.bf16.mxu0 0
  %323 = vmatpush1.bf16.msra.mxu0 %v265
  %324 = vmatprep.subr.bf16.mxu0 0
  %325 = vmatpush1.bf16.msra.mxu0 %v264
  %326 = vmatprep.subr.bf16.mxu0 0
  %327 = vmatpush1.bf16.msra.mxu0 %v263
  %328 = vmatprep.subr.bf16.mxu0 0
  %329 = vmatpush1.bf16.msra.mxu0 %v262
  %330 = vmatprep.subr.bf16.mxu0 0
  %331 = vmatpush1.bf16.msra.mxu0 %v261
  %332 = vmatprep.subr.bf16.mxu0 0
  %333 = vmatpush1.bf16.msra.mxu0 %v260
  %334 = vmatprep.subr.bf16.mxu0 0
  %335 = vmatpush1.bf16.msra.mxu0 %v259
  %336 = vmatprep.subr.bf16.mxu0 0
  %337 = vmatpush1.bf16.msra.mxu0 %v258
  %338 = vmatprep.subr.bf16.mxu0 0
  %339 = vmatpush2.bf16.msra.mxu0 %v273
  %340 = vmatprep.subr.bf16.mxu0 0
  %341 = vmatpush2.bf16.msra.mxu0 %v272
  %342 = vmatprep.subr.bf16.mxu0 0
  %343 = vmatpush2.bf16.msra.mxu0 %v271
  %344 = vmatprep.subr.bf16.mxu0 0
  %345 = vmatpush2.bf16.msra.mxu0 %v270
  %346 = vmatprep.subr.bf16.mxu0 0
  %347 = vmatpush2.bf16.msra.mxu0 %v269
  %348 = vmatprep.subr.bf16.mxu0 0
  %349 = vmatpush2.bf16.msra.mxu0 %v268
  %350 = vmatprep.subr.bf16.mxu0 0
  %351 = vmatpush2.bf16.msra.mxu0 %v267
  %352 = vmatprep.subr.bf16.mxu0 0
  %353 = vmatpush2.bf16.msra.mxu0 %v266
  %354 = vmatprep.mubr.bf16.mxu0 %v115
  %355 = vmatmul.mubr.bf16.gmra.mxu0 %v114
  %v356 = vpop.f32.mrf.mxu0
  %v357 = vadd.f32 0.0, %v356
  %v358 = vpop.f32.mrf.mxu0
  %v359 = vpop.f32.mrf.mxu0
  %v360 = vadd.f32 0.0, %v359
  %v361 = vpop.f32.mrf.mxu0
  %362 = vmatprep.mubr.bf16.mxu0 %v119
  %363 = vmatmul.mubr.bf16.gmra.mxu0 %v118
  %v364 = vpop.f32.mrf.mxu0
  %v365 = vadd.f32 0.0, %v364
  %v366 = vpop.f32.mrf.mxu0
  %v367 = vpop.f32.mrf.mxu0
  %v368 = vadd.f32 0.0, %v367
  %v369 = vpop.f32.mrf.mxu0
  %370 = vdwg.mxu0
  %371 = vmatprep.subr.bf16.mxu0 0
  %372 = vmatpush1.bf16.msra.mxu0 %v281
  %373 = vmatprep.subr.bf16.mxu0 0
  %374 = vmatpush1.bf16.msra.mxu0 %v280
  %375 = vmatprep.subr.bf16.mxu0 0
  %376 = vmatpush1.bf16.msra.mxu0 %v279
  %377 = vmatprep.subr.bf16.mxu0 0
  %378 = vmatpush1.bf16.msra.mxu0 %v278
  %379 = vmatprep.subr.bf16.mxu0 0
  %380 = vmatpush1.bf16.msra.mxu0 %v277
  %381 = vmatprep.subr.bf16.mxu0 0
  %382 = vmatpush1.bf16.msra.mxu0 %v276
  %383 = vmatprep.subr.bf16.mxu0 0
  %384 = vmatpush1.bf16.msra.mxu0 %v275
  %385 = vmatprep.subr.bf16.mxu0 0
  %386 = vmatpush1.bf16.msra.mxu0 %v274
  %387 = vmatprep.subr.bf16.mxu0 0
  %388 = vmatpush2.bf16.msra.mxu0 %v289
  %389 = vmatprep.subr.bf16.mxu0 0
  %390 = vmatpush2.bf16.msra.mxu0 %v288
  %391 = vmatprep.subr.bf16.mxu0 0
  %392 = vmatpush2.bf16.msra.mxu0 %v287
  %393 = vmatprep.subr.bf16.mxu0 0
  %394 = vmatpush2.bf16.msra.mxu0 %v286
  %395 = vmatprep.subr.bf16.mxu0 0
  %396 = vmatpush2.bf16.msra.mxu0 %v285
  %397 = vmatprep.subr.bf16.mxu0 0
  %398 = vmatpush2.bf16.msra.mxu0 %v284
  %399 = vmatprep.subr.bf16.mxu0 0
  %400 = vmatpush2.bf16.msra.mxu0 %v283
  %401 = vmatprep.subr.bf16.mxu0 0
  %402 = vmatpush2.bf16.msra.mxu0 %v282
  %403 = vmatprep.mubr.bf16.mxu0 %v117
  %404 = vmatmul.mubr.bf16.gmra.mxu0 %v116
  %v405 = vpop.f32.mrf.mxu0
  %v406 = vadd.f32 %v357, %v405
  %v407 = vpop.f32.mrf.mxu0
  %v408 = vpop.f32.mrf.mxu0
  %v409 = vadd.f32 %v360, %v408
  %v410 = vpop.f32.mrf.mxu0
  %411 = vmatprep.mubr.bf16.mxu0 %v121
  %412 = vmatmul.mubr.bf16.gmra.mxu0 %v120
  %v413 = vpop.f32.mrf.mxu0
  %v414 = vadd.f32 %v365, %v413
  %v415 = vpop.f32.mrf.mxu0
  %v416 = vpop.f32.mrf.mxu0
  %v417 = vadd.f32 %v368, %v416
  %v418 = vpop.f32.mrf.mxu0
  %419 = vdwg.mxu0
  %vm420 = vcmask 523264
  %v421 = vsel %vm420, %v406, 0.0
  %v422 = vsel %vm420, %v409, 0.0
  %v423 = vadd.f32 %v421, %v422
  %v424 = vsel %vm420, %v414, 0.0
  %v425 = vadd.f32 %v423, %v424
  %v426 = vsel %vm420, %v417, 0.0
  %v427 = vadd.f32 %v425, %v426
  %v428 = vrot.slane %v427, 4
  %v429 = vadd.f32 %v427, %v428
  %v430 = vrot.slane %v429, 2
  %v431 = vadd.f32 %v429, %v430
  %v432 = vrot.slane %v431, 1
  %v433 = vadd.f32 %v431, %v432
  %v434 = vrcp.pop 32.0
  %v435 = vmul.f32 %v433, %v434
  %v436 = vsub.f32 %v406, %v435
  %v437 = vsub.f32 %v409, %v435
  %v438 = vsub.f32 %v414, %v435
  %v439 = vsub.f32 %v417, %v435
  %v440 = vmul.f32 %v436, %v436
  %v441 = vmul.f32 %v437, %v437
  %v442 = vmul.f32 %v438, %v438
  %v443 = vmul.f32 %v439, %v439
  %v444 = vsel %vm420, %v440, 0.0
  %v445 = vsel %vm420, %v441, 0.0
  %v446 = vadd.f32 %v444, %v445
  %v447 = vsel %vm420, %v442, 0.0
  %v448 = vadd.f32 %v446, %v447
  %v449 = vsel %vm420, %v443, 0.0
  %v450 = vadd.f32 %v448, %v449
  %v451 = vrot.slane %v450, 4
  %v452 = vadd.f32 %v450, %v451
  %v453 = vrot.slane %v452, 2
  %v454 = vadd.f32 %v452, %v453
  %v455 = vrot.slane %v454, 1
  %v456 = vadd.f32 %v454, %v455
  %v457 = vmul.f32 %v456, %v434
  %v458 = vadd.f32 %v457, 1e-05
  %v459 = vrsqrt.pop %v458
  %v460 = vmul.f32 %v436, %v459
  %v461 = vmul.f32 %v437, %v459
  %v462 = vmul.f32 %v438, %v459
  %v463 = vmul.f32 %v439, %v459
  %v464 = vld [vmem:[%s2] sm:$0x1]
  %v466 = vlaneseq
  %v467 = vshrl.u32 %v466, 7
  %v468 = vsub.s32 0, %v467
  %v469 = vrot.slane %v464, %v468
  %v471 = vmul.f32 %v460, %v469
  %v472 = vmul.f32 %v461, %v469
  %v473 = vmul.f32 %v462, %v469
  %v474 = vmul.f32 %v463, %v469
  %v475 = vld [vmem:[%s3] sm:$0x1]
  %v477 = vlaneseq
  %v478 = vshrl.u32 %v477, 7
  %v479 = vsub.s32 0, %v478
  %v480 = vrot.slane %v475, %v479
  %v482 = vadd.f32 %v471, %v480
  %v483 = vadd.f32 %v472, %v480
  %v484 = vadd.f32 %v473, %v480
  %v485 = vadd.f32 %v474, %v480
  %vm486 = vcmp.ge.f32.partialorder %v482, 0.0
  %vm487 = vcmp.ge.f32.partialorder %v483, 0.0
  %vm488 = vcmp.ge.f32.partialorder %v484, 0.0
  %vm489 = vcmp.ge.f32.partialorder %v485, 0.0
  %v490 = vmul.f32 %v482, 0.2
  %v491 = vmul.f32 %v483, 0.2
  %v492 = vmul.f32 %v484, 0.2
  %v493 = vmul.f32 %v485, 0.2
  %v494 = vsel %vm486, %v482, %v490
  %v495 = vsel %vm487, %v483, %v491
  %v496 = vsel %vm488, %v484, %v492
  %v497 = vsel %vm489, %v485, %v493
  %v498 = vpack.c.bf16 %v495, %v494
  %v499 = vpack.c.bf16 %v497, %v496
  %v502 = vunpack.c.l.b16 %v498
  %v503 = vunpack.c.h.b16 %v498
  %v504 = vunpack.c.l.b16 %v499
  %v505 = vunpack.c.h.b16 %v499
  %v506 = vpack.c.b16 %v502, %v502
  %v507 = vpack.c.b16 %v503, %v503
  %v508 = vpack.c.b16 %v504, %v504
  %v509 = vpack.c.b16 %v505, %v505
  %vm514 = vcmask 519168
  %515 = vst.msk [vmem:[%s4] sm:$0xf] %vm514, %v506
  %516 = vst.msk [vmem:[%s4 + $0x4] sm:$0xf] %vm514, %v507
  %517 = vst.msk [vmem:[%s4 + $0x8] sm:$0xf] %vm514, %v508
  %518 = vst.msk [vmem:[%s4 + $0xc] sm:$0xf] %vm514, %v509
  // Predicated region
  $region18: #{discriminator_forward.8} parent=0 // pred_check
    _
  $region19: #{discriminator_forward.8} parent=0 // pred_check_branch
    %520 = sbr.rel (0) target = $region21
  $region20: #{discriminator_forward.8} parent=0 // pred_region
    _
  $region21: #{discriminator_forward.8} parent=0 // pred_fallthru
    _
  // Predicated region
  $region22: #{discriminator_forward.8} parent=0 // pred_check
    _
  $region23: #{discriminator_forward.8} parent=0 // pred_check_branch
    %522 = sbr.rel (0) target = $region25
  $region24: #{discriminator_forward.8} parent=0 // pred_region
    _
  $region25: #{discriminator_forward.8} parent=0 // pred_fallthru
    _

// kernel: discriminator_forward.9
$region0: #{discriminator_forward.9}
  #allocation0 [shape = 'u32[]', space=smem, size = 0x4, offset = 0x4, fixed_abs, tag = 'smem constant byte address 0x4 - core index']
  #allocation1 [shape = 'u32[144,128]{1,0:T(1,128)}', space=vmem, size = 0x12000, scoped, tag = 'internal scratch']
  %s0 = inlined_call_operand.vmem [shape: bf16[2,1024], index: 0, kind: input, shape index: {}]
  %s1 = inlined_call_operand.vmem [shape: bf16[1024,1], index: 1, kind: input, shape index: {}]
  %s2 = inlined_call_operand.vmem [shape: f32[2,1], index: 2, kind: output, shape index: {}]
  %s3 = sld [smem:[#allocation0]]
  $region18: #{discriminator_forward.9} parent=0
    _
  %s5 = ssub.s32 1, %s3
  %s6 = scalar_select 0, %s5, %s3
  // Predicated region
  $region2: #{discriminator_forward.9} parent=0 // pred_check
    _
  $region3: #{discriminator_forward.9} parent=0 // pred_check_branch
    %8 = sbr.rel (0) target = $region5
  $region4: #{discriminator_forward.9} parent=0 // pred_region
    _
  $region5: #{discriminator_forward.9} parent=0 // pred_fallthru
    _
  // Predicated region
  $region6: #{discriminator_forward.9} parent=0 // pred_check
    _
  $region7: #{discriminator_forward.9} parent=0 // pred_check_branch
    %10 = sbr.rel (0) target = $region9
  $region8: #{discriminator_forward.9} parent=0 // pred_region
    _
  $region9: #{discriminator_forward.9} parent=0 // pred_fallthru
    _
  %v12 = vld [vmem:[%s0] sm:$0xff]
  %v13 = vld [vmem:[%s1] sm:$0xf]
  %v14 = vld [vmem:[%s1 + $0x4] sm:$0xf]
  %v15 = vld [vmem:[%s1 + $0x8] sm:$0xf]
  %v16 = vld [vmem:[%s1 + $0xc] sm:$0xf]
  %v17 = vld [vmem:[%s1 + $0x10] sm:$0xf]
  %v18 = vld [vmem:[%s1 + $0x14] sm:$0xf]
  %v19 = vld [vmem:[%s1 + $0x18] sm:$0xf]
  %v20 = vld [vmem:[%s1 + $0x1c] sm:$0xf]
  %v21 = vld [vmem:[%s1 + $0x20] sm:$0xf]
  %v22 = vld [vmem:[%s1 + $0x24] sm:$0xf]
  %v23 = vld [vmem:[%s1 + $0x28] sm:$0xf]
  %v24 = vld [vmem:[%s1 + $0x2c] sm:$0xf]
  %v25 = vld [vmem:[%s1 + $0x30] sm:$0xf]
  %v26 = vld [vmem:[%s1 + $0x34] sm:$0xf]
  %v27 = vld [vmem:[%s1 + $0x38] sm:$0xf]
  %v28 = vld [vmem:[%s1 + $0x3c] sm:$0xf]
  %v29 = vld [vmem:[%s1 + $0x40] sm:$0xf]
  %v30 = vld [vmem:[%s1 + $0x44] sm:$0xf]
  %v31 = vld [vmem:[%s1 + $0x48] sm:$0xf]
  %v32 = vld [vmem:[%s1 + $0x4c] sm:$0xf]
  %v33 = vld [vmem:[%s1 + $0x50] sm:$0xf]
  %v34 = vld [vmem:[%s1 + $0x54] sm:$0xf]
  %v35 = vld [vmem:[%s1 + $0x58] sm:$0xf]
  %v36 = vld [vmem:[%s1 + $0x5c] sm:$0xf]
  %v37 = vld [vmem:[%s1 + $0x60] sm:$0xf]
  %v38 = vld [vmem:[%s1 + $0x64] sm:$0xf]
  %v39 = vld [vmem:[%s1 + $0x68] sm:$0xf]
  %v40 = vld [vmem:[%s1 + $0x6c] sm:$0xf]
  %v41 = vld [vmem:[%s1 + $0x70] sm:$0xf]
  %v42 = vld [vmem:[%s1 + $0x74] sm:$0xf]
  %v43 = vld [vmem:[%s1 + $0x78] sm:$0xf]
  %v44 = vld [vmem:[%s1 + $0x7c] sm:$0xf]
  %v45 = vld [vmem:[%s1 + $0x80] sm:$0xf]
  %v46 = vld [vmem:[%s1 + $0x84] sm:$0xf]
  %v47 = vld [vmem:[%s1 + $0x88] sm:$0xf]
  %v48 = vld [vmem:[%s1 + $0x8c] sm:$0xf]
  %v49 = vld [vmem:[%s1 + $0x90] sm:$0xf]
  %v50 = vld [vmem:[%s1 + $0x94] sm:$0xf]
  %v51 = vld [vmem:[%s1 + $0x98] sm:$0xf]
  %v52 = vld [vmem:[%s1 + $0x9c] sm:$0xf]
  %v53 = vld [vmem:[%s1 + $0xa0] sm:$0xf]
  %v54 = vld [vmem:[%s1 + $0xa4] sm:$0xf]
  %v55 = vld [vmem:[%s1 + $0xa8] sm:$0xf]
  %v56 = vld [vmem:[%s1 + $0xac] sm:$0xf]
  %v57 = vld [vmem:[%s1 + $0xb0] sm:$0xf]
  %v58 = vld [vmem:[%s1 + $0xb4] sm:$0xf]
  %v59 = vld [vmem:[%s1 + $0xb8] sm:$0xf]
  %v60 = vld [vmem:[%s1 + $0xbc] sm:$0xf]
  %v61 = vld [vmem:[%s1 + $0xc0] sm:$0xf]
  %v62 = vld [vmem:[%s1 + $0xc4] sm:$0xf]
  %v63 = vld [vmem:[%s1 + $0xc8] sm:$0xf]
  %v64 = vld [vmem:[%s1 + $0xcc] sm:$0xf]
  %v65 = vld [vmem:[%s1 + $0xd0] sm:$0xf]
  %v66 = vld [vmem:[%s1 + $0xd4] sm:$0xf]
  %v67 = vld [vmem:[%s1 + $0xd8] sm:$0xf]
  %v68 = vld [vmem:[%s1 + $0xdc] sm:$0xf]
  %v69 = vld [vmem:[%s1 + $0xe0] sm:$0xf]
  %v70 = vld [vmem:[%s1 + $0xe4] sm:$0xf]
  %v71 = vld [vmem:[%s1 + $0xe8] sm:$0xf]
  %v72 = vld [vmem:[%s1 + $0xec] sm:$0xf]
  %v73 = vld [vmem:[%s1 + $0xf0] sm:$0xf]
  %v74 = vld [vmem:[%s1 + $0xf4] sm:$0xf]
  %v75 = vld [vmem:[%s1 + $0xf8] sm:$0xf]
  %v76 = vld [vmem:[%s1 + $0xfc] sm:$0xf]
  %v77 = vld [vmem:[%s1 + $0x100] sm:$0xf]
  %v78 = vld [vmem:[%s1 + $0x104] sm:$0xf]
  %v79 = vld [vmem:[%s1 + $0x108] sm:$0xf]
  %v80 = vld [vmem:[%s1 + $0x10c] sm:$0xf]
  %v81 = vld [vmem:[%s1 + $0x110] sm:$0xf]
  %v82 = vld [vmem:[%s1 + $0x114] sm:$0xf]
  %v83 = vld [vmem:[%s1 + $0x118] sm:$0xf]
  %v84 = vld [vmem:[%s1 + $0x11c] sm:$0xf]
  %v85 = vld [vmem:[%s1 + $0x120] sm:$0xf]
  %v86 = vld [vmem:[%s1 + $0x124] sm:$0xf]
  %v87 = vld [vmem:[%s1 + $0x128] sm:$0xf]
  %v88 = vld [vmem:[%s1 + $0x12c] sm:$0xf]
  %v89 = vld [vmem:[%s1 + $0x130] sm:$0xf]
  %v90 = vld [vmem:[%s1 + $0x134] sm:$0xf]
  %v91 = vld [vmem:[%s1 + $0x138] sm:$0xf]
  %v92 = vld [vmem:[%s1 + $0x13c] sm:$0xf]
  %v93 = vld [vmem:[%s1 + $0x140] sm:$0xf]
  %v94 = vld [vmem:[%s1 + $0x144] sm:$0xf]
  %v95 = vld [vmem:[%s1 + $0x148] sm:$0xf]
  %v96 = vld [vmem:[%s1 + $0x14c] sm:$0xf]
  %v97 = vld [vmem:[%s1 + $0x150] sm:$0xf]
  %v98 = vld [vmem:[%s1 + $0x154] sm:$0xf]
  %v99 = vld [vmem:[%s1 + $0x158] sm:$0xf]
  %v100 = vld [vmem:[%s1 + $0x15c] sm:$0xf]
  %v101 = vld [vmem:[%s1 + $0x160] sm:$0xf]
  %v102 = vld [vmem:[%s1 + $0x164] sm:$0xf]
  %v103 = vld [vmem:[%s1 + $0x168] sm:$0xf]
  %v104 = vld [vmem:[%s1 + $0x16c] sm:$0xf]
  %v105 = vld [vmem:[%s1 + $0x170] sm:$0xf]
  %v106 = vld [vmem:[%s1 + $0x174] sm:$0xf]
  %v107 = vld [vmem:[%s1 + $0x178] sm:$0xf]
  %v108 = vld [vmem:[%s1 + $0x17c] sm:$0xf]
  %v109 = vld [vmem:[%s1 + $0x180] sm:$0xf]
  %v110 = vld [vmem:[%s1 + $0x184] sm:$0xf]
  %v111 = vld [vmem:[%s1 + $0x188] sm:$0xf]
  %v112 = vld [vmem:[%s1 + $0x18c] sm:$0xf]
  %v113 = vld [vmem:[%s1 + $0x190] sm:$0xf]
  %v114 = vld [vmem:[%s1 + $0x194] sm:$0xf]
  %v115 = vld [vmem:[%s1 + $0x198] sm:$0xf]
  %v116 = vld [vmem:[%s1 + $0x19c] sm:$0xf]
  %v117 = vld [vmem:[%s1 + $0x1a0] sm:$0xf]
  %v118 = vld [vmem:[%s1 + $0x1a4] sm:$0xf]
  %v119 = vld [vmem:[%s1 + $0x1a8] sm:$0xf]
  %v120 = vld [vmem:[%s1 + $0x1ac] sm:$0xf]
  %v121 = vld [vmem:[%s1 + $0x1b0] sm:$0xf]
  %v122 = vld [vmem:[%s1 + $0x1b4] sm:$0xf]
  %v123 = vld [vmem:[%s1 + $0x1b8] sm:$0xf]
  %v124 = vld [vmem:[%s1 + $0x1bc] sm:$0xf]
  %v125 = vld [vmem:[%s1 + $0x1c0] sm:$0xf]
  %v126 = vld [vmem:[%s1 + $0x1c4] sm:$0xf]
  %v127 = vld [vmem:[%s1 + $0x1c8] sm:$0xf]
  %v128 = vld [vmem:[%s1 + $0x1cc] sm:$0xf]
  %v129 = vld [vmem:[%s1 + $0x1d0] sm:$0xf]
  %v130 = vld [vmem:[%s1 + $0x1d4] sm:$0xf]
  %v131 = vld [vmem:[%s1 + $0x1d8] sm:$0xf]
  %v132 = vld [vmem:[%s1 + $0x1dc] sm:$0xf]
  %v133 = vld [vmem:[%s1 + $0x1e0] sm:$0xf]
  %v134 = vld [vmem:[%s1 + $0x1e4] sm:$0xf]
  %v135 = vld [vmem:[%s1 + $0x1e8] sm:$0xf]
  %v136 = vld [vmem:[%s1 + $0x1ec] sm:$0xf]
  %v137 = vld [vmem:[%s1 + $0x1f0] sm:$0xf]
  %v138 = vld [vmem:[%s1 + $0x1f4] sm:$0xf]
  %v139 = vld [vmem:[%s1 + $0x1f8] sm:$0xf]
  %v140 = vld [vmem:[%s1 + $0x1fc] sm:$0xf]
  %v142 = vcombine.high %v12, %v12
  %v144 = vunpack.c.l.s4 1966171168
  %v145 = vunpack.c.0.s8 %v144
  %v146 = vlaneseq
  %v147 = vshrl.u32 %v146, 7
  %v148 = vsub.s32 %v145, %v147
  %v149 = vrot.slane %v12, %v148
  %v151 = vunpack.c.l.s4 1966171168
  %v152 = vunpack.c.0.s8 %v151
  %v153 = vlaneseq
  %v154 = vshrl.u32 %v153, 7
  %v155 = vsub.s32 %v152, %v154
  %v156 = vrot.slane %v142, %v155
  %v157 = vcombine.high %v149, %v149
  %v158 = vcombine.high %v156, %v156
  %v160 = vunpack.c.l.s4 1966171168
  %v161 = vunpack.c.0.s8 %v160
  %v162 = vlaneseq
  %v163 = vshrl.u32 %v162, 7
  %v164 = vsub.s32 %v161, %v163
  %v165 = vrot.slane %v149, %v164
  %v167 = vunpack.c.l.s4 1966171168
  %v168 = vunpack.c.0.s8 %v167
  %v169 = vlaneseq
  %v170 = vshrl.u32 %v169, 7
  %v171 = vsub.s32 %v168, %v170
  %v172 = vrot.slane %v156, %v171
  %v174 = vunpack.c.l.s4 1966171168
  %v175 = vunpack.c.0.s8 %v174
  %v176 = vlaneseq
  %v177 = vshrl.u32 %v176, 7
  %v178 = vsub.s32 %v175, %v177
  %v179 = vrot.slane %v157, %v178
  %v181 = vunpack.c.l.s4 1966171168
  %v182 = vunpack.c.0.s8 %v181
  %v183 = vlaneseq
  %v184 = vshrl.u32 %v183, 7
  %v185 = vsub.s32 %v182, %v184
  %v186 = vrot.slane %v158, %v185
  %v187 = vcombine.high %v165, %v165
  %v188 = vcombine.high %v172, %v172
  %v189 = vcombine.high %v179, %v179
  %v190 = vcombine.high %v186, %v186
  %v327 = vunpack.c.l.b16 %v13
  %v328 = vunpack.c.l.b16 %v14
  %v329 = vunpack.c.l.b16 %v15
  %v330 = vunpack.c.l.b16 %v16
  %v331 = vunpack.c.l.b16 %v17
  %v332 = vunpack.c.l.b16 %v18
  %v333 = vunpack.c.l.b16 %v19
  %v334 = vunpack.c.l.b16 %v20
  %v335 = vunpack.c.l.b16 %v21
  %v336 = vunpack.c.l.b16 %v22
  %v337 = vunpack.c.l.b16 %v23
  %v338 = vunpack.c.l.b16 %v24
  %v339 = vunpack.c.l.b16 %v25
  %v340 = vunpack.c.l.b16 %v26
  %v341 = vunpack.c.l.b16 %v27
  %v342 = vunpack.c.l.b16 %v28
  %v343 = vunpack.c.l.b16 %v29
  %v344 = vunpack.c.l.b16 %v30
  %v345 = vunpack.c.l.b16 %v31
  %v346 = vunpack.c.l.b16 %v32
  %v347 = vunpack.c.l.b16 %v33
  %v348 = vunpack.c.l.b16 %v34
  %v349 = vunpack.c.l.b16 %v35
  %v350 = vunpack.c.l.b16 %v36
  %v351 = vunpack.c.l.b16 %v37
  %v352 = vunpack.c.l.b16 %v38
  %v353 = vunpack.c.l.b16 %v39
  %v354 = vunpack.c.l.b16 %v40
  %v355 = vunpack.c.l.b16 %v41
  %v356 = vunpack.c.l.b16 %v42
  %v357 = vunpack.c.l.b16 %v43
  %v358 = vunpack.c.l.b16 %v44
  %v359 = vunpack.c.l.b16 %v45
  %v360 = vunpack.c.l.b16 %v46
  %v361 = vunpack.c.l.b16 %v47
  %v362 = vunpack.c.l.b16 %v48
  %v363 = vunpack.c.l.b16 %v49
  %v364 = vunpack.c.l.b16 %v50
  %v365 = vunpack.c.l.b16 %v51
  %v366 = vunpack.c.l.b16 %v52
  %v367 = vunpack.c.l.b16 %v53
  %v368 = vunpack.c.l.b16 %v54
  %v369 = vunpack.c.l.b16 %v55
  %v370 = vunpack.c.l.b16 %v56
  %v371 = vunpack.c.l.b16 %v57
  %v372 = vunpack.c.l.b16 %v58
  %v373 = vunpack.c.l.b16 %v59
  %v374 = vunpack.c.l.b16 %v60
  %v375 = vunpack.c.l.b16 %v61
  %v376 = vunpack.c.l.b16 %v62
  %v377 = vunpack.c.l.b16 %v63
  %v378 = vunpack.c.l.b16 %v64
  %v379 = vunpack.c.l.b16 %v65
  %v380 = vunpack.c.l.b16 %v66
  %v381 = vunpack.c.l.b16 %v67
  %v382 = vunpack.c.l.b16 %v68
  %v383 = vunpack.c.l.b16 %v69
  %v384 = vunpack.c.l.b16 %v70
  %v385 = vunpack.c.l.b16 %v71
  %v386 = vunpack.c.l.b16 %v72
  %v387 = vunpack.c.l.b16 %v73
  %v388 = vunpack.c.l.b16 %v74
  %v389 = vunpack.c.l.b16 %v75
  %v390 = vunpack.c.l.b16 %v76
  %v391 = vunpack.c.l.b16 %v77
  %v392 = vunpack.c.l.b16 %v78
  %v393 = vunpack.c.l.b16 %v79
  %v394 = vunpack.c.l.b16 %v80
  %v395 = vunpack.c.l.b16 %v81
  %v396 = vunpack.c.l.b16 %v82
  %v397 = vunpack.c.l.b16 %v83
  %v398 = vunpack.c.l.b16 %v84
  %v399 = vunpack.c.l.b16 %v85
  %v400 = vunpack.c.l.b16 %v86
  %v401 = vunpack.c.l.b16 %v87
  %v402 = vunpack.c.l.b16 %v88
  %v403 = vunpack.c.l.b16 %v89
  %v404 = vunpack.c.l.b16 %v90
  %v405 = vunpack.c.l.b16 %v91
  %v406 = vunpack.c.l.b16 %v92
  %v407 = vunpack.c.l.b16 %v93
  %v408 = vunpack.c.l.b16 %v94
  %v409 = vunpack.c.l.b16 %v95
  %v410 = vunpack.c.l.b16 %v96
  %v411 = vunpack.c.l.b16 %v97
  %v412 = vunpack.c.l.b16 %v98
  %v413 = vunpack.c.l.b16 %v99
  %v414 = vunpack.c.l.b16 %v100
  %v415 = vunpack.c.l.b16 %v101
  %v416 = vunpack.c.l.b16 %v102
  %v417 = vunpack.c.l.b16 %v103
  %v418 = vunpack.c.l.b16 %v104
  %v419 = vunpack.c.l.b16 %v105
  %v420 = vunpack.c.l.b16 %v106
  %v421 = vunpack.c.l.b16 %v107
  %v422 = vunpack.c.l.b16 %v108
  %v423 = vunpack.c.l.b16 %v109
  %v424 = vunpack.c.l.b16 %v110
  %v425 = vunpack.c.l.b16 %v111
  %v426 = vunpack.c.l.b16 %v112
  %v427 = vunpack.c.l.b16 %v113
  %v428 = vunpack.c.l.b16 %v114
  %v429 = vunpack.c.l.b16 %v115
  %v430 = vunpack.c.l.b16 %v116
  %v431 = vunpack.c.l.b16 %v117
  %v432 = vunpack.c.l.b16 %v118
  %v433 = vunpack.c.l.b16 %v119
  %v434 = vunpack.c.l.b16 %v120
  %v435 = vunpack.c.l.b16 %v121
  %v436 = vunpack.c.l.b16 %v122
  %v437 = vunpack.c.l.b16 %v123
  %v438 = vunpack.c.l.b16 %v124
  %v439 = vunpack.c.l.b16 %v125
  %v440 = vunpack.c.l.b16 %v126
  %v441 = vunpack.c.l.b16 %v127
  %v442 = vunpack.c.l.b16 %v128
  %v443 = vunpack.c.l.b16 %v129
  %v444 = vunpack.c.l.b16 %v130
  %v445 = vunpack.c.l.b16 %v131
  %v446 = vunpack.c.l.b16 %v132
  %v447 = vunpack.c.l.b16 %v133
  %v448 = vunpack.c.l.b16 %v134
  %v449 = vunpack.c.l.b16 %v135
  %v450 = vunpack.c.l.b16 %v136
  %v451 = vunpack.c.l.b16 %v137
  %v452 = vunpack.c.l.b16 %v138
  %v453 = vunpack.c.l.b16 %v139
  %v454 = vunpack.c.l.b16 %v140
  %v455 = vpack.c.b16 %v328, %v327
  %v456 = vpack.c.b16 %v330, %v329
  %v457 = vpack.c.b16 %v332, %v331
  %v458 = vpack.c.b16 %v334, %v333
  %v459 = vpack.c.b16 %v336, %v335
  %v460 = vpack.c.b16 %v338, %v337
  %v461 = vpack.c.b16 %v340, %v339
  %v462 = vpack.c.b16 %v342, %v341
  %v463 = vpack.c.b16 %v344, %v343
  %v464 = vpack.c.b16 %v346, %v345
  %v465 = vpack.c.b16 %v348, %v347
  %v466 = vpack.c.b16 %v350, %v349
  %v467 = vpack.c.b16 %v352, %v351
  %v468 = vpack.c.b16 %v354, %v353
  %v469 = vpack.c.b16 %v356, %v355
  %v470 = vpack.c.b16 %v358, %v357
  %v471 = vpack.c.b16 %v360, %v359
  %v472 = vpack.c.b16 %v362, %v361
  %v473 = vpack.c.b16 %v364, %v363
  %v474 = vpack.c.b16 %v366, %v365
  %v475 = vpack.c.b16 %v368, %v367
  %v476 = vpack.c.b16 %v370, %v369
  %v477 = vpack.c.b16 %v372, %v371
  %v478 = vpack.c.b16 %v374, %v373
  %v479 = vpack.c.b16 %v376, %v375
  %v480 = vpack.c.b16 %v378, %v377
  %v481 = vpack.c.b16 %v380, %v379
  %v482 = vpack.c.b16 %v382, %v381
  %v483 = vpack.c.b16 %v384, %v383
  %v484 = vpack.c.b16 %v386, %v385
  %v485 = vpack.c.b16 %v388, %v387
  %v486 = vpack.c.b16 %v390, %v389
  %v487 = vpack.c.b16 %v392, %v391
  %v488 = vpack.c.b16 %v394, %v393
  %v489 = vpack.c.b16 %v396, %v395
  %v490 = vpack.c.b16 %v398, %v397
  %v491 = vpack.c.b16 %v400, %v399
  %v492 = vpack.c.b16 %v402, %v401
  %v493 = vpack.c.b16 %v404, %v403
  %v494 = vpack.c.b16 %v406, %v405
  %v495 = vpack.c.b16 %v408, %v407
  %v496 = vpack.c.b16 %v410, %v409
  %v497 = vpack.c.b16 %v412, %v411
  %v498 = vpack.c.b16 %v414, %v413
  %v499 = vpack.c.b16 %v416, %v415
  %v500 = vpack.c.b16 %v418, %v417
  %v501 = vpack.c.b16 %v420, %v419
  %v502 = vpack.c.b16 %v422, %v421
  %v503 = vpack.c.b16 %v424, %v423
  %v504 = vpack.c.b16 %v426, %v425
  %v505 = vpack.c.b16 %v428, %v427
  %v506 = vpack.c.b16 %v430, %v429
  %v507 = vpack.c.b16 %v432, %v431
  %v508 = vpack.c.b16 %v434, %v433
  %v509 = vpack.c.b16 %v436, %v435
  %v510 = vpack.c.b16 %v438, %v437
  %v511 = vpack.c.b16 %v440, %v439
  %v512 = vpack.c.b16 %v442, %v441
  %v513 = vpack.c.b16 %v444, %v443
  %v514 = vpack.c.b16 %v446, %v445
  %v515 = vpack.c.b16 %v448, %v447
  %v516 = vpack.c.b16 %v450, %v449
  %v517 = vpack.c.b16 %v452, %v451
  %v518 = vpack.c.b16 %v454, %v453
  %583 = vmatprep.subr.bf16.mxu0 0
  %584 = vmatpush1.bf16.msra.mxu0 %v462
  %585 = vmatprep.subr.bf16.mxu0 0
  %586 = vmatpush1.bf16.msra.mxu0 %v461
  %587 = vmatprep.subr.bf16.mxu0 0
  %588 = vmatpush1.bf16.msra.mxu0 %v460
  %589 = vmatprep.subr.bf16.mxu0 0
  %590 = vmatpush1.bf16.msra.mxu0 %v459
  %591 = vmatprep.subr.bf16.mxu0 0
  %592 = vmatpush1.bf16.msra.mxu0 %v458
  %593 = vmatprep.subr.bf16.mxu0 0
  %594 = vmatpush1.bf16.msra.mxu0 %v457
  %595 = vmatprep.subr.bf16.mxu0 0
  %596 = vmatpush1.bf16.msra.mxu0 %v456
  %597 = vmatprep.subr.bf16.mxu0 0
  %598 = vmatpush1.bf16.msra.mxu0 %v455
  %599 = vmatprep.subr.bf16.mxu0 0
  %600 = vmatpush2.bf16.msra.mxu0 %v470
  %601 = vmatprep.subr.bf16.mxu0 0
  %602 = vmatpush2.bf16.msra.mxu0 %v469
  %603 = vmatprep.subr.bf16.mxu0 0
  %604 = vmatpush2.bf16.msra.mxu0 %v468
  %605 = vmatprep.subr.bf16.mxu0 0
  %606 = vmatpush2.bf16.msra.mxu0 %v467
  %607 = vmatprep.subr.bf16.mxu0 0
  %608 = vmatpush2.bf16.msra.mxu0 %v466
  %609 = vmatprep.subr.bf16.mxu0 0
  %610 = vmatpush2.bf16.msra.mxu0 %v465
  %611 = vmatprep.subr.bf16.mxu0 0
  %612 = vmatpush2.bf16.msra.mxu0 %v464
  %613 = vmatprep.subr.bf16.mxu0 0
  %614 = vmatpush2.bf16.msra.mxu0 %v463
  %615 = vmatprep.mubr.bf16.mxu0 %v179
  %616 = vmatmul.mubr.bf16.gmra.mxu0 %v165
  %v617 = vpop.f32.mrf.mxu0
  %v618 = vadd.f32 0.0, %v617
  %v619 = vpop.f32.mrf.mxu0
  %v620 = vpop.f32.mrf.mxu0
  %v621 = vpop.f32.mrf.mxu0
  %622 = vdwg.mxu0
  %623 = vmatprep.subr.bf16.mxu0 0
  %624 = vmatpush1.bf16.msra.mxu0 %v478
  %625 = vmatprep.subr.bf16.mxu0 0
  %626 = vmatpush1.bf16.msra.mxu0 %v477
  %627 = vmatprep.subr.bf16.mxu0 0
  %628 = vmatpush1.bf16.msra.mxu0 %v476
  %629 = vmatprep.subr.bf16.mxu0 0
  %630 = vmatpush1.bf16.msra.mxu0 %v475
  %631 = vmatprep.subr.bf16.mxu0 0
  %632 = vmatpush1.bf16.msra.mxu0 %v474
  %633 = vmatprep.subr.bf16.mxu0 0
  %634 = vmatpush1.bf16.msra.mxu0 %v473
  %635 = vmatprep.subr.bf16.mxu0 0
  %636 = vmatpush1.bf16.msra.mxu0 %v472
  %637 = vmatprep.subr.bf16.mxu0 0
  %638 = vmatpush1.bf16.msra.mxu0 %v471
  %639 = vmatprep.subr.bf16.mxu0 0
  %640 = vmatpush2.bf16.msra.mxu0 %v486
  %641 = vmatprep.subr.bf16.mxu0 0
  %642 = vmatpush2.bf16.msra.mxu0 %v485
  %643 = vmatprep.subr.bf16.mxu0 0
  %644 = vmatpush2.bf16.msra.mxu0 %v484
  %645 = vmatprep.subr.bf16.mxu0 0
  %646 = vmatpush2.bf16.msra.mxu0 %v483
  %647 = vmatprep.subr.bf16.mxu0 0
  %648 = vmatpush2.bf16.msra.mxu0 %v482
  %649 = vmatprep.subr.bf16.mxu0 0
  %650 = vmatpush2.bf16.msra.mxu0 %v481
  %651 = vmatprep.subr.bf16.mxu0 0
  %652 = vmatpush2.bf16.msra.mxu0 %v480
  %653 = vmatprep.subr.bf16.mxu0 0
  %654 = vmatpush2.bf16.msra.mxu0 %v479
  %655 = vmatprep.mubr.bf16.mxu0 %v189
  %656 = vmatmul.mubr.bf16.gmra.mxu0 %v187
  %v657 = vpop.f32.mrf.mxu0
  %v658 = vadd.f32 %v618, %v657
  %v659 = vpop.f32.mrf.mxu0
  %v660 = vpop.f32.mrf.mxu0
  %v661 = vpop.f32.mrf.mxu0
  %662 = vdwg.mxu0
  %663 = vmatprep.subr.bf16.mxu0 0
  %664 = vmatpush1.bf16.msra.mxu0 %v494
  %665 = vmatprep.subr.bf16.mxu0 0
  %666 = vmatpush1.bf16.msra.mxu0 %v493
  %667 = vmatprep.subr.bf16.mxu0 0
  %668 = vmatpush1.bf16.msra.mxu0 %v492
  %669 = vmatprep.subr.bf16.mxu0 0
  %670 = vmatpush1.bf16.msra.mxu0 %v491
  %671 = vmatprep.subr.bf16.mxu0 0
  %672 = vmatpush1.bf16.msra.mxu0 %v490
  %673 = vmatprep.subr.bf16.mxu0 0
  %674 = vmatpush1.bf16.msra.mxu0 %v489
  %675 = vmatprep.subr.bf16.mxu0 0
  %676 = vmatpush1.bf16.msra.mxu0 %v488
  %677 = vmatprep.subr.bf16.mxu0 0
  %678 = vmatpush1.bf16.msra.mxu0 %v487
  %679 = vmatprep.subr.bf16.mxu0 0
  %680 = vmatpush2.bf16.msra.mxu0 %v502
  %681 = vmatprep.subr.bf16.mxu0 0
  %682 = vmatpush2.bf16.msra.mxu0 %v501
  %683 = vmatprep.subr.bf16.mxu0 0
  %684 = vmatpush2.bf16.msra.mxu0 %v500
  %685 = vmatprep.subr.bf16.mxu0 0
  %686 = vmatpush2.bf16.msra.mxu0 %v499
  %687 = vmatprep.subr.bf16.mxu0 0
  %688 = vmatpush2.bf16.msra.mxu0 %v498
  %689 = vmatprep.subr.bf16.mxu0 0
  %690 = vmatpush2.bf16.msra.mxu0 %v497
  %691 = vmatprep.subr.bf16.mxu0 0
  %692 = vmatpush2.bf16.msra.mxu0 %v496
  %693 = vmatprep.subr.bf16.mxu0 0
  %694 = vmatpush2.bf16.msra.mxu0 %v495
  %695 = vmatprep.mubr.bf16.mxu0 %v186
  %696 = vmatmul.mubr.bf16.gmra.mxu0 %v172
  %v697 = vpop.f32.mrf.mxu0
  %v698 = vadd.f32 %v658, %v697
  %v699 = vpop.f32.mrf.mxu0
  %v700 = vpop.f32.mrf.mxu0
  %v701 = vpop.f32.mrf.mxu0
  %702 = vdwg.mxu0
  %703 = vmatprep.subr.bf16.mxu0 0
  %704 = vmatpush1.bf16.msra.mxu0 %v510
  %705 = vmatprep.subr.bf16.mxu0 0
  %706 = vmatpush1.bf16.msra.mxu0 %v509
  %707 = vmatprep.subr.bf16.mxu0 0
  %708 = vmatpush1.bf16.msra.mxu0 %v508
  %709 = vmatprep.subr.bf16.mxu0 0
  %710 = vmatpush1.bf16.msra.mxu0 %v507
  %711 = vmatprep.subr.bf16.mxu0 0
  %712 = vmatpush1.bf16.msra.mxu0 %v506
  %713 = vmatprep.subr.bf16.mxu0 0
  %714 = vmatpush1.bf16.msra.mxu0 %v505
  %715 = vmatprep.subr.bf16.mxu0 0
  %716 = vmatpush1.bf16.msra.mxu0 %v504
  %717 = vmatprep.subr.bf16.mxu0 0
  %718 = vmatpush1.bf16.msra.mxu0 %v503
  %719 = vmatprep.subr.bf16.mxu0 0
  %720 = vmatpush2.bf16.msra.mxu0 %v518
  %721 = vmatprep.subr.bf16.mxu0 0
  %722 = vmatpush2.bf16.msra.mxu0 %v517
  %723 = vmatprep.subr.bf16.mxu0 0
  %724 = vmatpush2.bf16.msra.mxu0 %v516
  %725 = vmatprep.subr.bf16.mxu0 0
  %726 = vmatpush2.bf16.msra.mxu0 %v515
  %727 = vmatprep.subr.bf16.mxu0 0
  %728 = vmatpush2.bf16.msra.mxu0 %v514
  %729 = vmatprep.subr.bf16.mxu0 0
  %730 = vmatpush2.bf16.msra.mxu0 %v513
  %731 = vmatprep.subr.bf16.mxu0 0
  %732 = vmatpush2.bf16.msra.mxu0 %v512
  %733 = vmatprep.subr.bf16.mxu0 0
  %734 = vmatpush2.bf16.msra.mxu0 %v511
  %735 = vmatprep.mubr.bf16.mxu0 %v190
  %736 = vmatmul.mubr.bf16.gmra.mxu0 %v188
  %v737 = vpop.f32.mrf.mxu0
  %v738 = vadd.f32 %v698, %v737
  %v739 = vpop.f32.mrf.mxu0
  %v740 = vpop.f32.mrf.mxu0
  %v741 = vpop.f32.mrf.mxu0
  %742 = vdwg.mxu0
  %v743 = vsub.f32 0.0, %v738
  %v744 = vmul.f32 %v743, 1.442695
  %v745 = vpow.pop %v744
  %v746 = vadd.f32 %v745, 1.0
  %v747 = vrcp.pop %v746
  %v748 = vmul.f32 1.0, %v747
  %vm749 = vcmask 1024
  %750 = vst.msk [vmem:[%s2] sm:$0x3] %vm749, %v748
  // Predicated region
  $region10: #{discriminator_forward.9} parent=0 // pred_check
    _
  $region11: #{discriminator_forward.9} parent=0 // pred_check_branch
    %752 = sbr.rel (0) target = $region13
  $region12: #{discriminator_forward.9} parent=0 // pred_region
    _
  $region13: #{discriminator_forward.9} parent=0 // pred_fallthru
    _
  // Predicated region
  $region14: #{discriminator_forward.9} parent=0 // pred_check
    _
  $region15: #{discriminator_forward.9} parent=0 // pred_check_branch
    %754 = sbr.rel (0) target = $region17
  $region16: #{discriminator_forward.9} parent=0 // pred_region
    _
  $region17: #{discriminator_forward.9} parent=0 // pred_fallthru
    _

</llo_original>
